<compile_context>
chip_gen: v5e
topology: v5e:2x2
jax: 0.10.0
libtpu: 0.0.40
codegen_flags: <defaults>
</compile_context>

<pallas_src>
import math
from functools import partial

import jax
import jax.numpy as jnp
from jax import lax
from jax.experimental import pallas as pl
from jax.experimental.pallas import tpu as pltpu

MM_DTYPE = jnp.bfloat16  # MXU operand dtype; accumulation is always f32.

# Tile targets for the plain linears.  On v5e/v6e (128 MiB VMEM) these can be raised
# (tm->512, tn->1024) together with CompilerParams(vmem_limit_bytes=...); on v7x (64 MiB)
# keep them at or below these values.
LIN_TM, LIN_TN, LIN_TK = 256, 512, 512
LN_TK = 256  # K tile for the matmul + residual + LayerNorm kernel (N is kept whole there)


def _round_up(x, m):
    return (x + m - 1) // m * m


def _tile_and_pad(dim, target, quantum):
    """Return (tile, padded_dim).  Never falls back to a huge full-dim block: if no
    quantum-multiple divisor <= target exists, the dimension is padded up to a tile
    multiple instead (zero padding, output sliced by the caller)."""
    if dim <= target:
        return dim, dim                       # full-dim block is always legal
    t = (target // quantum) * quantum
    cand = t
    while cand >= quantum:
        if dim % cand == 0:
            return cand, dim
        cand -= quantum
    return t, _round_up(dim, t)


def _pick_tile(dim, target, quantum):
    """Divisor-only variant used for sequence axes (attention / fused projection)."""
    if dim <= target:
        return dim
    t = (target // quantum) * quantum
    while t >= quantum:
        if dim % t == 0:
            return t
        t -= quantum
    # TODO(synk): awkward (prime-ish) sequence lengths fall back to a full-dim block here;
    #             pad + key-mask would be the fully general fix.
    return dim


# ----------------------------- tiled linear (+ optional ReLU) -----------------------------

def _linear_kernel(x_ref, w_ref, b_ref, o_ref, acc_ref, *, relu):
    k = pl.program_id(2)

    @pl.when(k == 0)
    def _():
        acc_ref[...] = jnp.zeros_like(acc_ref)

    acc_ref[...] += jnp.dot(x_ref[...].astype(MM_DTYPE), w_ref[...],
                            preferred_element_type=jnp.float32)

    @pl.when(k == pl.num_programs(2) - 1)
    def _():
        y = acc_ref[...] + b_ref[...].astype(jnp.float32)
        if relu:
            y = jnp.maximum(y, 0.0)
        o_ref[...] = y.astype(o_ref.dtype)


def linear(x2d, w, b, relu=False, out_dtype=jnp.float32):
    """x2d: (M, K), w: (K, N) (streamed as bf16), b: (N,) -> (M, N)."""
    M, K = x2d.shape
    N = w.shape[1]
    w = w.astype(MM_DTYPE)                     # no-op if pre-cast at param-prep time
    tm, Mp = _tile_and_pad(M, LIN_TM, 8)
    tn, Np = _tile_and_pad(N, LIN_TN, 128)
    tk, Kp = _tile_and_pad(K, LIN_TK, 128)
    if (Mp, Kp) != (M, K):
        x2d = jnp.pad(x2d, ((0, Mp - M), (0, Kp - K)))
    if (Kp, Np) != (K, N):
        w = jnp.pad(w, ((0, Kp - K), (0, Np - N)))
    if Np != N:
        b = jnp.pad(b, (0, Np - N))
    out = pl.pallas_call(
        partial(_linear_kernel, relu=relu),
        out_shape=jax.ShapeDtypeStruct((Mp, Np), out_dtype),
        grid=(Mp // tm, Np // tn, Kp // tk),
        in_specs=[
            pl.BlockSpec((tm, tk), lambda i, j, k: (i, k)),
            pl.BlockSpec((tk, tn), lambda i, j, k: (k, j)),
            pl.BlockSpec((1, tn), lambda i, j, k: (0, j)),
        ],
        out_specs=pl.BlockSpec((tm, tn), lambda i, j, k: (i, j)),
        scratch_shapes=[pltpu.VMEM((tm, tn), jnp.float32)],
        compiler_params=pltpu.CompilerParams(
            dimension_semantics=("parallel", "parallel", "arbitrary")),
    )(x2d, w, b.reshape(1, Np))
    if (Mp, Np) != (M, N):
        out = out[:M, :N]
    return out


# --------------------- tiled linear fused with residual add + LayerNorm -------------------

def _linear_add_ln_kernel(x_ref, w_ref, b_ref, r_ref, g_ref, beta_ref, o_ref, acc_ref, *, eps):
    k = pl.program_id(1)

    @pl.when(k == 0)
    def _():
        acc_ref[...] = jnp.zeros_like(acc_ref)

    acc_ref[...] += jnp.dot(x_ref[...].astype(MM_DTYPE), w_ref[...],
                            preferred_element_type=jnp.float32)

    @pl.when(k == pl.num_programs(1) - 1)
    def _():
        h = acc_ref[...] + b_ref[...].astype(jnp.float32) + r_ref[...].astype(jnp.float32)
        mean = jnp.mean(h, axis=-1, keepdims=True)
        var = jnp.mean((h - mean) ** 2, axis=-1, keepdims=True)
        y = (h - mean) * lax.rsqrt(var + eps) * g_ref[...] + beta_ref[...]
        o_ref[...] = y.astype(o_ref.dtype)


def linear_add_ln(x2d, w, b, residual2d, gamma, beta, eps):
    """LayerNorm(residual + x @ w + b).  N kept whole (LN needs the full row); M/K tiled
    with a smaller K tile (LN kernel already holds (tm, N) residual/acc)."""
    M, K = x2d.shape
    N = w.shape[1]
    w = w.astype(MM_DTYPE)
    if b is None:
        b = jnp.zeros((N,), jnp.float32)
    tm, Mp = _tile_and_pad(M, LIN_TM, 8)
    tk, Kp = _tile_and_pad(K, LN_TK, 128)
    if (Mp, Kp) != (M, K):
        x2d = jnp.pad(x2d, ((0, Mp - M), (0, Kp - K)))
    if Kp != K:
        w = jnp.pad(w, ((0, Kp - K), (0, 0)))
    if Mp != M:
        residual2d = jnp.pad(residual2d, ((0, Mp - M), (0, 0)))
    out = pl.pallas_call(
        partial(_linear_add_ln_kernel, eps=eps),
        out_shape=jax.ShapeDtypeStruct((Mp, N), jnp.float32),
        grid=(Mp // tm, Kp // tk),
        in_specs=[
            pl.BlockSpec((tm, tk), lambda i, k: (i, k)),
            pl.BlockSpec((tk, N), lambda i, k: (k, 0)),
            pl.BlockSpec((1, N), lambda i, k: (0, 0)),
            pl.BlockSpec((tm, N), lambda i, k: (i, 0)),
            pl.BlockSpec((1, N), lambda i, k: (0, 0)),
            pl.BlockSpec((1, N), lambda i, k: (0, 0)),
        ],
        out_specs=pl.BlockSpec((tm, N), lambda i, k: (i, 0)),
        scratch_shapes=[pltpu.VMEM((tm, N), jnp.float32)],
        compiler_params=pltpu.CompilerParams(
            dimension_semantics=("parallel", "arbitrary")),
    )(x2d, w, b.reshape(1, N), residual2d, gamma.reshape(1, N), beta.reshape(1, N))
    if Mp != M:
        out = out[:M]
    return out


# --------------------- fused (bias-free) QKV projection + RoPE epilogue -------------------

def _rope_permute(w):
    """Fold the reference's even/odd -> [even-half | odd-half] rearrangement into the
    projection weight columns so the kernel only slices contiguous halves."""
    return jnp.concatenate([w[:, 0::2], w[:, 1::2]], axis=1)


def _rope_tables(seq_len, dim):
    # NOTE: reference RotaryPositionEmbedding uses dim = d_model (full model width).
    position = jnp.arange(seq_len, dtype=jnp.float32)[:, None]
    freqs = jnp.exp(jnp.arange(0, dim, 2, dtype=jnp.float32) * -(math.log(10000.0) / dim))
    angles = position * freqs                      # (S, dim/2)
    return jnp.cos(angles), jnp.sin(angles)


def _proj_rope_kernel(x_ref, w_ref, c_ref, s_ref, *rest, d_model, n_rope, n_out):
    out_refs = rest[:n_out]
    acc_ref = rest[n_out]
    kk = pl.program_id(2)

    @pl.when(kk == 0)
    def _():
        acc_ref[...] = jnp.zeros_like(acc_ref)

    acc_ref[...] += jnp.dot(x_ref[0].astype(MM_DTYPE), w_ref[...],
                            preferred_element_type=jnp.float32)

    @pl.when(kk == pl.num_programs(2) - 1)
    def _():
        z = acc_ref[...]                           # (ts, n_out*D) f32
        dh = d_model // 2
        c = c_ref[...]                             # (ts, D/2)
        s = s_ref[...]
        for i, o_ref in enumerate(out_refs):
            base = i * d_model
            if i < n_rope:
                ze = z[:, base:base + dh]                 # == (x @ W)[:, 0::2]
                zo = z[:, base + dh:base + d_model]       # == (x @ W)[:, 1::2]
                y = jnp.concatenate([ze * c - zo * s, zo * c + ze * s], axis=-1)
            else:
                y = z[:, base:base + d_model]
            o_ref[0] = y.astype(o_ref.dtype)


def proj_rope(x, w_fused, cos, sin, n_rope, n_plain):
    """x: (B,S,D) f32, w_fused: (D, (n_rope+n_plain)*D) bf16.  First n_rope outputs get
    RoPE applied in the epilogue of a tiled (S, K)-gridded matmul."""
    B, S, D = x.shape
    n_out = n_rope + n_plain
    ts = _pick_tile(S, 256, 8)
    tk = _pick_tile(D, 512, 128)
    outs = pl.pallas_call(
        partial(_proj_rope_kernel, d_model=D, n_rope=n_rope, n_out=n_out),
        out_shape=tuple(jax.ShapeDtypeStruct((B, S, D), MM_DTYPE) for _ in range(n_out)),
        grid=(B, S // ts, D // tk),
        in_specs=[
            pl.BlockSpec((1, ts, tk), lambda b, si, k: (b, si, k)),
            pl.BlockSpec((tk, n_out * D), lambda b, si, k: (k, 0)),
            pl.BlockSpec((ts, D // 2), lambda b, si, k: (si, 0)),
            pl.BlockSpec((ts, D // 2), lambda b, si, k: (si, 0)),
        ],
        out_specs=tuple(pl.BlockSpec((1, ts, D), lambda b, si, k: (b, si, 0))
                        for _ in range(n_out)),
        scratch_shapes=[pltpu.VMEM((ts, n_out * D), jnp.float32)],
        compiler_params=pltpu.CompilerParams(
            dimension_semantics=("parallel", "parallel", "arbitrary")),
    )(x, w_fused, cos, sin)
    if not isinstance(outs, (tuple, list)):
        outs = (outs,)
    return tuple(outs)


# ----------------------------- attention: grid over (B, H, Sq tiles) ----------------------

def _attn_kernel(q_ref, k_ref, v_ref, pad_ref, ctx_ref, s_ref, *,
                 inv_scale, neg_over_scale, causal, q_tile):
    q = q_ref[0, 0]                                # (tq, hd) bf16
    k = k_ref[0, 0]                                # (Sk, hd) bf16
    v = v_ref[0, 0]                                # (Sk, hd) bf16
    # Mask rebuilt in-kernel from a (1, Sk) pad row — no (B,1,Sq,Sk) mask traffic from HBM.
    masked = pad_ref[0] > 0.0                      # (1, Sk) bool, True = masked key
    logits = lax.dot_general(q, k, (((1,), (1,)), ((), ())),
                             preferred_element_type=jnp.float32)    # (tq, Sk)
    if causal:
        row0 = pl.program_id(2) * q_tile
        rows = lax.broadcasted_iota(jnp.int32, logits.shape, 0) + row0
        cols = lax.broadcasted_iota(jnp.int32, logits.shape, 1)
        masked = jnp.logical_or(masked, cols > rows)
    # (logits + mask*(-1e9)) / sqrt(hd) folded into one multiply-add (same numerics).
    logits = logits * inv_scale + jnp.where(masked, neg_over_scale, 0.0)
    logits = logits - jnp.max(logits, axis=-1, keepdims=True)
    e = jnp.exp(logits)
    p = e / jnp.sum(e, axis=-1, keepdims=True)
    s_ref[0, 0] = p
    ctx_ref[0, 0] = jnp.dot(p.astype(MM_DTYPE), v,
                            preferred_element_type=jnp.float32).astype(ctx_ref.dtype)


def attention(q, k, v, key_pad, num_heads, head_dim, causal):
    """q: (B,Sq,D), k/v: (B,Sk,D) bf16; key_pad: (B,1,Sk) f32 (1.0 = masked key).
    Returns merged context (B,Sq,D) bf16 and attention scores (B,H,Sq,Sk) f32."""
    B, Sq, D = q.shape
    Sk = k.shape[1]
    scale = float(head_dim) ** 0.5
    # Per-head layout handed to the DMA (BlockSpec) instead of in-register column slices.
    qh = q.reshape(B, Sq, num_heads, head_dim).transpose(0, 2, 1, 3)
    kh = k.reshape(B, Sk, num_heads, head_dim).transpose(0, 2, 1, 3)
    vh = v.reshape(B, Sk, num_heads, head_dim).transpose(0, 2, 1, 3)
    tq = _pick_tile(Sq, 256, 8)
    ctx_h, scores = pl.pallas_call(
        partial(_attn_kernel, inv_scale=1.0 / scale, neg_over_scale=-1e9 / scale,
                causal=causal, q_tile=tq),
        out_shape=(
            jax.ShapeDtypeStruct((B, num_heads, Sq, head_dim), MM_DTYPE),
            jax.ShapeDtypeStruct((B, num_heads, Sq, Sk), jnp.float32),
        ),
        grid=(B, num_heads, Sq // tq),
        in_specs=[
            pl.BlockSpec((1, 1, tq, head_dim), lambda b, h, si: (b, h, si, 0)),
            pl.BlockSpec((1, 1, Sk, head_dim), lambda b, h, si: (b, h, 0, 0)),
            pl.BlockSpec((1, 1, Sk, head_dim), lambda b, h, si: (b, h, 0, 0)),
            pl.BlockSpec((1, 1, Sk), lambda b, h, si: (b, 0, 0)),
        ],
        out_specs=(
            pl.BlockSpec((1, 1, tq, head_dim), lambda b, h, si: (b, h, si, 0)),
            pl.BlockSpec((1, 1, tq, Sk), lambda b, h, si: (b, h, si, 0)),
        ),
        compiler_params=pltpu.CompilerParams(
            dimension_semantics=("parallel", "parallel", "parallel")),
    )(qh, kh, vh, key_pad)
    ctx = ctx_h.transpose(0, 2, 1, 3).reshape(B, Sq, D)
    return ctx, scores


# ----------------------------- model glue (plain JAX) -----------------------------

def mha_forward(pp, q_in, kv_in, key_pad, num_heads, *, is_self_attn, causal):
    B, Sq, D = q_in.shape
    Sk = kv_in.shape[1]
    hd = D // num_heads
    cos_q, sin_q = _rope_tables(Sq, D)
    if is_self_attn:
        q, k, v = proj_rope(q_in, pp['w_qkv'], cos_q, sin_q, n_rope=2, n_plain=1)
    else:
        (q,) = proj_rope(q_in, pp['w_q'], cos_q, sin_q, n_rope=1, n_plain=0)
        cos_k, sin_k = _rope_tables(Sk, D)
        k, v = proj_rope(kv_in, pp['w_kv'], cos_k, sin_k, n_rope=1, n_plain=1)
    ctx, attn = attention(q, k, v, key_pad, num_heads, hd, causal)
    return ctx, attn                               # Wo fused with residual + LN downstream


def block_forward(p, x, self_key_pad, num_heads, eps, *, causal,
                  encoder_outputs=None, enc_key_pad=None):
    B, S, D = x.shape
    ctx, sa_scores = mha_forward(p['self_attn'], x, x, self_key_pad, num_heads,
                                 is_self_attn=True, causal=causal)
    h = linear_add_ln(ctx.reshape(B * S, D), p['self_attn']['wo'], None,
                      x.reshape(B * S, D), p['self_ln']['g'], p['self_ln']['b'],
                      eps).reshape(B, S, D)
    ca_scores = None
    if encoder_outputs is not None:
        ctx, ca_scores = mha_forward(p['cross_attn'], h, encoder_outputs, enc_key_pad,
                                     num_heads, is_self_attn=False, causal=False)
        h = linear_add_ln(ctx.reshape(B * S, D), p['cross_attn']['wo'], None,
                          h.reshape(B * S, D), p['cross_ln']['g'], p['cross_ln']['b'],
                          eps).reshape(B, S, D)
    f1 = linear(h.reshape(B * S, D), p['ffn_w1'], p['ffn_b1'],
                relu=True, out_dtype=MM_DTYPE)
    h = linear_add_ln(f1, p['ffn_w2'], p['ffn_b2'], h.reshape(B * S, D),
                      p['ffn_ln']['g'], p['ffn_ln']['b'], eps).reshape(B, S, D)
    return h, sa_scores, ca_scores


def embedding_forward(p, ids, d_model):
    S = ids.shape[1]
    word = p['word'][ids] * math.sqrt(d_model)
    pos = p['pos'][:S][None, :, :]
    return word + pos


def transformer_forward(params, enc_ids, dec_ids, cfg):
    D, H, eps, pad = cfg['d_model'], cfg['num_heads'], cfg['layer_norm_eps'], cfg['pad_idx']
    B, Se = enc_ids.shape
    Sd = dec_ids.shape[1]

    # Only tiny (B,1,S) key-padding rows go to the kernels; causal part is built in-kernel.
    enc_key_pad = (enc_ids == pad).astype(jnp.float32).reshape(B, 1, Se)
    dec_key_pad = (dec_ids == pad).astype(jnp.float32).reshape(B, 1, Sd)

    enc_x = embedding_forward(params['src_emb'], enc_ids, D)
    enc_attn = []
    for lp in params['encoder']:
        enc_x, a, _ = block_forward(lp, enc_x, enc_key_pad, H, eps, causal=False)
        enc_attn.append(a)

    dec_x = embedding_forward(params['trg_emb'], dec_ids, D)
    dec_self_attn, dec_cross_attn = [], []
    for lp in params['decoder']:
        dec_x, a, c = block_forward(lp, dec_x, dec_key_pad, H, eps, causal=True,
                                    encoder_outputs=enc_x, enc_key_pad=enc_key_pad)
        dec_self_attn.append(a)
        dec_cross_attn.append(c)

    M = B * Sd
    logits = linear(dec_x.reshape(M, D), params['out_w'], params['out_b'])
    logits = logits.reshape(B, Sd, cfg['vocab_size'])
    return {
        'logits': logits,
        'encoder_last_hidden_states': enc_x,
        'encoder_attn_scores': enc_attn,
        'decoder_last_hidden_states': dec_x,
        'decoder_self_attn_scores': dec_self_attn,
        'decoder_cross_attn_scores': dec_cross_attn,
    }


# --------------------- parameter init + one-time prep (fuse + bf16 cast) ------------------

def _xavier(key, shape):
    fan_in, fan_out = shape
    a = math.sqrt(6.0 / (fan_in + fan_out))
    return jax.random.uniform(key, shape, jnp.float32, minval=-a, maxval=a)


def _init_attn(key, D):
    ks = jax.random.split(key, 4)
    return {'wq': _xavier(ks[0], (D, D)), 'wk': _xavier(ks[1], (D, D)),
            'wv': _xavier(ks[2], (D, D)), 'wo': _xavier(ks[3], (D, D))}


def _init_block(key, D, F, cross):
    ks = jax.random.split(key, 4)
    p = {
        'self_attn': _init_attn(ks[0], D),
        'self_ln': {'g': jnp.ones((D,), jnp.float32), 'b': jnp.zeros((D,), jnp.float32)},
        'ffn_w1': _xavier(ks[1], (D, F)), 'ffn_b1': jnp.zeros((F,), jnp.float32),
        'ffn_w2': _xavier(ks[2], (F, D)), 'ffn_b2': jnp.zeros((D,), jnp.float32),
        'ffn_ln': {'g': jnp.ones((D,), jnp.float32), 'b': jnp.zeros((D,), jnp.float32)},
    }
    if cross:
        p['cross_attn'] = _init_attn(ks[3], D)
        p['cross_ln'] = {'g': jnp.ones((D,), jnp.float32), 'b': jnp.zeros((D,), jnp.float32)}
    return p


def _init_embedding(key, V, L, D):
    k1, k2 = jax.random.split(key)
    return {'word': _xavier(k1, (V, D)), 'pos': _xavier(k2, (L, D))}


def init_model_params(key, cfg):
    D, F = cfg['d_model'], cfg['dim_feedforward']
    V, L = cfg['vocab_size'], cfg['max_length']
    nE, nD = cfg['num_encoder_layers'], cfg['num_decoder_layers']
    keys = jax.random.split(key, 3 + nE + nD)
    return {
        'src_emb': _init_embedding(keys[0], V, L, D),
        'trg_emb': _init_embedding(keys[1], V, L, D),   # share_embedding = False
        'encoder': [_init_block(keys[3 + i], D, F, cross=False) for i in range(nE)],
        'decoder': [_init_block(keys[3 + nE + i], D, F, cross=True) for i in range(nD)],
        'out_w': _xavier(keys[2], (D, V)),
        'out_b': jnp.zeros((V,), jnp.float32),
    }


def prepare_params(params):
    """One-time host-side prep: fold RoPE even/odd selection into fused QKV weights and
    cast all matmul weights to bf16 (biases and LayerNorm params stay f32)."""
    def prep_attn(p, fuse_qkv):
        out = {'wo': p['wo'].astype(MM_DTYPE)}
        if fuse_qkv:
            out['w_qkv'] = jnp.concatenate(
                [_rope_permute(p['wq']), _rope_permute(p['wk']), p['wv']],
                axis=1).astype(MM_DTYPE)
        else:
            out['w_q'] = _rope_permute(p['wq']).astype(MM_DTYPE)
            out['w_kv'] = jnp.concatenate(
                [_rope_permute(p['wk']), p['wv']], axis=1).astype(MM_DTYPE)
        return out

    def prep_block(p, cross):
        q = {
            'self_attn': prep_attn(p['self_attn'], fuse_qkv=True),
            'self_ln': p['self_ln'],
            'ffn_w1': p['ffn_w1'].astype(MM_DTYPE), 'ffn_b1': p['ffn_b1'],
            'ffn_w2': p['ffn_w2'].astype(MM_DTYPE), 'ffn_b2': p['ffn_b2'],
            'ffn_ln': p['ffn_ln'],
        }
        if cross:
            q['cross_attn'] = prep_attn(p['cross_attn'], fuse_qkv=False)
            q['cross_ln'] = p['cross_ln']
        return q

    return {
        'src_emb': params['src_emb'],
        'trg_emb': params['trg_emb'],
        'encoder': [prep_block(p, cross=False) for p in params['encoder']],
        'decoder': [prep_block(p, cross=True) for p in params['decoder']],
        'out_w': params['out_w'].astype(MM_DTYPE),
        'out_b': params['out_b'],
    }


# --------------------- pure-JAX reference (mirrors the PyTorch module) --------------------

def _ref_rope(x):
    B, S, Dm = x.shape
    pos = jnp.arange(S, dtype=jnp.float32)[:, None]
    freqs = jnp.exp(jnp.arange(0, Dm, 2, dtype=jnp.float32) * -(math.log(10000.0) / Dm))
    ang = pos * freqs
    c = jnp.cos(ang)[None]
    s = jnp.sin(ang)[None]
    xe = x[..., 0::2]
    xo = x[..., 1::2]
    return jnp.concatenate([xe * c - xo * s, xo * c + xe * s], axis=-1)


def _ref_mha(p, q_in, kv_in, mask, H):
    D = q_in.shape[-1]
    hd = D // H

    def split(x):
        b, s, _ = x.shape
        return x.reshape(b, s, H, hd).transpose(0, 2, 1, 3)

    q = split(_ref_rope(q_in @ p['wq']))
    k = split(_ref_rope(kv_in @ p['wk']))
    v = split(kv_in @ p['wv'])
    logits = jnp.einsum('bhqd,bhkd->bhqk', q, k)
    if mask is not None:
        logits = logits + mask * -1e9
    scores = jax.nn.softmax(logits / (hd ** 0.5), axis=-1)
    ctx = jnp.einsum('bhqk,bhkd->bhqd', scores, v)
    b, _, s, _ = ctx.shape
    ctx = ctx.transpose(0, 2, 1, 3).reshape(b, s, D)
    return ctx @ p['wo'], scores


def _ref_ln(x, g, b, eps):
    mean = x.mean(-1, keepdims=True)
    var = ((x - mean) ** 2).mean(-1, keepdims=True)
    return (x - mean) * lax.rsqrt(var + eps) * g + b


def _ref_block(p, x, mask, H, eps, enc_out=None, cross_mask=None):
    h0, sa = _ref_mha(p['self_attn'], x, x, mask, H)
    h = _ref_ln(x + h0, p['self_ln']['g'], p['self_ln']['b'], eps)
    ca = None
    if enc_out is not None:
        c0, ca = _ref_mha(p['cross_attn'], h, enc_out, cross_mask, H)
        h = _ref_ln(h + c0, p['cross_ln']['g'], p['cross_ln']['b'], eps)
    f = jnp.maximum(h @ p['ffn_w1'] + p['ffn_b1'], 0.0) @ p['ffn_w2'] + p['ffn_b2']
    h = _ref_ln(h + f, p['ffn_ln']['g'], p['ffn_ln']['b'], eps)
    return h, sa, ca


def reference_forward(params, enc_ids, dec_ids, cfg):
    D, H, eps, pad = cfg['d_model'], cfg['num_heads'], cfg['layer_norm_eps'], cfg['pad_idx']
    B, Se = enc_ids.shape
    Sd = dec_ids.shape[1]
    enc_pad = (enc_ids == pad)[:, None, None, :].astype(jnp.float32)
    enc_self_mask = jnp.broadcast_to(enc_pad, (B, 1, Se, Se))
    look = jnp.triu(jnp.ones((Sd, Sd), jnp.float32), k=1)[None, None]
    dec_pad = (dec_ids == pad)[:, None, None, :].astype(jnp.float32)
    dec_self_mask = jnp.maximum(jnp.broadcast_to(dec_pad, (B, 1, Sd, Sd)),
                                jnp.broadcast_to(look, (B, 1, Sd, Sd)))
    cross_mask = jnp.broadcast_to(enc_pad, (B, 1, Sd, Se))

    enc_x = embedding_forward(params['src_emb'], enc_ids, D)
    enc_attn = []
    for lp in params['encoder']:
        enc_x, a, _ = _ref_block(lp, enc_x, enc_self_mask, H, eps)
        enc_attn.append(a)

    dec_x = embedding_forward(params['trg_emb'], dec_ids, D)
    dsa, dca = [], []
    for lp in params['decoder']:
        dec_x, a, c = _ref_block(lp, dec_x, dec_self_mask, H, eps,
                                 enc_out=enc_x, cross_mask=cross_mask)
        dsa.append(a)
        dca.append(c)

    logits = dec_x @ params['out_w'] + params['out_b']
    return {
        'logits': logits,
        'encoder_last_hidden_states': enc_x,
        'encoder_attn_scores': enc_attn,
        'decoder_last_hidden_states': dec_x,
        'decoder_self_attn_scores': dsa,
        'decoder_cross_attn_scores': dca,
    }


# ----------------------------- main -----------------------------

if __name__ == "__main__":
    cfg = {
        'vocab_size': 16, 'd_model': 32, 'dim_feedforward': 64, 'num_heads': 4,
        'num_encoder_layers': 2, 'num_decoder_layers': 2, 'max_length': 16,
        'layer_norm_eps': 1e-6, 'pad_idx': 0,
    }
    key = jax.random.PRNGKey(0)
    kp, ke, kd = jax.random.split(key, 3)
    params = init_model_params(kp, cfg)
    pparams = prepare_params(params)

    B, Se, Sd = 2, 8, 8
    enc_ids = jax.random.randint(ke, (B, Se), 0, cfg['vocab_size'])
    dec_ids = jax.random.randint(kd, (B, Sd), 0, cfg['vocab_size'])
    # force some pad tokens so the padding masks are exercised
    enc_ids = enc_ids.at[:, -1].set(cfg['pad_idx'])
    dec_ids = dec_ids.at[:, -1].set(cfg['pad_idx'])

    fwd = jax.jit(lambda p, e, d: transformer_forward(p, e, d, cfg))
    out = fwd(pparams, enc_ids, dec_ids)
    jax.block_until_ready(out)

    ref_fwd = jax.jit(lambda p, e, d: reference_forward(p, e, d, cfg))
    ref = ref_fwd(params, enc_ids, dec_ids)
    jax.block_until_ready(ref)

    # shape checks
    assert out['logits'].shape == (B, Sd, cfg['vocab_size'])
    assert out['encoder_last_hidden_states'].shape == (B, Se, cfg['d_model'])
    assert out['decoder_self_attn_scores'][0].shape == (B, cfg['num_heads'], Sd, Sd)
    assert out['decoder_cross_attn_scores'][0].shape == (B, cfg['num_heads'], Sd, Se)
    assert bool(jnp.all(jnp.isfinite(out['logits'])))

    # numerical checks against the pure-JAX (f32-weight) reference; bf16 MXU operands
    # introduce ~1e-2 absolute error at these scales.
    def _close(a, b, atol):
        return bool(jnp.max(jnp.abs(a - b)) <= atol)

    assert _close(out['logits'], ref['logits'], 0.15)
    assert _close(out['encoder_last_hidden_states'], ref['encoder_last_hidden_states'], 0.15)
    assert _close(out['decoder_last_hidden_states'], ref['decoder_last_hidden_states'], 0.15)
    for a, b in zip(out['encoder_attn_scores'], ref['encoder_attn_scores']):
        assert _close(a, b, 0.06)
    for a, b in zip(out['decoder_self_attn_scores'], ref['decoder_self_attn_scores']):
        assert _close(a, b, 0.06)
    for a, b in zip(out['decoder_cross_attn_scores'], ref['decoder_cross_attn_scores']):
        assert _close(a, b, 0.06)

    print("KERNEL_OK")
</pallas_src>

<mosaic_0001>
module attributes {stable_mosaic.version = 11 : i64} {
  func.func @_proj_rope_kernel(%arg0: i32, %arg1: i32, %arg2: i32, %arg3: memref<1x8x32xf32, #tpu.memory_space<vmem>>, %arg4: memref<32x96xbf16, #tpu.memory_space<vmem>>, %arg5: memref<8x16xf32, #tpu.memory_space<vmem>>, %arg6: memref<8x16xf32, #tpu.memory_space<vmem>>, %arg7: memref<1x8x32xbf16, #tpu.memory_space<vmem>>, %arg8: memref<1x8x32xbf16, #tpu.memory_space<vmem>>, %arg9: memref<1x8x32xbf16, #tpu.memory_space<vmem>>, %arg10: memref<8x96xf32, #tpu.memory_space<vmem>>) attributes {dimension_semantics = [#tpu.dimension_semantics<parallel>, #tpu.dimension_semantics<parallel>, #tpu.dimension_semantics<arbitrary>], iteration_bounds = array<i64: 2, 1, 1>, scalar_prefetch = 0 : i64, scratch_operands = 1 : i64, tpu.core_type = #tpu.core_type<tc>, window_params = [{transform_indices = @transform_0, window_bounds = array<i64: 1, 8, 32>}, {transform_indices = @transform_1, window_bounds = array<i64: 32, 96>}, {transform_indices = @transform_2, window_bounds = array<i64: 8, 16>}, {transform_indices = @transform_3, window_bounds = array<i64: 8, 16>}, {transform_indices = @transform_4, window_bounds = array<i64: 1, 8, 32>}, {transform_indices = @transform_5, window_bounds = array<i64: 1, 8, 32>}, {transform_indices = @transform_6, window_bounds = array<i64: 1, 8, 32>}]} {
    %c0_i32 = arith.constant 0 : i32
    %0 = arith.cmpi eq, %arg2, %c0_i32 : i32
    %1 = arith.extui %0 : i1 to i32
    %c0_i32_0 = arith.constant 0 : i32
    %2 = arith.cmpi ne, %1, %c0_i32_0 : i32
    scf.if %2 {
      %cst_11 = arith.constant 0.000000e+00 : f32
      %14 = vector.broadcast %cst_11 : f32 to vector<8x96xf32>
      %c0_12 = arith.constant 0 : index
      %c0_13 = arith.constant 0 : index
      %15 = vector.load %arg10[%c0_12, %c0_13] : memref<8x96xf32, #tpu.memory_space<vmem>>, vector<8x96xf32>
      tpu.vector_store %arg10[%c0_12, %c0_13], %14 {strides = array<i32>} : memref<8x96xf32, #tpu.memory_space<vmem>>, vector<8x96xf32>,
    } else {
    }
    %c0 = arith.constant 0 : index
    %c0_1 = arith.constant 0 : index
    %3 = vector.load %arg10[%c0, %c0_1] : memref<8x96xf32, #tpu.memory_space<vmem>>, vector<8x96xf32>
    %c0_2 = arith.constant 0 : index
    %c0_3 = arith.constant 0 : index
    %c0_4 = arith.constant 0 : index
    %4 = vector.load %arg3[%c0_2, %c0_3, %c0_4] : memref<1x8x32xf32, #tpu.memory_space<vmem>>, vector<1x8x32xf32>
    %5 = vector.shape_cast %4 : vector<1x8x32xf32> to vector<8x32xf32>
    %6 = arith.truncf %5 : vector<8x32xf32> to vector<8x32xbf16>
    %c0_5 = arith.constant 0 : index
    %c0_6 = arith.constant 0 : index
    %7 = vector.load %arg4[%c0_5, %c0_6] : memref<32x96xbf16, #tpu.memory_space<vmem>>, vector<32x96xbf16>
    %cst = arith.constant dense<0.000000e+00> : vector<8x96xf32>
    %8 = tpu.matmul %6, %7, %cst {dimension_numbers = #tpu.dot_dimension_numbers<[1], [0], [0], [1], [0, 0, 1, 1], [], []>} : vector<8x32xbf16>, vector<32x96xbf16>, vector<8x96xf32> -> vector<8x96xf32>
    %9 = arith.addf %3, %8 : vector<8x96xf32>
    %c0_7 = arith.constant 0 : index
    %c0_8 = arith.constant 0 : index
    %10 = vector.load %arg10[%c0_7, %c0_8] : memref<8x96xf32, #tpu.memory_space<vmem>>, vector<8x96xf32>
    tpu.vector_store %arg10[%c0_7, %c0_8], %9 {strides = array<i32>} : memref<8x96xf32, #tpu.memory_space<vmem>>, vector<8x96xf32>,
    %c0_i32_9 = arith.constant 0 : i32
    %11 = arith.cmpi eq, %arg2, %c0_i32_9 : i32
    %12 = arith.extui %11 : i1 to i32
    %c0_i32_10 = arith.constant 0 : i32
    %13 = arith.cmpi ne, %12, %c0_i32_10 : i32
    scf.if %13 {
      %c0_11 = arith.constant 0 : index
      %c0_12 = arith.constant 0 : index
      %14 = vector.load %arg10[%c0_11, %c0_12] : memref<8x96xf32, #tpu.memory_space<vmem>>, vector<8x96xf32>
      %c0_13 = arith.constant 0 : index
      %c0_14 = arith.constant 0 : index
      %15 = vector.load %arg5[%c0_13, %c0_14] : memref<8x16xf32, #tpu.memory_space<vmem>>, vector<8x16xf32>
      %c0_15 = arith.constant 0 : index
      %c0_16 = arith.constant 0 : index
      %16 = vector.load %arg6[%c0_15, %c0_16] : memref<8x16xf32, #tpu.memory_space<vmem>>, vector<8x16xf32>
      %17 = vector.extract_strided_slice %14 {offsets = [0, 0], sizes = [8, 16], strides = [1, 1]} : vector<8x96xf32> to vector<8x16xf32>
      %18 = vector.extract_strided_slice %14 {offsets = [0, 16], sizes = [8, 16], strides = [1, 1]} : vector<8x96xf32> to vector<8x16xf32>
      %19 = arith.mulf %17, %15 : vector<8x16xf32>
      %20 = arith.mulf %18, %16 : vector<8x16xf32>
      %21 = arith.subf %19, %20 : vector<8x16xf32>
      %22 = arith.mulf %18, %15 : vector<8x16xf32>
      %23 = arith.mulf %17, %16 : vector<8x16xf32>
      %24 = arith.addf %22, %23 : vector<8x16xf32>
      %25 = tpu.concatenate %21, %24 in 1 : vector<8x16xf32>, vector<8x16xf32> -> vector<8x32xf32>
      %26 = arith.truncf %25 : vector<8x32xf32> to vector<8x32xbf16>
      %c0_17 = arith.constant 0 : index
      %c0_18 = arith.constant 0 : index
      %c0_19 = arith.constant 0 : index
      %27 = vector.load %arg7[%c0_17, %c0_18, %c0_19] : memref<1x8x32xbf16, #tpu.memory_space<vmem>>, vector<1x8x32xbf16>
      %28 = vector.shape_cast %27 : vector<1x8x32xbf16> to vector<8x32xbf16>
      %29 = vector.shape_cast %26 : vector<8x32xbf16> to vector<1x8x32xbf16>
      tpu.vector_store %arg7[%c0_17, %c0_18, %c0_19], %29 {strides = array<i32>} : memref<1x8x32xbf16, #tpu.memory_space<vmem>>, vector<1x8x32xbf16>,
      %30 = vector.extract_strided_slice %14 {offsets = [0, 32], sizes = [8, 16], strides = [1, 1]} : vector<8x96xf32> to vector<8x16xf32>
      %31 = vector.extract_strided_slice %14 {offsets = [0, 48], sizes = [8, 16], strides = [1, 1]} : vector<8x96xf32> to vector<8x16xf32>
      %32 = arith.mulf %30, %15 : vector<8x16xf32>
      %33 = arith.mulf %31, %16 : vector<8x16xf32>
      %34 = arith.subf %32, %33 : vector<8x16xf32>
      %35 = arith.mulf %31, %15 : vector<8x16xf32>
      %36 = arith.mulf %30, %16 : vector<8x16xf32>
      %37 = arith.addf %35, %36 : vector<8x16xf32>
      %38 = tpu.concatenate %34, %37 in 1 : vector<8x16xf32>, vector<8x16xf32> -> vector<8x32xf32>
      %39 = arith.truncf %38 : vector<8x32xf32> to vector<8x32xbf16>
      %c0_20 = arith.constant 0 : index
      %c0_21 = arith.constant 0 : index
      %c0_22 = arith.constant 0 : index
      %40 = vector.load %arg8[%c0_20, %c0_21, %c0_22] : memref<1x8x32xbf16, #tpu.memory_space<vmem>>, vector<1x8x32xbf16>
      %41 = vector.shape_cast %40 : vector<1x8x32xbf16> to vector<8x32xbf16>
      %42 = vector.shape_cast %39 : vector<8x32xbf16> to vector<1x8x32xbf16>
      tpu.vector_store %arg8[%c0_20, %c0_21, %c0_22], %42 {strides = array<i32>} : memref<1x8x32xbf16, #tpu.memory_space<vmem>>, vector<1x8x32xbf16>,
      %43 = vector.extract_strided_slice %14 {offsets = [0, 64], sizes = [8, 32], strides = [1, 1]} : vector<8x96xf32> to vector<8x32xf32>
      %44 = arith.truncf %43 : vector<8x32xf32> to vector<8x32xbf16>
      %c0_23 = arith.constant 0 : index
      %c0_24 = arith.constant 0 : index
      %c0_25 = arith.constant 0 : index
      %45 = vector.load %arg9[%c0_23, %c0_24, %c0_25] : memref<1x8x32xbf16, #tpu.memory_space<vmem>>, vector<1x8x32xbf16>
      %46 = vector.shape_cast %45 : vector<1x8x32xbf16> to vector<8x32xbf16>
      %47 = vector.shape_cast %44 : vector<8x32xbf16> to vector<1x8x32xbf16>
      tpu.vector_store %arg9[%c0_23, %c0_24, %c0_25], %47 {strides = array<i32>} : memref<1x8x32xbf16, #tpu.memory_space<vmem>>, vector<1x8x32xbf16>,
    } else {
    }
    return
  }
  func.func @transform_0(%arg0: i32, %arg1: i32, %arg2: i32) -> (i32, i32, i32) {
    %c0_i32 = arith.constant 0 : i32
    return %arg0, %arg1, %arg2 : i32, i32, i32
  }
  func.func @transform_1(%arg0: i32, %arg1: i32, %arg2: i32) -> (i32, i32) {
    %c0_i32 = arith.constant 0 : i32
    %c0_i32_0 = arith.constant 0 : i32
    return %arg2, %c0_i32 : i32, i32
  }
  func.func @transform_2(%arg0: i32, %arg1: i32, %arg2: i32) -> (i32, i32) {
    %c0_i32 = arith.constant 0 : i32
    %c0_i32_0 = arith.constant 0 : i32
    return %arg1, %c0_i32 : i32, i32
  }
  func.func @transform_3(%arg0: i32, %arg1: i32, %arg2: i32) -> (i32, i32) {
    %c0_i32 = arith.constant 0 : i32
    %c0_i32_0 = arith.constant 0 : i32
    return %arg1, %c0_i32 : i32, i32
  }
  func.func @transform_4(%arg0: i32, %arg1: i32, %arg2: i32) -> (i32, i32, i32) {
    %c0_i32 = arith.constant 0 : i32
    %c0_i32_0 = arith.constant 0 : i32
    return %arg0, %arg1, %c0_i32 : i32, i32, i32
  }
  func.func @transform_5(%arg0: i32, %arg1: i32, %arg2: i32) -> (i32, i32, i32) {
    %c0_i32 = arith.constant 0 : i32
    %c0_i32_0 = arith.constant 0 : i32
    return %arg0, %arg1, %c0_i32 : i32, i32, i32
  }
  func.func @transform_6(%arg0: i32, %arg1: i32, %arg2: i32) -> (i32, i32, i32) {
    %c0_i32 = arith.constant 0 : i32
    %c0_i32_0 = arith.constant 0 : i32
    return %arg0, %arg1, %c0_i32 : i32, i32, i32
  }
}

module attributes {stable_mosaic.version = 11 : i64} {
  func.func @_attn_kernel(%arg0: i32, %arg1: i32, %arg2: i32, %arg3: memref<1x1x8x8xbf16, #tpu.memory_space<vmem>>, %arg4: memref<1x1x8x8xbf16, #tpu.memory_space<vmem>>, %arg5: memref<1x1x8x8xbf16, #tpu.memory_space<vmem>>, %arg6: memref<1x1x8xf32, #tpu.memory_space<vmem>>, %arg7: memref<1x1x8x8xbf16, #tpu.memory_space<vmem>>, %arg8: memref<1x1x8x8xf32, #tpu.memory_space<vmem>>) attributes {dimension_semantics = [#tpu.dimension_semantics<parallel>, #tpu.dimension_semantics<parallel>, #tpu.dimension_semantics<parallel>], iteration_bounds = array<i64: 2, 4, 1>, scalar_prefetch = 0 : i64, scratch_operands = 0 : i64, tpu.core_type = #tpu.core_type<tc>, window_params = [{transform_indices = @transform_0, window_bounds = array<i64: 1, 1, 8, 8>}, {transform_indices = @transform_1, window_bounds = array<i64: 1, 1, 8, 8>}, {transform_indices = @transform_2, window_bounds = array<i64: 1, 1, 8, 8>}, {transform_indices = @transform_3, window_bounds = array<i64: 1, 1, 8>}, {transform_indices = @transform_4, window_bounds = array<i64: 1, 1, 8, 8>}, {transform_indices = @transform_5, window_bounds = array<i64: 1, 1, 8, 8>}]} {
    %c0 = arith.constant 0 : index
    %c0_0 = arith.constant 0 : index
    %c0_1 = arith.constant 0 : index
    %c0_2 = arith.constant 0 : index
    %0 = vector.load %arg3[%c0, %c0_0, %c0_1, %c0_2] : memref<1x1x8x8xbf16, #tpu.memory_space<vmem>>, vector<1x1x8x8xbf16>
    %1 = vector.shape_cast %0 : vector<1x1x8x8xbf16> to vector<8x8xbf16>
    %c0_3 = arith.constant 0 : index
    %c0_4 = arith.constant 0 : index
    %c0_5 = arith.constant 0 : index
    %c0_6 = arith.constant 0 : index
    %2 = vector.load %arg4[%c0_3, %c0_4, %c0_5, %c0_6] : memref<1x1x8x8xbf16, #tpu.memory_space<vmem>>, vector<1x1x8x8xbf16>
    %3 = vector.shape_cast %2 : vector<1x1x8x8xbf16> to vector<8x8xbf16>
    %c0_7 = arith.constant 0 : index
    %c0_8 = arith.constant 0 : index
    %c0_9 = arith.constant 0 : index
    %c0_10 = arith.constant 0 : index
    %4 = vector.load %arg5[%c0_7, %c0_8, %c0_9, %c0_10] : memref<1x1x8x8xbf16, #tpu.memory_space<vmem>>, vector<1x1x8x8xbf16>
    %5 = vector.shape_cast %4 : vector<1x1x8x8xbf16> to vector<8x8xbf16>
    %c0_11 = arith.constant 0 : index
    %c0_12 = arith.constant 0 : index
    %c0_13 = arith.constant 0 : index
    %6 = vector.load %arg6[%c0_11, %c0_12, %c0_13] : memref<1x1x8xf32, #tpu.memory_space<vmem>>, vector<1x1x8xf32>
    %7 = vector.shape_cast %6 : vector<1x1x8xf32> to vector<1x8xf32>
    %cst = arith.constant 0.000000e+00 : f32
    %8 = vector.broadcast %cst : f32 to vector<1x8xf32>
    %9 = arith.cmpf ogt, %7, %8 : vector<1x8xf32>
    %cst_14 = arith.constant dense<0.000000e+00> : vector<8x8xf32>
    %10 = tpu.matmul %1, %3, %cst_14 {dimension_numbers = #tpu.dot_dimension_numbers<[1], [1], [0], [0], [0, 0, 1, 0], [], []>} : vector<8x8xbf16>, vector<8x8xbf16>, vector<8x8xf32> -> vector<8x8xf32>
    %c8_i32 = arith.constant 8 : i32
    %11 = arith.muli %arg2, %c8_i32 : i32
    %12 = tpu.iota {dimensions = array<i32: 0>} : vector<8x8xi32>
    %13 = vector.broadcast %11 : i32 to vector<8x8xi32>
    %14 = arith.addi %12, %13 : vector<8x8xi32>
    %15 = tpu.iota {dimensions = array<i32: 1>} : vector<8x8xi32>
    %16 = arith.cmpi sgt, %15, %14 : vector<8x8xi32>
    %17 = vector.broadcast %9 : vector<1x8xi1> to vector<8x8xi1>
    %18 = arith.ori %17, %16 : vector<8x8xi1>
    %cst_15 = arith.constant 0.353553385 : f32
    %19 = vector.broadcast %cst_15 : f32 to vector<8x8xf32>
    %20 = arith.mulf %10, %19 : vector<8x8xf32>
    %cst_16 = arith.constant 0xCDA8965F : f32
    %cst_17 = arith.constant 0.000000e+00 : f32
    %21 = vector.broadcast %cst_16 : f32 to vector<8x8xf32>
    %22 = vector.broadcast %cst_17 : f32 to vector<8x8xf32>
    %23 = arith.select %18, %21, %22 : vector<8x8xi1>, vector<8x8xf32>
    %24 = arith.addf %20, %23 : vector<8x8xf32>
    %cst_18 = arith.constant dense<0xFF800000> : vector<8xf32>
    %25 = vector.multi_reduction <maximumf>, %24, %cst_18 [1] : vector<8x8xf32> to vector<8xf32>
    %26 = vector.shape_cast %25 : vector<8xf32> to vector<8x1xf32>
    %27 = vector.broadcast %26 : vector<8x1xf32> to vector<8x8xf32>
    %28 = arith.subf %24, %27 : vector<8x8xf32>
    %29 = math.exp %28 : vector<8x8xf32>
    %cst_19 = arith.constant dense<0.000000e+00> : vector<8xf32>
    %30 = vector.multi_reduction <add>, %29, %cst_19 [1] : vector<8x8xf32> to vector<8xf32>
    %31 = vector.shape_cast %30 : vector<8xf32> to vector<8x1xf32>
    %32 = vector.broadcast %31 : vector<8x1xf32> to vector<8x8xf32>
    %33 = arith.divf %29, %32 : vector<8x8xf32>
    %c0_20 = arith.constant 0 : index
    %c0_21 = arith.constant 0 : index
    %c0_22 = arith.constant 0 : index
    %c0_23 = arith.constant 0 : index
    %34 = vector.load %arg8[%c0_20, %c0_21, %c0_22, %c0_23] : memref<1x1x8x8xf32, #tpu.memory_space<vmem>>, vector<1x1x8x8xf32>
    %35 = vector.shape_cast %34 : vector<1x1x8x8xf32> to vector<8x8xf32>
    %36 = vector.shape_cast %33 : vector<8x8xf32> to vector<1x1x8x8xf32>
    tpu.vector_store %arg8[%c0_20, %c0_21, %c0_22, %c0_23], %36 {strides = array<i32>} : memref<1x1x8x8xf32, #tpu.memory_space<vmem>>, vector<1x1x8x8xf32>,
    %37 = arith.truncf %33 : vector<8x8xf32> to vector<8x8xbf16>
    %cst_24 = arith.constant dense<0.000000e+00> : vector<8x8xf32>
    %38 = tpu.matmul %37, %5, %cst_24 {dimension_numbers = #tpu.dot_dimension_numbers<[1], [0], [0], [1], [0, 0, 1, 1], [], []>} : vector<8x8xbf16>, vector<8x8xbf16>, vector<8x8xf32> -> vector<8x8xf32>
    %39 = arith.truncf %38 : vector<8x8xf32> to vector<8x8xbf16>
    %c0_25 = arith.constant 0 : index
    %c0_26 = arith.constant 0 : index
    %c0_27 = arith.constant 0 : index
    %c0_28 = arith.constant 0 : index
    %40 = vector.load %arg7[%c0_25, %c0_26, %c0_27, %c0_28] : memref<1x1x8x8xbf16, #tpu.memory_space<vmem>>, vector<1x1x8x8xbf16>
    %41 = vector.shape_cast %40 : vector<1x1x8x8xbf16> to vector<8x8xbf16>
    %42 = vector.shape_cast %39 : vector<8x8xbf16> to vector<1x1x8x8xbf16>
    tpu.vector_store %arg7[%c0_25, %c0_26, %c0_27, %c0_28], %42 {strides = array<i32>} : memref<1x1x8x8xbf16, #tpu.memory_space<vmem>>, vector<1x1x8x8xbf16>,
    return
  }
  func.func @transform_0(%arg0: i32, %arg1: i32, %arg2: i32) -> (i32, i32, i32, i32) {
    %c0_i32 = arith.constant 0 : i32
    %c0_i32_0 = arith.constant 0 : i32
    return %arg0, %arg1, %arg2, %c0_i32 : i32, i32, i32, i32
  }
  func.func @transform_1(%arg0: i32, %arg1: i32, %arg2: i32) -> (i32, i32, i32, i32) {
    %c0_i32 = arith.constant 0 : i32
    %c0_i32_0 = arith.constant 0 : i32
    %c0_i32_1 = arith.constant 0 : i32
    return %arg0, %arg1, %c0_i32, %c0_i32_0 : i32, i32, i32, i32
  }
  func.func @transform_2(%arg0: i32, %arg1: i32, %arg2: i32) -> (i32, i32, i32, i32) {
    %c0_i32 = arith.constant 0 : i32
    %c0_i32_0 = arith.constant 0 : i32
    %c0_i32_1 = arith.constant 0 : i32
    return %arg0, %arg1, %c0_i32, %c0_i32_0 : i32, i32, i32, i32
  }
  func.func @transform_3(%arg0: i32, %arg1: i32, %arg2: i32) -> (i32, i32, i32) {
    %c0_i32 = arith.constant 0 : i32
    %c0_i32_0 = arith.constant 0 : i32
    %c0_i32_1 = arith.constant 0 : i32
    return %arg0, %c0_i32, %c0_i32_0 : i32, i32, i32
  }
  func.func @transform_4(%arg0: i32, %arg1: i32, %arg2: i32) -> (i32, i32, i32, i32) {
    %c0_i32 = arith.constant 0 : i32
    %c0_i32_0 = arith.constant 0 : i32
    return %arg0, %arg1, %arg2, %c0_i32 : i32, i32, i32, i32
  }
  func.func @transform_5(%arg0: i32, %arg1: i32, %arg2: i32) -> (i32, i32, i32, i32) {
    %c0_i32 = arith.constant 0 : i32
    %c0_i32_0 = arith.constant 0 : i32
    return %arg0, %arg1, %arg2, %c0_i32 : i32, i32, i32, i32
  }
}

module attributes {stable_mosaic.version = 11 : i64} {
  func.func @_linear_add_ln_kernel(%arg0: i32, %arg1: i32, %arg2: memref<16x32xbf16, #tpu.memory_space<vmem>>, %arg3: memref<32x32xbf16, #tpu.memory_space<vmem>>, %arg4: memref<1x32xf32, #tpu.memory_space<vmem>>, %arg5: memref<16x32xf32, #tpu.memory_space<vmem>>, %arg6: memref<1x32xf32, #tpu.memory_space<vmem>>, %arg7: memref<1x32xf32, #tpu.memory_space<vmem>>, %arg8: memref<16x32xf32, #tpu.memory_space<vmem>>, %arg9: memref<16x32xf32, #tpu.memory_space<vmem>>) attributes {dimension_semantics = [#tpu.dimension_semantics<parallel>, #tpu.dimension_semantics<arbitrary>], iteration_bounds = array<i64: 1, 1>, scalar_prefetch = 0 : i64, scratch_operands = 1 : i64, tpu.core_type = #tpu.core_type<tc>, window_params = [{transform_indices = @transform_0, window_bounds = array<i64: 16, 32>}, {transform_indices = @transform_1, window_bounds = array<i64: 32, 32>}, {pipeline_mode = #tpu.pipeline_mode<synchronous>, transform_indices = @transform_2, window_bounds = array<i64: 1, 32>}, {transform_indices = @transform_3, window_bounds = array<i64: 16, 32>}, {pipeline_mode = #tpu.pipeline_mode<synchronous>, transform_indices = @transform_4, window_bounds = array<i64: 1, 32>}, {pipeline_mode = #tpu.pipeline_mode<synchronous>, transform_indices = @transform_5, window_bounds = array<i64: 1, 32>}, {transform_indices = @transform_6, window_bounds = array<i64: 16, 32>}]} {
    %c0_i32 = arith.constant 0 : i32
    %0 = arith.cmpi eq, %arg1, %c0_i32 : i32
    %1 = arith.extui %0 : i1 to i32
    %c0_i32_0 = arith.constant 0 : i32
    %2 = arith.cmpi ne, %1, %c0_i32_0 : i32
    scf.if %2 {
      %cst_10 = arith.constant 0.000000e+00 : f32
      %12 = vector.broadcast %cst_10 : f32 to vector<16x32xf32>
      %c0_11 = arith.constant 0 : index
      %c0_12 = arith.constant 0 : index
      %13 = vector.load %arg9[%c0_11, %c0_12] : memref<16x32xf32, #tpu.memory_space<vmem>>, vector<16x32xf32>
      tpu.vector_store %arg9[%c0_11, %c0_12], %12 {strides = array<i32>} : memref<16x32xf32, #tpu.memory_space<vmem>>, vector<16x32xf32>,
    } else {
    }
    %c0 = arith.constant 0 : index
    %c0_1 = arith.constant 0 : index
    %3 = vector.load %arg9[%c0, %c0_1] : memref<16x32xf32, #tpu.memory_space<vmem>>, vector<16x32xf32>
    %c0_2 = arith.constant 0 : index
    %c0_3 = arith.constant 0 : index
    %4 = vector.load %arg2[%c0_2, %c0_3] : memref<16x32xbf16, #tpu.memory_space<vmem>>, vector<16x32xbf16>
    %c0_4 = arith.constant 0 : index
    %c0_5 = arith.constant 0 : index
    %5 = vector.load %arg3[%c0_4, %c0_5] : memref<32x32xbf16, #tpu.memory_space<vmem>>, vector<32x32xbf16>
    %cst = arith.constant dense<0.000000e+00> : vector<16x32xf32>
    %6 = tpu.matmul %4, %5, %cst {dimension_numbers = #tpu.dot_dimension_numbers<[1], [0], [0], [1], [0, 0, 1, 1], [], []>} : vector<16x32xbf16>, vector<32x32xbf16>, vector<16x32xf32> -> vector<16x32xf32>
    %7 = arith.addf %3, %6 : vector<16x32xf32>
    %c0_6 = arith.constant 0 : index
    %c0_7 = arith.constant 0 : index
    %8 = vector.load %arg9[%c0_6, %c0_7] : memref<16x32xf32, #tpu.memory_space<vmem>>, vector<16x32xf32>
    tpu.vector_store %arg9[%c0_6, %c0_7], %7 {strides = array<i32>} : memref<16x32xf32, #tpu.memory_space<vmem>>, vector<16x32xf32>,
    %c0_i32_8 = arith.constant 0 : i32
    %9 = arith.cmpi eq, %arg1, %c0_i32_8 : i32
    %10 = arith.extui %9 : i1 to i32
    %c0_i32_9 = arith.constant 0 : i32
    %11 = arith.cmpi ne, %10, %c0_i32_9 : i32
    scf.if %11 {
      %c0_10 = arith.constant 0 : index
      %c0_11 = arith.constant 0 : index
      %12 = vector.load %arg9[%c0_10, %c0_11] : memref<16x32xf32, #tpu.memory_space<vmem>>, vector<16x32xf32>
      %c0_12 = arith.constant 0 : index
      %c0_13 = arith.constant 0 : index
      %13 = vector.load %arg4[%c0_12, %c0_13] : memref<1x32xf32, #tpu.memory_space<vmem>>, vector<1x32xf32>
      %14 = vector.broadcast %13 : vector<1x32xf32> to vector<16x32xf32>
      %15 = arith.addf %12, %14 : vector<16x32xf32>
      %c0_14 = arith.constant 0 : index
      %c0_15 = arith.constant 0 : index
      %16 = vector.load %arg5[%c0_14, %c0_15] : memref<16x32xf32, #tpu.memory_space<vmem>>, vector<16x32xf32>
      %17 = arith.addf %15, %16 : vector<16x32xf32>
      %cst_16 = arith.constant dense<0.000000e+00> : vector<16xf32>
      %18 = vector.multi_reduction <add>, %17, %cst_16 [1] : vector<16x32xf32> to vector<16xf32>
      %19 = vector.shape_cast %18 : vector<16xf32> to vector<16x1xf32>
      %cst_17 = arith.constant 3.200000e+01 : f32
      %20 = vector.broadcast %cst_17 : f32 to vector<16x1xf32>
      %21 = arith.divf %19, %20 : vector<16x1xf32>
      %22 = vector.broadcast %21 : vector<16x1xf32> to vector<16x32xf32>
      %23 = arith.subf %17, %22 : vector<16x32xf32>
      %24 = arith.mulf %23, %23 : vector<16x32xf32>
      %cst_18 = arith.constant dense<0.000000e+00> : vector<16xf32>
      %25 = vector.multi_reduction <add>, %24, %cst_18 [1] : vector<16x32xf32> to vector<16xf32>
      %26 = vector.shape_cast %25 : vector<16xf32> to vector<16x1xf32>
      %cst_19 = arith.constant 3.200000e+01 : f32
      %27 = vector.broadcast %cst_19 : f32 to vector<16x1xf32>
      %28 = arith.divf %26, %27 : vector<16x1xf32>
      %29 = vector.broadcast %21 : vector<16x1xf32> to vector<16x32xf32>
      %30 = arith.subf %17, %29 : vector<16x32xf32>
      %cst_20 = arith.constant 9.99999997E-7 : f32
      %31 = vector.broadcast %cst_20 : f32 to vector<16x1xf32>
      %32 = arith.addf %28, %31 : vector<16x1xf32>
      %33 = math.rsqrt %32 : vector<16x1xf32>
      %34 = vector.broadcast %33 : vector<16x1xf32> to vector<16x32xf32>
      %35 = arith.mulf %30, %34 : vector<16x32xf32>
      %c0_21 = arith.constant 0 : index
      %c0_22 = arith.constant 0 : index
      %36 = vector.load %arg6[%c0_21, %c0_22] : memref<1x32xf32, #tpu.memory_space<vmem>>, vector<1x32xf32>
      %37 = vector.broadcast %36 : vector<1x32xf32> to vector<16x32xf32>
      %38 = arith.mulf %35, %37 : vector<16x32xf32>
      %c0_23 = arith.constant 0 : index
      %c0_24 = arith.constant 0 : index
      %39 = vector.load %arg7[%c0_23, %c0_24] : memref<1x32xf32, #tpu.memory_space<vmem>>, vector<1x32xf32>
      %40 = vector.broadcast %39 : vector<1x32xf32> to vector<16x32xf32>
      %41 = arith.addf %38, %40 : vector<16x32xf32>
      %c0_25 = arith.constant 0 : index
      %c0_26 = arith.constant 0 : index
      %42 = vector.load %arg8[%c0_25, %c0_26] : memref<16x32xf32, #tpu.memory_space<vmem>>, vector<16x32xf32>
      tpu.vector_store %arg8[%c0_25, %c0_26], %41 {strides = array<i32>} : memref<16x32xf32, #tpu.memory_space<vmem>>, vector<16x32xf32>,
    } else {
    }
    return
  }
  func.func @transform_0(%arg0: i32, %arg1: i32) -> (i32, i32) {
    %c0_i32 = arith.constant 0 : i32
    return %arg0, %arg1 : i32, i32
  }
  func.func @transform_1(%arg0: i32, %arg1: i32) -> (i32, i32) {
    %c0_i32 = arith.constant 0 : i32
    %c0_i32_0 = arith.constant 0 : i32
    return %arg1, %c0_i32 : i32, i32
  }
  func.func @transform_2(%arg0: i32, %arg1: i32) -> (i32, i32) {
    %c0_i32 = arith.constant 0 : i32
    %c0_i32_0 = arith.constant 0 : i32
    %c0_i32_1 = arith.constant 0 : i32
    return %c0_i32, %c0_i32_0 : i32, i32
  }
  func.func @transform_3(%arg0: i32, %arg1: i32) -> (i32, i32) {
    %c0_i32 = arith.constant 0 : i32
    %c0_i32_0 = arith.constant 0 : i32
    return %arg0, %c0_i32 : i32, i32
  }
  func.func @transform_4(%arg0: i32, %arg1: i32) -> (i32, i32) {
    %c0_i32 = arith.constant 0 : i32
    %c0_i32_0 = arith.constant 0 : i32
    %c0_i32_1 = arith.constant 0 : i32
    return %c0_i32, %c0_i32_0 : i32, i32
  }
  func.func @transform_5(%arg0: i32, %arg1: i32) -> (i32, i32) {
    %c0_i32 = arith.constant 0 : i32
    %c0_i32_0 = arith.constant 0 : i32
    %c0_i32_1 = arith.constant 0 : i32
    return %c0_i32, %c0_i32_0 : i32, i32
  }
  func.func @transform_6(%arg0: i32, %arg1: i32) -> (i32, i32) {
    %c0_i32 = arith.constant 0 : i32
    %c0_i32_0 = arith.constant 0 : i32
    return %arg0, %c0_i32 : i32, i32
  }
}

module attributes {stable_mosaic.version = 11 : i64} {
  func.func @_proj_rope_kernel(%arg0: i32, %arg1: i32, %arg2: i32, %arg3: memref<1x8x32xf32, #tpu.memory_space<vmem>>, %arg4: memref<32x32xbf16, #tpu.memory_space<vmem>>, %arg5: memref<8x16xf32, #tpu.memory_space<vmem>>, %arg6: memref<8x16xf32, #tpu.memory_space<vmem>>, %arg7: memref<1x8x32xbf16, #tpu.memory_space<vmem>>, %arg8: memref<8x32xf32, #tpu.memory_space<vmem>>) attributes {dimension_semantics = [#tpu.dimension_semantics<parallel>, #tpu.dimension_semantics<parallel>, #tpu.dimension_semantics<arbitrary>], iteration_bounds = array<i64: 2, 1, 1>, scalar_prefetch = 0 : i64, scratch_operands = 1 : i64, tpu.core_type = #tpu.core_type<tc>, window_params = [{transform_indices = @transform_0, window_bounds = array<i64: 1, 8, 32>}, {transform_indices = @transform_1, window_bounds = array<i64: 32, 32>}, {transform_indices = @transform_2, window_bounds = array<i64: 8, 16>}, {transform_indices = @transform_3, window_bounds = array<i64: 8, 16>}, {transform_indices = @transform_4, window_bounds = array<i64: 1, 8, 32>}]} {
    %c0_i32 = arith.constant 0 : i32
    %0 = arith.cmpi eq, %arg2, %c0_i32 : i32
    %1 = arith.extui %0 : i1 to i32
    %c0_i32_0 = arith.constant 0 : i32
    %2 = arith.cmpi ne, %1, %c0_i32_0 : i32
    scf.if %2 {
      %cst_11 = arith.constant 0.000000e+00 : f32
      %14 = vector.broadcast %cst_11 : f32 to vector<8x32xf32>
      %c0_12 = arith.constant 0 : index
      %c0_13 = arith.constant 0 : index
      %15 = vector.load %arg8[%c0_12, %c0_13] : memref<8x32xf32, #tpu.memory_space<vmem>>, vector<8x32xf32>
      tpu.vector_store %arg8[%c0_12, %c0_13], %14 {strides = array<i32>} : memref<8x32xf32, #tpu.memory_space<vmem>>, vector<8x32xf32>,
    } else {
    }
    %c0 = arith.constant 0 : index
    %c0_1 = arith.constant 0 : index
    %3 = vector.load %arg8[%c0, %c0_1] : memref<8x32xf32, #tpu.memory_space<vmem>>, vector<8x32xf32>
    %c0_2 = arith.constant 0 : index
    %c0_3 = arith.constant 0 : index
    %c0_4 = arith.constant 0 : index
    %4 = vector.load %arg3[%c0_2, %c0_3, %c0_4] : memref<1x8x32xf32, #tpu.memory_space<vmem>>, vector<1x8x32xf32>
    %5 = vector.shape_cast %4 : vector<1x8x32xf32> to vector<8x32xf32>
    %6 = arith.truncf %5 : vector<8x32xf32> to vector<8x32xbf16>
    %c0_5 = arith.constant 0 : index
    %c0_6 = arith.constant 0 : index
    %7 = vector.load %arg4[%c0_5, %c0_6] : memref<32x32xbf16, #tpu.memory_space<vmem>>, vector<32x32xbf16>
    %cst = arith.constant dense<0.000000e+00> : vector<8x32xf32>
    %8 = tpu.matmul %6, %7, %cst {dimension_numbers = #tpu.dot_dimension_numbers<[1], [0], [0], [1], [0, 0, 1, 1], [], []>} : vector<8x32xbf16>, vector<32x32xbf16>, vector<8x32xf32> -> vector<8x32xf32>
    %9 = arith.addf %3, %8 : vector<8x32xf32>
    %c0_7 = arith.constant 0 : index
    %c0_8 = arith.constant 0 : index
    %10 = vector.load %arg8[%c0_7, %c0_8] : memref<8x32xf32, #tpu.memory_space<vmem>>, vector<8x32xf32>
    tpu.vector_store %arg8[%c0_7, %c0_8], %9 {strides = array<i32>} : memref<8x32xf32, #tpu.memory_space<vmem>>, vector<8x32xf32>,
    %c0_i32_9 = arith.constant 0 : i32
    %11 = arith.cmpi eq, %arg2, %c0_i32_9 : i32
    %12 = arith.extui %11 : i1 to i32
    %c0_i32_10 = arith.constant 0 : i32
    %13 = arith.cmpi ne, %12, %c0_i32_10 : i32
    scf.if %13 {
      %c0_11 = arith.constant 0 : index
      %c0_12 = arith.constant 0 : index
      %14 = vector.load %arg8[%c0_11, %c0_12] : memref<8x32xf32, #tpu.memory_space<vmem>>, vector<8x32xf32>
      %c0_13 = arith.constant 0 : index
      %c0_14 = arith.constant 0 : index
      %15 = vector.load %arg5[%c0_13, %c0_14] : memref<8x16xf32, #tpu.memory_space<vmem>>, vector<8x16xf32>
      %c0_15 = arith.constant 0 : index
      %c0_16 = arith.constant 0 : index
      %16 = vector.load %arg6[%c0_15, %c0_16] : memref<8x16xf32, #tpu.memory_space<vmem>>, vector<8x16xf32>
      %17 = vector.extract_strided_slice %14 {offsets = [0, 0], sizes = [8, 16], strides = [1, 1]} : vector<8x32xf32> to vector<8x16xf32>
      %18 = vector.extract_strided_slice %14 {offsets = [0, 16], sizes = [8, 16], strides = [1, 1]} : vector<8x32xf32> to vector<8x16xf32>
      %19 = arith.mulf %17, %15 : vector<8x16xf32>
      %20 = arith.mulf %18, %16 : vector<8x16xf32>
      %21 = arith.subf %19, %20 : vector<8x16xf32>
      %22 = arith.mulf %18, %15 : vector<8x16xf32>
      %23 = arith.mulf %17, %16 : vector<8x16xf32>
      %24 = arith.addf %22, %23 : vector<8x16xf32>
      %25 = tpu.concatenate %21, %24 in 1 : vector<8x16xf32>, vector<8x16xf32> -> vector<8x32xf32>
      %26 = arith.truncf %25 : vector<8x32xf32> to vector<8x32xbf16>
      %c0_17 = arith.constant 0 : index
      %c0_18 = arith.constant 0 : index
      %c0_19 = arith.constant 0 : index
      %27 = vector.load %arg7[%c0_17, %c0_18, %c0_19] : memref<1x8x32xbf16, #tpu.memory_space<vmem>>, vector<1x8x32xbf16>
      %28 = vector.shape_cast %27 : vector<1x8x32xbf16> to vector<8x32xbf16>
      %29 = vector.shape_cast %26 : vector<8x32xbf16> to vector<1x8x32xbf16>
      tpu.vector_store %arg7[%c0_17, %c0_18, %c0_19], %29 {strides = array<i32>} : memref<1x8x32xbf16, #tpu.memory_space<vmem>>, vector<1x8x32xbf16>,
    } else {
    }
    return
  }
  func.func @transform_0(%arg0: i32, %arg1: i32, %arg2: i32) -> (i32, i32, i32) {
    %c0_i32 = arith.constant 0 : i32
    return %arg0, %arg1, %arg2 : i32, i32, i32
  }
  func.func @transform_1(%arg0: i32, %arg1: i32, %arg2: i32) -> (i32, i32) {
    %c0_i32 = arith.constant 0 : i32
    %c0_i32_0 = arith.constant 0 : i32
    return %arg2, %c0_i32 : i32, i32
  }
  func.func @transform_2(%arg0: i32, %arg1: i32, %arg2: i32) -> (i32, i32) {
    %c0_i32 = arith.constant 0 : i32
    %c0_i32_0 = arith.constant 0 : i32
    return %arg1, %c0_i32 : i32, i32
  }
  func.func @transform_3(%arg0: i32, %arg1: i32, %arg2: i32) -> (i32, i32) {
    %c0_i32 = arith.constant 0 : i32
    %c0_i32_0 = arith.constant 0 : i32
    return %arg1, %c0_i32 : i32, i32
  }
  func.func @transform_4(%arg0: i32, %arg1: i32, %arg2: i32) -> (i32, i32, i32) {
    %c0_i32 = arith.constant 0 : i32
    %c0_i32_0 = arith.constant 0 : i32
    return %arg0, %arg1, %c0_i32 : i32, i32, i32
  }
}

module attributes {stable_mosaic.version = 11 : i64} {
  func.func @_attn_kernel(%arg0: i32, %arg1: i32, %arg2: i32, %arg3: memref<1x1x8x8xbf16, #tpu.memory_space<vmem>>, %arg4: memref<1x1x8x8xbf16, #tpu.memory_space<vmem>>, %arg5: memref<1x1x8x8xbf16, #tpu.memory_space<vmem>>, %arg6: memref<1x1x8xf32, #tpu.memory_space<vmem>>, %arg7: memref<1x1x8x8xbf16, #tpu.memory_space<vmem>>, %arg8: memref<1x1x8x8xf32, #tpu.memory_space<vmem>>) attributes {dimension_semantics = [#tpu.dimension_semantics<parallel>, #tpu.dimension_semantics<parallel>, #tpu.dimension_semantics<parallel>], iteration_bounds = array<i64: 2, 4, 1>, scalar_prefetch = 0 : i64, scratch_operands = 0 : i64, tpu.core_type = #tpu.core_type<tc>, window_params = [{transform_indices = @transform_0, window_bounds = array<i64: 1, 1, 8, 8>}, {transform_indices = @transform_1, window_bounds = array<i64: 1, 1, 8, 8>}, {transform_indices = @transform_2, window_bounds = array<i64: 1, 1, 8, 8>}, {transform_indices = @transform_3, window_bounds = array<i64: 1, 1, 8>}, {transform_indices = @transform_4, window_bounds = array<i64: 1, 1, 8, 8>}, {transform_indices = @transform_5, window_bounds = array<i64: 1, 1, 8, 8>}]} {
    %c0 = arith.constant 0 : index
    %c0_0 = arith.constant 0 : index
    %c0_1 = arith.constant 0 : index
    %c0_2 = arith.constant 0 : index
    %0 = vector.load %arg3[%c0, %c0_0, %c0_1, %c0_2] : memref<1x1x8x8xbf16, #tpu.memory_space<vmem>>, vector<1x1x8x8xbf16>
    %1 = vector.shape_cast %0 : vector<1x1x8x8xbf16> to vector<8x8xbf16>
    %c0_3 = arith.constant 0 : index
    %c0_4 = arith.constant 0 : index
    %c0_5 = arith.constant 0 : index
    %c0_6 = arith.constant 0 : index
    %2 = vector.load %arg4[%c0_3, %c0_4, %c0_5, %c0_6] : memref<1x1x8x8xbf16, #tpu.memory_space<vmem>>, vector<1x1x8x8xbf16>
    %3 = vector.shape_cast %2 : vector<1x1x8x8xbf16> to vector<8x8xbf16>
    %c0_7 = arith.constant 0 : index
    %c0_8 = arith.constant 0 : index
    %c0_9 = arith.constant 0 : index
    %c0_10 = arith.constant 0 : index
    %4 = vector.load %arg5[%c0_7, %c0_8, %c0_9, %c0_10] : memref<1x1x8x8xbf16, #tpu.memory_space<vmem>>, vector<1x1x8x8xbf16>
    %5 = vector.shape_cast %4 : vector<1x1x8x8xbf16> to vector<8x8xbf16>
    %c0_11 = arith.constant 0 : index
    %c0_12 = arith.constant 0 : index
    %c0_13 = arith.constant 0 : index
    %6 = vector.load %arg6[%c0_11, %c0_12, %c0_13] : memref<1x1x8xf32, #tpu.memory_space<vmem>>, vector<1x1x8xf32>
    %7 = vector.shape_cast %6 : vector<1x1x8xf32> to vector<1x8xf32>
    %cst = arith.constant 0.000000e+00 : f32
    %8 = vector.broadcast %cst : f32 to vector<1x8xf32>
    %9 = arith.cmpf ogt, %7, %8 : vector<1x8xf32>
    %cst_14 = arith.constant dense<0.000000e+00> : vector<8x8xf32>
    %10 = tpu.matmul %1, %3, %cst_14 {dimension_numbers = #tpu.dot_dimension_numbers<[1], [1], [0], [0], [0, 0, 1, 0], [], []>} : vector<8x8xbf16>, vector<8x8xbf16>, vector<8x8xf32> -> vector<8x8xf32>
    %cst_15 = arith.constant 0.353553385 : f32
    %11 = vector.broadcast %cst_15 : f32 to vector<8x8xf32>
    %12 = arith.mulf %10, %11 : vector<8x8xf32>
    %cst_16 = arith.constant 0xCDA8965F : f32
    %cst_17 = arith.constant 0.000000e+00 : f32
    %13 = vector.broadcast %cst_16 : f32 to vector<1x8xf32>
    %14 = vector.broadcast %cst_17 : f32 to vector<1x8xf32>
    %15 = arith.select %9, %13, %14 : vector<1x8xi1>, vector<1x8xf32>
    %16 = vector.broadcast %15 : vector<1x8xf32> to vector<8x8xf32>
    %17 = arith.addf %12, %16 : vector<8x8xf32>
    %cst_18 = arith.constant dense<0xFF800000> : vector<8xf32>
    %18 = vector.multi_reduction <maximumf>, %17, %cst_18 [1] : vector<8x8xf32> to vector<8xf32>
    %19 = vector.shape_cast %18 : vector<8xf32> to vector<8x1xf32>
    %20 = vector.broadcast %19 : vector<8x1xf32> to vector<8x8xf32>
    %21 = arith.subf %17, %20 : vector<8x8xf32>
    %22 = math.exp %21 : vector<8x8xf32>
    %cst_19 = arith.constant dense<0.000000e+00> : vector<8xf32>
    %23 = vector.multi_reduction <add>, %22, %cst_19 [1] : vector<8x8xf32> to vector<8xf32>
    %24 = vector.shape_cast %23 : vector<8xf32> to vector<8x1xf32>
    %25 = vector.broadcast %24 : vector<8x1xf32> to vector<8x8xf32>
    %26 = arith.divf %22, %25 : vector<8x8xf32>
    %c0_20 = arith.constant 0 : index
    %c0_21 = arith.constant 0 : index
    %c0_22 = arith.constant 0 : index
    %c0_23 = arith.constant 0 : index
    %27 = vector.load %arg8[%c0_20, %c0_21, %c0_22, %c0_23] : memref<1x1x8x8xf32, #tpu.memory_space<vmem>>, vector<1x1x8x8xf32>
    %28 = vector.shape_cast %27 : vector<1x1x8x8xf32> to vector<8x8xf32>
    %29 = vector.shape_cast %26 : vector<8x8xf32> to vector<1x1x8x8xf32>
    tpu.vector_store %arg8[%c0_20, %c0_21, %c0_22, %c0_23], %29 {strides = array<i32>} : memref<1x1x8x8xf32, #tpu.memory_space<vmem>>, vector<1x1x8x8xf32>,
    %30 = arith.truncf %26 : vector<8x8xf32> to vector<8x8xbf16>
    %cst_24 = arith.constant dense<0.000000e+00> : vector<8x8xf32>
    %31 = tpu.matmul %30, %5, %cst_24 {dimension_numbers = #tpu.dot_dimension_numbers<[1], [0], [0], [1], [0, 0, 1, 1], [], []>} : vector<8x8xbf16>, vector<8x8xbf16>, vector<8x8xf32> -> vector<8x8xf32>
    %32 = arith.truncf %31 : vector<8x8xf32> to vector<8x8xbf16>
    %c0_25 = arith.constant 0 : index
    %c0_26 = arith.constant 0 : index
    %c0_27 = arith.constant 0 : index
    %c0_28 = arith.constant 0 : index
    %33 = vector.load %arg7[%c0_25, %c0_26, %c0_27, %c0_28] : memref<1x1x8x8xbf16, #tpu.memory_space<vmem>>, vector<1x1x8x8xbf16>
    %34 = vector.shape_cast %33 : vector<1x1x8x8xbf16> to vector<8x8xbf16>
    %35 = vector.shape_cast %32 : vector<8x8xbf16> to vector<1x1x8x8xbf16>
    tpu.vector_store %arg7[%c0_25, %c0_26, %c0_27, %c0_28], %35 {strides = array<i32>} : memref<1x1x8x8xbf16, #tpu.memory_space<vmem>>, vector<1x1x8x8xbf16>,
    return
  }
  func.func @transform_0(%arg0: i32, %arg1: i32, %arg2: i32) -> (i32, i32, i32, i32) {
    %c0_i32 = arith.constant 0 : i32
    %c0_i32_0 = arith.constant 0 : i32
    return %arg0, %arg1, %arg2, %c0_i32 : i32, i32, i32, i32
  }
  func.func @transform_1(%arg0: i32, %arg1: i32, %arg2: i32) -> (i32, i32, i32, i32) {
    %c0_i32 = arith.constant 0 : i32
    %c0_i32_0 = arith.constant 0 : i32
    %c0_i32_1 = arith.constant 0 : i32
    return %arg0, %arg1, %c0_i32, %c0_i32_0 : i32, i32, i32, i32
  }
  func.func @transform_2(%arg0: i32, %arg1: i32, %arg2: i32) -> (i32, i32, i32, i32) {
    %c0_i32 = arith.constant 0 : i32
    %c0_i32_0 = arith.constant 0 : i32
    %c0_i32_1 = arith.constant 0 : i32
    return %arg0, %arg1, %c0_i32, %c0_i32_0 : i32, i32, i32, i32
  }
  func.func @transform_3(%arg0: i32, %arg1: i32, %arg2: i32) -> (i32, i32, i32) {
    %c0_i32 = arith.constant 0 : i32
    %c0_i32_0 = arith.constant 0 : i32
    %c0_i32_1 = arith.constant 0 : i32
    return %arg0, %c0_i32, %c0_i32_0 : i32, i32, i32
  }
  func.func @transform_4(%arg0: i32, %arg1: i32, %arg2: i32) -> (i32, i32, i32, i32) {
    %c0_i32 = arith.constant 0 : i32
    %c0_i32_0 = arith.constant 0 : i32
    return %arg0, %arg1, %arg2, %c0_i32 : i32, i32, i32, i32
  }
  func.func @transform_5(%arg0: i32, %arg1: i32, %arg2: i32) -> (i32, i32, i32, i32) {
    %c0_i32 = arith.constant 0 : i32
    %c0_i32_0 = arith.constant 0 : i32
    return %arg0, %arg1, %arg2, %c0_i32 : i32, i32, i32, i32
  }
}

module attributes {stable_mosaic.version = 11 : i64} {
  func.func @_linear_kernel(%arg0: i32, %arg1: i32, %arg2: i32, %arg3: memref<16x32xf32, #tpu.memory_space<vmem>>, %arg4: memref<32x64xbf16, #tpu.memory_space<vmem>>, %arg5: memref<1x64xf32, #tpu.memory_space<vmem>>, %arg6: memref<16x64xbf16, #tpu.memory_space<vmem>>, %arg7: memref<16x64xf32, #tpu.memory_space<vmem>>) attributes {dimension_semantics = [#tpu.dimension_semantics<parallel>, #tpu.dimension_semantics<parallel>, #tpu.dimension_semantics<arbitrary>], iteration_bounds = array<i64: 1, 1, 1>, scalar_prefetch = 0 : i64, scratch_operands = 1 : i64, tpu.core_type = #tpu.core_type<tc>, window_params = [{transform_indices = @transform_0, window_bounds = array<i64: 16, 32>}, {transform_indices = @transform_1, window_bounds = array<i64: 32, 64>}, {transform_indices = @transform_2, window_bounds = array<i64: 1, 64>}, {transform_indices = @transform_3, window_bounds = array<i64: 16, 64>}]} {
    %c0_i32 = arith.constant 0 : i32
    %0 = arith.cmpi eq, %arg2, %c0_i32 : i32
    %1 = arith.extui %0 : i1 to i32
    %c0_i32_0 = arith.constant 0 : i32
    %2 = arith.cmpi ne, %1, %c0_i32_0 : i32
    scf.if %2 {
      %cst_10 = arith.constant 0.000000e+00 : f32
      %13 = vector.broadcast %cst_10 : f32 to vector<16x64xf32>
      %c0_11 = arith.constant 0 : index
      %c0_12 = arith.constant 0 : index
      %14 = vector.load %arg7[%c0_11, %c0_12] : memref<16x64xf32, #tpu.memory_space<vmem>>, vector<16x64xf32>
      tpu.vector_store %arg7[%c0_11, %c0_12], %13 {strides = array<i32>} : memref<16x64xf32, #tpu.memory_space<vmem>>, vector<16x64xf32>,
    } else {
    }
    %c0 = arith.constant 0 : index
    %c0_1 = arith.constant 0 : index
    %3 = vector.load %arg7[%c0, %c0_1] : memref<16x64xf32, #tpu.memory_space<vmem>>, vector<16x64xf32>
    %c0_2 = arith.constant 0 : index
    %c0_3 = arith.constant 0 : index
    %4 = vector.load %arg3[%c0_2, %c0_3] : memref<16x32xf32, #tpu.memory_space<vmem>>, vector<16x32xf32>
    %5 = arith.truncf %4 : vector<16x32xf32> to vector<16x32xbf16>
    %c0_4 = arith.constant 0 : index
    %c0_5 = arith.constant 0 : index
    %6 = vector.load %arg4[%c0_4, %c0_5] : memref<32x64xbf16, #tpu.memory_space<vmem>>, vector<32x64xbf16>
    %cst = arith.constant dense<0.000000e+00> : vector<16x64xf32>
    %7 = tpu.matmul %5, %6, %cst {dimension_numbers = #tpu.dot_dimension_numbers<[1], [0], [0], [1], [0, 0, 1, 1], [], []>} : vector<16x32xbf16>, vector<32x64xbf16>, vector<16x64xf32> -> vector<16x64xf32>
    %8 = arith.addf %3, %7 : vector<16x64xf32>
    %c0_6 = arith.constant 0 : index
    %c0_7 = arith.constant 0 : index
    %9 = vector.load %arg7[%c0_6, %c0_7] : memref<16x64xf32, #tpu.memory_space<vmem>>, vector<16x64xf32>
    tpu.vector_store %arg7[%c0_6, %c0_7], %8 {strides = array<i32>} : memref<16x64xf32, #tpu.memory_space<vmem>>, vector<16x64xf32>,
    %c0_i32_8 = arith.constant 0 : i32
    %10 = arith.cmpi eq, %arg2, %c0_i32_8 : i32
    %11 = arith.extui %10 : i1 to i32
    %c0_i32_9 = arith.constant 0 : i32
    %12 = arith.cmpi ne, %11, %c0_i32_9 : i32
    scf.if %12 {
      %c0_10 = arith.constant 0 : index
      %c0_11 = arith.constant 0 : index
      %13 = vector.load %arg7[%c0_10, %c0_11] : memref<16x64xf32, #tpu.memory_space<vmem>>, vector<16x64xf32>
      %c0_12 = arith.constant 0 : index
      %c0_13 = arith.constant 0 : index
      %14 = vector.load %arg5[%c0_12, %c0_13] : memref<1x64xf32, #tpu.memory_space<vmem>>, vector<1x64xf32>
      %15 = vector.broadcast %14 : vector<1x64xf32> to vector<16x64xf32>
      %16 = arith.addf %13, %15 : vector<16x64xf32>
      %cst_14 = arith.constant 0.000000e+00 : f32
      %17 = vector.broadcast %cst_14 : f32 to vector<16x64xf32>
      %18 = arith.maximumf %16, %17 : vector<16x64xf32>
      %19 = arith.truncf %18 : vector<16x64xf32> to vector<16x64xbf16>
      %c0_15 = arith.constant 0 : index
      %c0_16 = arith.constant 0 : index
      %20 = vector.load %arg6[%c0_15, %c0_16] : memref<16x64xbf16, #tpu.memory_space<vmem>>, vector<16x64xbf16>
      tpu.vector_store %arg6[%c0_15, %c0_16], %19 {strides = array<i32>} : memref<16x64xbf16, #tpu.memory_space<vmem>>, vector<16x64xbf16>,
    } else {
    }
    return
  }
  func.func @transform_0(%arg0: i32, %arg1: i32, %arg2: i32) -> (i32, i32) {
    %c0_i32 = arith.constant 0 : i32
    return %arg0, %arg2 : i32, i32
  }
  func.func @transform_1(%arg0: i32, %arg1: i32, %arg2: i32) -> (i32, i32) {
    %c0_i32 = arith.constant 0 : i32
    return %arg2, %arg1 : i32, i32
  }
  func.func @transform_2(%arg0: i32, %arg1: i32, %arg2: i32) -> (i32, i32) {
    %c0_i32 = arith.constant 0 : i32
    %c0_i32_0 = arith.constant 0 : i32
    return %c0_i32, %arg1 : i32, i32
  }
  func.func @transform_3(%arg0: i32, %arg1: i32, %arg2: i32) -> (i32, i32) {
    %c0_i32 = arith.constant 0 : i32
    return %arg0, %arg1 : i32, i32
  }
}

module attributes {stable_mosaic.version = 11 : i64} {
  func.func @_linear_add_ln_kernel(%arg0: i32, %arg1: i32, %arg2: memref<16x64xbf16, #tpu.memory_space<vmem>>, %arg3: memref<64x32xbf16, #tpu.memory_space<vmem>>, %arg4: memref<1x32xf32, #tpu.memory_space<vmem>>, %arg5: memref<16x32xf32, #tpu.memory_space<vmem>>, %arg6: memref<1x32xf32, #tpu.memory_space<vmem>>, %arg7: memref<1x32xf32, #tpu.memory_space<vmem>>, %arg8: memref<16x32xf32, #tpu.memory_space<vmem>>, %arg9: memref<16x32xf32, #tpu.memory_space<vmem>>) attributes {dimension_semantics = [#tpu.dimension_semantics<parallel>, #tpu.dimension_semantics<arbitrary>], iteration_bounds = array<i64: 1, 1>, scalar_prefetch = 0 : i64, scratch_operands = 1 : i64, tpu.core_type = #tpu.core_type<tc>, window_params = [{transform_indices = @transform_0, window_bounds = array<i64: 16, 64>}, {transform_indices = @transform_1, window_bounds = array<i64: 64, 32>}, {pipeline_mode = #tpu.pipeline_mode<synchronous>, transform_indices = @transform_2, window_bounds = array<i64: 1, 32>}, {transform_indices = @transform_3, window_bounds = array<i64: 16, 32>}, {pipeline_mode = #tpu.pipeline_mode<synchronous>, transform_indices = @transform_4, window_bounds = array<i64: 1, 32>}, {pipeline_mode = #tpu.pipeline_mode<synchronous>, transform_indices = @transform_5, window_bounds = array<i64: 1, 32>}, {transform_indices = @transform_6, window_bounds = array<i64: 16, 32>}]} {
    %c0_i32 = arith.constant 0 : i32
    %0 = arith.cmpi eq, %arg1, %c0_i32 : i32
    %1 = arith.extui %0 : i1 to i32
    %c0_i32_0 = arith.constant 0 : i32
    %2 = arith.cmpi ne, %1, %c0_i32_0 : i32
    scf.if %2 {
      %cst_10 = arith.constant 0.000000e+00 : f32
      %12 = vector.broadcast %cst_10 : f32 to vector<16x32xf32>
      %c0_11 = arith.constant 0 : index
      %c0_12 = arith.constant 0 : index
      %13 = vector.load %arg9[%c0_11, %c0_12] : memref<16x32xf32, #tpu.memory_space<vmem>>, vector<16x32xf32>
      tpu.vector_store %arg9[%c0_11, %c0_12], %12 {strides = array<i32>} : memref<16x32xf32, #tpu.memory_space<vmem>>, vector<16x32xf32>,
    } else {
    }
    %c0 = arith.constant 0 : index
    %c0_1 = arith.constant 0 : index
    %3 = vector.load %arg9[%c0, %c0_1] : memref<16x32xf32, #tpu.memory_space<vmem>>, vector<16x32xf32>
    %c0_2 = arith.constant 0 : index
    %c0_3 = arith.constant 0 : index
    %4 = vector.load %arg2[%c0_2, %c0_3] : memref<16x64xbf16, #tpu.memory_space<vmem>>, vector<16x64xbf16>
    %c0_4 = arith.constant 0 : index
    %c0_5 = arith.constant 0 : index
    %5 = vector.load %arg3[%c0_4, %c0_5] : memref<64x32xbf16, #tpu.memory_space<vmem>>, vector<64x32xbf16>
    %cst = arith.constant dense<0.000000e+00> : vector<16x32xf32>
    %6 = tpu.matmul %4, %5, %cst {dimension_numbers = #tpu.dot_dimension_numbers<[1], [0], [0], [1], [0, 0, 1, 1], [], []>} : vector<16x64xbf16>, vector<64x32xbf16>, vector<16x32xf32> -> vector<16x32xf32>
    %7 = arith.addf %3, %6 : vector<16x32xf32>
    %c0_6 = arith.constant 0 : index
    %c0_7 = arith.constant 0 : index
    %8 = vector.load %arg9[%c0_6, %c0_7] : memref<16x32xf32, #tpu.memory_space<vmem>>, vector<16x32xf32>
    tpu.vector_store %arg9[%c0_6, %c0_7], %7 {strides = array<i32>} : memref<16x32xf32, #tpu.memory_space<vmem>>, vector<16x32xf32>,
    %c0_i32_8 = arith.constant 0 : i32
    %9 = arith.cmpi eq, %arg1, %c0_i32_8 : i32
    %10 = arith.extui %9 : i1 to i32
    %c0_i32_9 = arith.constant 0 : i32
    %11 = arith.cmpi ne, %10, %c0_i32_9 : i32
    scf.if %11 {
      %c0_10 = arith.constant 0 : index
      %c0_11 = arith.constant 0 : index
      %12 = vector.load %arg9[%c0_10, %c0_11] : memref<16x32xf32, #tpu.memory_space<vmem>>, vector<16x32xf32>
      %c0_12 = arith.constant 0 : index
      %c0_13 = arith.constant 0 : index
      %13 = vector.load %arg4[%c0_12, %c0_13] : memref<1x32xf32, #tpu.memory_space<vmem>>, vector<1x32xf32>
      %14 = vector.broadcast %13 : vector<1x32xf32> to vector<16x32xf32>
      %15 = arith.addf %12, %14 : vector<16x32xf32>
      %c0_14 = arith.constant 0 : index
      %c0_15 = arith.constant 0 : index
      %16 = vector.load %arg5[%c0_14, %c0_15] : memref<16x32xf32, #tpu.memory_space<vmem>>, vector<16x32xf32>
      %17 = arith.addf %15, %16 : vector<16x32xf32>
      %cst_16 = arith.constant dense<0.000000e+00> : vector<16xf32>
      %18 = vector.multi_reduction <add>, %17, %cst_16 [1] : vector<16x32xf32> to vector<16xf32>
      %19 = vector.shape_cast %18 : vector<16xf32> to vector<16x1xf32>
      %cst_17 = arith.constant 3.200000e+01 : f32
      %20 = vector.broadcast %cst_17 : f32 to vector<16x1xf32>
      %21 = arith.divf %19, %20 : vector<16x1xf32>
      %22 = vector.broadcast %21 : vector<16x1xf32> to vector<16x32xf32>
      %23 = arith.subf %17, %22 : vector<16x32xf32>
      %24 = arith.mulf %23, %23 : vector<16x32xf32>
      %cst_18 = arith.constant dense<0.000000e+00> : vector<16xf32>
      %25 = vector.multi_reduction <add>, %24, %cst_18 [1] : vector<16x32xf32> to vector<16xf32>
      %26 = vector.shape_cast %25 : vector<16xf32> to vector<16x1xf32>
      %cst_19 = arith.constant 3.200000e+01 : f32
      %27 = vector.broadcast %cst_19 : f32 to vector<16x1xf32>
      %28 = arith.divf %26, %27 : vector<16x1xf32>
      %29 = vector.broadcast %21 : vector<16x1xf32> to vector<16x32xf32>
      %30 = arith.subf %17, %29 : vector<16x32xf32>
      %cst_20 = arith.constant 9.99999997E-7 : f32
      %31 = vector.broadcast %cst_20 : f32 to vector<16x1xf32>
      %32 = arith.addf %28, %31 : vector<16x1xf32>
      %33 = math.rsqrt %32 : vector<16x1xf32>
      %34 = vector.broadcast %33 : vector<16x1xf32> to vector<16x32xf32>
      %35 = arith.mulf %30, %34 : vector<16x32xf32>
      %c0_21 = arith.constant 0 : index
      %c0_22 = arith.constant 0 : index
      %36 = vector.load %arg6[%c0_21, %c0_22] : memref<1x32xf32, #tpu.memory_space<vmem>>, vector<1x32xf32>
      %37 = vector.broadcast %36 : vector<1x32xf32> to vector<16x32xf32>
      %38 = arith.mulf %35, %37 : vector<16x32xf32>
      %c0_23 = arith.constant 0 : index
      %c0_24 = arith.constant 0 : index
      %39 = vector.load %arg7[%c0_23, %c0_24] : memref<1x32xf32, #tpu.memory_space<vmem>>, vector<1x32xf32>
      %40 = vector.broadcast %39 : vector<1x32xf32> to vector<16x32xf32>
      %41 = arith.addf %38, %40 : vector<16x32xf32>
      %c0_25 = arith.constant 0 : index
      %c0_26 = arith.constant 0 : index
      %42 = vector.load %arg8[%c0_25, %c0_26] : memref<16x32xf32, #tpu.memory_space<vmem>>, vector<16x32xf32>
      tpu.vector_store %arg8[%c0_25, %c0_26], %41 {strides = array<i32>} : memref<16x32xf32, #tpu.memory_space<vmem>>, vector<16x32xf32>,
    } else {
    }
    return
  }
  func.func @transform_0(%arg0: i32, %arg1: i32) -> (i32, i32) {
    %c0_i32 = arith.constant 0 : i32
    return %arg0, %arg1 : i32, i32
  }
  func.func @transform_1(%arg0: i32, %arg1: i32) -> (i32, i32) {
    %c0_i32 = arith.constant 0 : i32
    %c0_i32_0 = arith.constant 0 : i32
    return %arg1, %c0_i32 : i32, i32
  }
  func.func @transform_2(%arg0: i32, %arg1: i32) -> (i32, i32) {
    %c0_i32 = arith.constant 0 : i32
    %c0_i32_0 = arith.constant 0 : i32
    %c0_i32_1 = arith.constant 0 : i32
    return %c0_i32, %c0_i32_0 : i32, i32
  }
  func.func @transform_3(%arg0: i32, %arg1: i32) -> (i32, i32) {
    %c0_i32 = arith.constant 0 : i32
    %c0_i32_0 = arith.constant 0 : i32
    return %arg0, %c0_i32 : i32, i32
  }
  func.func @transform_4(%arg0: i32, %arg1: i32) -> (i32, i32) {
    %c0_i32 = arith.constant 0 : i32
    %c0_i32_0 = arith.constant 0 : i32
    %c0_i32_1 = arith.constant 0 : i32
    return %c0_i32, %c0_i32_0 : i32, i32
  }
  func.func @transform_5(%arg0: i32, %arg1: i32) -> (i32, i32) {
    %c0_i32 = arith.constant 0 : i32
    %c0_i32_0 = arith.constant 0 : i32
    %c0_i32_1 = arith.constant 0 : i32
    return %c0_i32, %c0_i32_0 : i32, i32
  }
  func.func @transform_6(%arg0: i32, %arg1: i32) -> (i32, i32) {
    %c0_i32 = arith.constant 0 : i32
    %c0_i32_0 = arith.constant 0 : i32
    return %arg0, %c0_i32 : i32, i32
  }
}

module attributes {stable_mosaic.version = 11 : i64} {
  func.func @_proj_rope_kernel(%arg0: i32, %arg1: i32, %arg2: i32, %arg3: memref<1x8x32xf32, #tpu.memory_space<vmem>>, %arg4: memref<32x64xbf16, #tpu.memory_space<vmem>>, %arg5: memref<8x16xf32, #tpu.memory_space<vmem>>, %arg6: memref<8x16xf32, #tpu.memory_space<vmem>>, %arg7: memref<1x8x32xbf16, #tpu.memory_space<vmem>>, %arg8: memref<1x8x32xbf16, #tpu.memory_space<vmem>>, %arg9: memref<8x64xf32, #tpu.memory_space<vmem>>) attributes {dimension_semantics = [#tpu.dimension_semantics<parallel>, #tpu.dimension_semantics<parallel>, #tpu.dimension_semantics<arbitrary>], iteration_bounds = array<i64: 2, 1, 1>, scalar_prefetch = 0 : i64, scratch_operands = 1 : i64, tpu.core_type = #tpu.core_type<tc>, window_params = [{transform_indices = @transform_0, window_bounds = array<i64: 1, 8, 32>}, {transform_indices = @transform_1, window_bounds = array<i64: 32, 64>}, {transform_indices = @transform_2, window_bounds = array<i64: 8, 16>}, {transform_indices = @transform_3, window_bounds = array<i64: 8, 16>}, {transform_indices = @transform_4, window_bounds = array<i64: 1, 8, 32>}, {transform_indices = @transform_5, window_bounds = array<i64: 1, 8, 32>}]} {
    %c0_i32 = arith.constant 0 : i32
    %0 = arith.cmpi eq, %arg2, %c0_i32 : i32
    %1 = arith.extui %0 : i1 to i32
    %c0_i32_0 = arith.constant 0 : i32
    %2 = arith.cmpi ne, %1, %c0_i32_0 : i32
    scf.if %2 {
      %cst_11 = arith.constant 0.000000e+00 : f32
      %14 = vector.broadcast %cst_11 : f32 to vector<8x64xf32>
      %c0_12 = arith.constant 0 : index
      %c0_13 = arith.constant 0 : index
      %15 = vector.load %arg9[%c0_12, %c0_13] : memref<8x64xf32, #tpu.memory_space<vmem>>, vector<8x64xf32>
      tpu.vector_store %arg9[%c0_12, %c0_13], %14 {strides = array<i32>} : memref<8x64xf32, #tpu.memory_space<vmem>>, vector<8x64xf32>,
    } else {
    }
    %c0 = arith.constant 0 : index
    %c0_1 = arith.constant 0 : index
    %3 = vector.load %arg9[%c0, %c0_1] : memref<8x64xf32, #tpu.memory_space<vmem>>, vector<8x64xf32>
    %c0_2 = arith.constant 0 : index
    %c0_3 = arith.constant 0 : index
    %c0_4 = arith.constant 0 : index
    %4 = vector.load %arg3[%c0_2, %c0_3, %c0_4] : memref<1x8x32xf32, #tpu.memory_space<vmem>>, vector<1x8x32xf32>
    %5 = vector.shape_cast %4 : vector<1x8x32xf32> to vector<8x32xf32>
    %6 = arith.truncf %5 : vector<8x32xf32> to vector<8x32xbf16>
    %c0_5 = arith.constant 0 : index
    %c0_6 = arith.constant 0 : index
    %7 = vector.load %arg4[%c0_5, %c0_6] : memref<32x64xbf16, #tpu.memory_space<vmem>>, vector<32x64xbf16>
    %cst = arith.constant dense<0.000000e+00> : vector<8x64xf32>
    %8 = tpu.matmul %6, %7, %cst {dimension_numbers = #tpu.dot_dimension_numbers<[1], [0], [0], [1], [0, 0, 1, 1], [], []>} : vector<8x32xbf16>, vector<32x64xbf16>, vector<8x64xf32> -> vector<8x64xf32>
    %9 = arith.addf %3, %8 : vector<8x64xf32>
    %c0_7 = arith.constant 0 : index
    %c0_8 = arith.constant 0 : index
    %10 = vector.load %arg9[%c0_7, %c0_8] : memref<8x64xf32, #tpu.memory_space<vmem>>, vector<8x64xf32>
    tpu.vector_store %arg9[%c0_7, %c0_8], %9 {strides = array<i32>} : memref<8x64xf32, #tpu.memory_space<vmem>>, vector<8x64xf32>,
    %c0_i32_9 = arith.constant 0 : i32
    %11 = arith.cmpi eq, %arg2, %c0_i32_9 : i32
    %12 = arith.extui %11 : i1 to i32
    %c0_i32_10 = arith.constant 0 : i32
    %13 = arith.cmpi ne, %12, %c0_i32_10 : i32
    scf.if %13 {
      %c0_11 = arith.constant 0 : index
      %c0_12 = arith.constant 0 : index
      %14 = vector.load %arg9[%c0_11, %c0_12] : memref<8x64xf32, #tpu.memory_space<vmem>>, vector<8x64xf32>
      %c0_13 = arith.constant 0 : index
      %c0_14 = arith.constant 0 : index
      %15 = vector.load %arg5[%c0_13, %c0_14] : memref<8x16xf32, #tpu.memory_space<vmem>>, vector<8x16xf32>
      %c0_15 = arith.constant 0 : index
      %c0_16 = arith.constant 0 : index
      %16 = vector.load %arg6[%c0_15, %c0_16] : memref<8x16xf32, #tpu.memory_space<vmem>>, vector<8x16xf32>
      %17 = vector.extract_strided_slice %14 {offsets = [0, 0], sizes = [8, 16], strides = [1, 1]} : vector<8x64xf32> to vector<8x16xf32>
      %18 = vector.extract_strided_slice %14 {offsets = [0, 16], sizes = [8, 16], strides = [1, 1]} : vector<8x64xf32> to vector<8x16xf32>
      %19 = arith.mulf %17, %15 : vector<8x16xf32>
      %20 = arith.mulf %18, %16 : vector<8x16xf32>
      %21 = arith.subf %19, %20 : vector<8x16xf32>
      %22 = arith.mulf %18, %15 : vector<8x16xf32>
      %23 = arith.mulf %17, %16 : vector<8x16xf32>
      %24 = arith.addf %22, %23 : vector<8x16xf32>
      %25 = tpu.concatenate %21, %24 in 1 : vector<8x16xf32>, vector<8x16xf32> -> vector<8x32xf32>
      %26 = arith.truncf %25 : vector<8x32xf32> to vector<8x32xbf16>
      %c0_17 = arith.constant 0 : index
      %c0_18 = arith.constant 0 : index
      %c0_19 = arith.constant 0 : index
      %27 = vector.load %arg7[%c0_17, %c0_18, %c0_19] : memref<1x8x32xbf16, #tpu.memory_space<vmem>>, vector<1x8x32xbf16>
      %28 = vector.shape_cast %27 : vector<1x8x32xbf16> to vector<8x32xbf16>
      %29 = vector.shape_cast %26 : vector<8x32xbf16> to vector<1x8x32xbf16>
      tpu.vector_store %arg7[%c0_17, %c0_18, %c0_19], %29 {strides = array<i32>} : memref<1x8x32xbf16, #tpu.memory_space<vmem>>, vector<1x8x32xbf16>,
      %30 = vector.extract_strided_slice %14 {offsets = [0, 32], sizes = [8, 32], strides = [1, 1]} : vector<8x64xf32> to vector<8x32xf32>
      %31 = arith.truncf %30 : vector<8x32xf32> to vector<8x32xbf16>
      %c0_20 = arith.constant 0 : index
      %c0_21 = arith.constant 0 : index
      %c0_22 = arith.constant 0 : index
      %32 = vector.load %arg8[%c0_20, %c0_21, %c0_22] : memref<1x8x32xbf16, #tpu.memory_space<vmem>>, vector<1x8x32xbf16>
      %33 = vector.shape_cast %32 : vector<1x8x32xbf16> to vector<8x32xbf16>
      %34 = vector.shape_cast %31 : vector<8x32xbf16> to vector<1x8x32xbf16>
      tpu.vector_store %arg8[%c0_20, %c0_21, %c0_22], %34 {strides = array<i32>} : memref<1x8x32xbf16, #tpu.memory_space<vmem>>, vector<1x8x32xbf16>,
    } else {
    }
    return
  }
  func.func @transform_0(%arg0: i32, %arg1: i32, %arg2: i32) -> (i32, i32, i32) {
    %c0_i32 = arith.constant 0 : i32
    return %arg0, %arg1, %arg2 : i32, i32, i32
  }
  func.func @transform_1(%arg0: i32, %arg1: i32, %arg2: i32) -> (i32, i32) {
    %c0_i32 = arith.constant 0 : i32
    %c0_i32_0 = arith.constant 0 : i32
    return %arg2, %c0_i32 : i32, i32
  }
  func.func @transform_2(%arg0: i32, %arg1: i32, %arg2: i32) -> (i32, i32) {
    %c0_i32 = arith.constant 0 : i32
    %c0_i32_0 = arith.constant 0 : i32
    return %arg1, %c0_i32 : i32, i32
  }
  func.func @transform_3(%arg0: i32, %arg1: i32, %arg2: i32) -> (i32, i32) {
    %c0_i32 = arith.constant 0 : i32
    %c0_i32_0 = arith.constant 0 : i32
    return %arg1, %c0_i32 : i32, i32
  }
  func.func @transform_4(%arg0: i32, %arg1: i32, %arg2: i32) -> (i32, i32, i32) {
    %c0_i32 = arith.constant 0 : i32
    %c0_i32_0 = arith.constant 0 : i32
    return %arg0, %arg1, %c0_i32 : i32, i32, i32
  }
  func.func @transform_5(%arg0: i32, %arg1: i32, %arg2: i32) -> (i32, i32, i32) {
    %c0_i32 = arith.constant 0 : i32
    %c0_i32_0 = arith.constant 0 : i32
    return %arg0, %arg1, %c0_i32 : i32, i32, i32
  }
}

module attributes {stable_mosaic.version = 11 : i64} {
  func.func @_linear_kernel(%arg0: i32, %arg1: i32, %arg2: i32, %arg3: memref<16x32xf32, #tpu.memory_space<vmem>>, %arg4: memref<32x16xbf16, #tpu.memory_space<vmem>>, %arg5: memref<1x16xf32, #tpu.memory_space<vmem>>, %arg6: memref<16x16xf32, #tpu.memory_space<vmem>>, %arg7: memref<16x16xf32, #tpu.memory_space<vmem>>) attributes {dimension_semantics = [#tpu.dimension_semantics<parallel>, #tpu.dimension_semantics<parallel>, #tpu.dimension_semantics<arbitrary>], iteration_bounds = array<i64: 1, 1, 1>, scalar_prefetch = 0 : i64, scratch_operands = 1 : i64, tpu.core_type = #tpu.core_type<tc>, window_params = [{transform_indices = @transform_0, window_bounds = array<i64: 16, 32>}, {transform_indices = @transform_1, window_bounds = array<i64: 32, 16>}, {transform_indices = @transform_2, window_bounds = array<i64: 1, 16>}, {transform_indices = @transform_3, window_bounds = array<i64: 16, 16>}]} {
    %c0_i32 = arith.constant 0 : i32
    %0 = arith.cmpi eq, %arg2, %c0_i32 : i32
    %1 = arith.extui %0 : i1 to i32
    %c0_i32_0 = arith.constant 0 : i32
    %2 = arith.cmpi ne, %1, %c0_i32_0 : i32
    scf.if %2 {
      %cst_10 = arith.constant 0.000000e+00 : f32
      %13 = vector.broadcast %cst_10 : f32 to vector<16x16xf32>
      %c0_11 = arith.constant 0 : index
      %c0_12 = arith.constant 0 : index
      %14 = vector.load %arg7[%c0_11, %c0_12] : memref<16x16xf32, #tpu.memory_space<vmem>>, vector<16x16xf32>
      tpu.vector_store %arg7[%c0_11, %c0_12], %13 {strides = array<i32>} : memref<16x16xf32, #tpu.memory_space<vmem>>, vector<16x16xf32>,
    } else {
    }
    %c0 = arith.constant 0 : index
    %c0_1 = arith.constant 0 : index
    %3 = vector.load %arg7[%c0, %c0_1] : memref<16x16xf32, #tpu.memory_space<vmem>>, vector<16x16xf32>
    %c0_2 = arith.constant 0 : index
    %c0_3 = arith.constant 0 : index
    %4 = vector.load %arg3[%c0_2, %c0_3] : memref<16x32xf32, #tpu.memory_space<vmem>>, vector<16x32xf32>
    %5 = arith.truncf %4 : vector<16x32xf32> to vector<16x32xbf16>
    %c0_4 = arith.constant 0 : index
    %c0_5 = arith.constant 0 : index
    %6 = vector.load %arg4[%c0_4, %c0_5] : memref<32x16xbf16, #tpu.memory_space<vmem>>, vector<32x16xbf16>
    %cst = arith.constant dense<0.000000e+00> : vector<16x16xf32>
    %7 = tpu.matmul %5, %6, %cst {dimension_numbers = #tpu.dot_dimension_numbers<[1], [0], [0], [1], [0, 0, 1, 1], [], []>} : vector<16x32xbf16>, vector<32x16xbf16>, vector<16x16xf32> -> vector<16x16xf32>
    %8 = arith.addf %3, %7 : vector<16x16xf32>
    %c0_6 = arith.constant 0 : index
    %c0_7 = arith.constant 0 : index
    %9 = vector.load %arg7[%c0_6, %c0_7] : memref<16x16xf32, #tpu.memory_space<vmem>>, vector<16x16xf32>
    tpu.vector_store %arg7[%c0_6, %c0_7], %8 {strides = array<i32>} : memref<16x16xf32, #tpu.memory_space<vmem>>, vector<16x16xf32>,
    %c0_i32_8 = arith.constant 0 : i32
    %10 = arith.cmpi eq, %arg2, %c0_i32_8 : i32
    %11 = arith.extui %10 : i1 to i32
    %c0_i32_9 = arith.constant 0 : i32
    %12 = arith.cmpi ne, %11, %c0_i32_9 : i32
    scf.if %12 {
      %c0_10 = arith.constant 0 : index
      %c0_11 = arith.constant 0 : index
      %13 = vector.load %arg7[%c0_10, %c0_11] : memref<16x16xf32, #tpu.memory_space<vmem>>, vector<16x16xf32>
      %c0_12 = arith.constant 0 : index
      %c0_13 = arith.constant 0 : index
      %14 = vector.load %arg5[%c0_12, %c0_13] : memref<1x16xf32, #tpu.memory_space<vmem>>, vector<1x16xf32>
      %15 = vector.broadcast %14 : vector<1x16xf32> to vector<16x16xf32>
      %16 = arith.addf %13, %15 : vector<16x16xf32>
      %c0_14 = arith.constant 0 : index
      %c0_15 = arith.constant 0 : index
      %17 = vector.load %arg6[%c0_14, %c0_15] : memref<16x16xf32, #tpu.memory_space<vmem>>, vector<16x16xf32>
      tpu.vector_store %arg6[%c0_14, %c0_15], %16 {strides = array<i32>} : memref<16x16xf32, #tpu.memory_space<vmem>>, vector<16x16xf32>,
    } else {
    }
    return
  }
  func.func @transform_0(%arg0: i32, %arg1: i32, %arg2: i32) -> (i32, i32) {
    %c0_i32 = arith.constant 0 : i32
    return %arg0, %arg2 : i32, i32
  }
  func.func @transform_1(%arg0: i32, %arg1: i32, %arg2: i32) -> (i32, i32) {
    %c0_i32 = arith.constant 0 : i32
    return %arg2, %arg1 : i32, i32
  }
  func.func @transform_2(%arg0: i32, %arg1: i32, %arg2: i32) -> (i32, i32) {
    %c0_i32 = arith.constant 0 : i32
    %c0_i32_0 = arith.constant 0 : i32
    return %c0_i32, %arg1 : i32, i32
  }
  func.func @transform_3(%arg0: i32, %arg1: i32, %arg2: i32) -> (i32, i32) {
    %c0_i32 = arith.constant 0 : i32
    return %arg0, %arg1 : i32, i32
  }
}

</mosaic_0001>

<llo_original>
// kernel: _lambda_.39
$region0: #{_lambda_.39}
  #allocation0 [shape = 'u32[]', space=smem, size = 0x4, offset = 0x4, fixed_abs, tag = 'smem constant byte address 0x4 - core index']
  #allocation1 [shape = 'u32[72,128]{1,0:T(1,128)}', space=vmem, size = 0x9000, scoped, tag = 'internal scratch']
  #allocation2 [shape = 'f32[8,96]{1,0:T(8,128)}', space=vmem, size = 0x1000, scoped, tag = 'scratch operand']
  %s0 = inlined_call_operand.vmem [shape: f32[2,8,32], index: 0, kind: input, shape index: {}]
  %s1 = inlined_call_operand.vmem [shape: bf16[32,96], index: 1, kind: input, shape index: {}]
  %s2 = inlined_call_operand.vmem [shape: f32[8,16], index: 2, kind: input, shape index: {}]
  %s3 = inlined_call_operand.vmem [shape: f32[8,16], index: 3, kind: input, shape index: {}]
  %s4 = inlined_call_operand.vmem [shape: bf16[2,8,32], index: 4, kind: output, shape index: {0}]
  %s5 = inlined_call_operand.vmem [shape: bf16[2,8,32], index: 5, kind: output, shape index: {1}]
  %s6 = inlined_call_operand.vmem [shape: bf16[2,8,32], index: 6, kind: output, shape index: {2}]
  %7 = xla_tuple %s4, %s5, %s6
  %s8 = sld [smem:[#allocation0]]
  $region73: #{_lambda_.39} parent=0
    _
  %s10 = ssub.s32 1, %s8
  %s11 = scalar_select 0, %s10, %s8
  loop: start=0, step=1, limit=4
  $region2: #{_lambda_.39} parent=0 // loop_pre_header
    _
  $region3: #{_lambda_.39} parent=0 // loop_header
    %s13 = sphi 0, %s17
    %p14 = scmp.ge.s32.totalorder %s13, 4
    %s20 = sphi 0, %s39
    %s21 = sphi 0, %s35
    %s22 = sphi 0, %s31
    %s23 = sphi 0, %s20
    %s24 = sphi 0, %s21
    %s25 = sphi 0, %s22
    %s26 = sphi 0, %s23
    %s27 = sphi 0, %s24
    %s28 = sphi 0, %s25
    %s46 = sphi 0, %s48
    %s49 = sphi 0, %s46
    %s50 = sphi 0, %s49
    %s66 = sphi 0, %s50
    %s72 = sphi 0, %s74
    %s75 = sphi 0, %s72
    %s76 = sphi 0, %s75
    %s92 = sphi 0, %s76
    %s98 = sphi 0, %s100
    %s101 = sphi 0, %s98
    %s102 = sphi 0, %s101
    %s118 = sphi 0, %s102
    %s124 = sphi 0, %s126
    %s127 = sphi 0, %s124
    %s128 = sphi 0, %s127
    %s144 = sphi 0, %s128
    %s152 = sphi 0, %s154
    %s155 = sphi 0, %s152
    %s156 = sphi 0, %s155
    %s172 = sphi 0, %s156
    %s180 = sphi 0, %s182
    %s183 = sphi 0, %s180
    %s184 = sphi 0, %s183
    %s200 = sphi 0, %s184
    %s208 = sphi 0, %s210
    %s211 = sphi 0, %s208
    %s212 = sphi 0, %s211
    %s228 = sphi 0, %s212
  $region4: #{_lambda_.39} parent=0 // loop_header_branch
    %16 = sbr.rel (%p14) target = $region8
  $region5: #{_lambda_.39} parent=0 // loop_body
    %s18 = ssub.s32 %s13, 1
    %s19 = ssub.s32 %s13, 2
    %s29 = sadd.s32 1, %s22
    %p30 = scmp.ge.s32.totalorder %s29, 1
    %s31 = scalar_select %p30, 0, %s29
    %s32 = sadd.s32 1, %s21
    %s33 = scalar_select %p30, %s32, %s21
    %p34 = scmp.ge.s32.totalorder %s33, 1
    %s35 = scalar_select %p34, 0, %s33
    %s36 = sadd.s32 1, %s20
    %s37 = scalar_select %p34, %s36, %s20
    %p38 = scmp.ge.s32.totalorder %s37, 2
    %s39 = scalar_select %p38, 0, %s37
    %s40 = ssub.s32 %s20, %s39
    %s41 = ssub.s32 %s21, %s35
    %s42 = sor.u32 %s40, %s41
    %s43 = ssub.s32 %s22, %s31
    %s44 = sor.u32 %s42, %s43
    %p45 = scmp.eq.s32.totalorder %s44, 0
    %s47 = sadd.s32 %s46, 1
    %s48 = scalar_select %p45, %s46, %s47
    %p51 = pneg %p45
    %p52 = scmp.eq.s32.totalorder %s13, 1
    %p53 = por %p51, %p52
    %p54 = scmp.ne.s32.totalorder %s46, %s49
    %p55 = scmp.eq.s32.totalorder %s13, 0
    %p56 = por %p54, %p55
    %p57 = scmp.ne.s32.totalorder %s46, %s49
    %p58 = scmp.eq.s32.totalorder %s18, 1
    %p59 = por %p57, %p58
    %p60 = scmp.ne.s32.totalorder %s49, %s50
    %p61 = scmp.eq.s32.totalorder %s18, 0
    %p62 = por %p60, %p61
    %p63 = scmp.ne.s32.totalorder %s49, %s50
    %p64 = scmp.eq.s32.totalorder %s19, 1
    %p65 = por %p63, %p64
    %p67 = scmp.ne.s32.totalorder %s50, %s66
    %p68 = scmp.eq.s32.totalorder %s19, 0
    %p69 = por %p67, %p68
    %s70 = ssub.s32 %s22, %s31
    %p71 = scmp.eq.s32.totalorder %s70, 0
    %s73 = sadd.s32 %s72, 1
    %s74 = scalar_select %p71, %s72, %s73
    %p77 = pneg %p71
    %p78 = scmp.eq.s32.totalorder %s13, 1
    %p79 = por %p77, %p78
    %p80 = scmp.ne.s32.totalorder %s72, %s75
    %p81 = scmp.eq.s32.totalorder %s13, 0
    %p82 = por %p80, %p81
    %p83 = scmp.ne.s32.totalorder %s72, %s75
    %p84 = scmp.eq.s32.totalorder %s18, 1
    %p85 = por %p83, %p84
    %p86 = scmp.ne.s32.totalorder %s75, %s76
    %p87 = scmp.eq.s32.totalorder %s18, 0
    %p88 = por %p86, %p87
    %p89 = scmp.ne.s32.totalorder %s75, %s76
    %p90 = scmp.eq.s32.totalorder %s19, 1
    %p91 = por %p89, %p90
    %p93 = scmp.ne.s32.totalorder %s76, %s92
    %p94 = scmp.eq.s32.totalorder %s19, 0
    %p95 = por %p93, %p94
    %s96 = ssub.s32 %s21, %s35
    %p97 = scmp.eq.s32.totalorder %s96, 0
    %s99 = sadd.s32 %s98, 1
    %s100 = scalar_select %p97, %s98, %s99
    %p103 = pneg %p97
    %p104 = scmp.eq.s32.totalorder %s13, 1
    %p105 = por %p103, %p104
    %p106 = scmp.ne.s32.totalorder %s98, %s101
    %p107 = scmp.eq.s32.totalorder %s13, 0
    %p108 = por %p106, %p107
    %p109 = scmp.ne.s32.totalorder %s98, %s101
    %p110 = scmp.eq.s32.totalorder %s18, 1
    %p111 = por %p109, %p110
    %p112 = scmp.ne.s32.totalorder %s101, %s102
    %p113 = scmp.eq.s32.totalorder %s18, 0
    %p114 = por %p112, %p113
    %p115 = scmp.ne.s32.totalorder %s101, %s102
    %p116 = scmp.eq.s32.totalorder %s19, 1
    %p117 = por %p115, %p116
    %p119 = scmp.ne.s32.totalorder %s102, %s118
    %p120 = scmp.eq.s32.totalorder %s19, 0
    %p121 = por %p119, %p120
    %s122 = ssub.s32 %s21, %s35
    %p123 = scmp.eq.s32.totalorder %s122, 0
    %s125 = sadd.s32 %s124, 1
    %s126 = scalar_select %p123, %s124, %s125
    %p129 = pneg %p123
    %p130 = scmp.eq.s32.totalorder %s13, 1
    %p131 = por %p129, %p130
    %p132 = scmp.ne.s32.totalorder %s124, %s127
    %p133 = scmp.eq.s32.totalorder %s13, 0
    %p134 = por %p132, %p133
    %p135 = scmp.ne.s32.totalorder %s124, %s127
    %p136 = scmp.eq.s32.totalorder %s18, 1
    %p137 = por %p135, %p136
    %p138 = scmp.ne.s32.totalorder %s127, %s128
    %p139 = scmp.eq.s32.totalorder %s18, 0
    %p140 = por %p138, %p139
    %p141 = scmp.ne.s32.totalorder %s127, %s128
    %p142 = scmp.eq.s32.totalorder %s19, 1
    %p143 = por %p141, %p142
    %p145 = scmp.ne.s32.totalorder %s128, %s144
    %p146 = scmp.eq.s32.totalorder %s19, 0
    %p147 = por %p145, %p146
    %s148 = ssub.s32 %s20, %s39
    %s149 = ssub.s32 %s21, %s35
    %s150 = sor.u32 %s148, %s149
    %p151 = scmp.eq.s32.totalorder %s150, 0
    %s153 = sadd.s32 %s152, 1
    %s154 = scalar_select %p151, %s152, %s153
    %p157 = pneg %p151
    %p158 = scmp.eq.s32.totalorder %s13, 1
    %p159 = por %p157, %p158
    %p160 = scmp.ne.s32.totalorder %s152, %s155
    %p161 = scmp.eq.s32.totalorder %s13, 0
    %p162 = por %p160, %p161
    %p163 = scmp.ne.s32.totalorder %s152, %s155
    %p164 = scmp.eq.s32.totalorder %s18, 1
    %p165 = por %p163, %p164
    %p166 = scmp.ne.s32.totalorder %s155, %s156
    %p167 = scmp.eq.s32.totalorder %s18, 0
    %p168 = por %p166, %p167
    %p169 = scmp.ne.s32.totalorder %s155, %s156
    %p170 = scmp.eq.s32.totalorder %s19, 1
    %p171 = por %p169, %p170
    %p173 = scmp.ne.s32.totalorder %s156, %s172
    %p174 = scmp.eq.s32.totalorder %s19, 0
    %p175 = por %p173, %p174
    %s176 = ssub.s32 %s20, %s39
    %s177 = ssub.s32 %s21, %s35
    %s178 = sor.u32 %s176, %s177
    %p179 = scmp.eq.s32.totalorder %s178, 0
    %s181 = sadd.s32 %s180, 1
    %s182 = scalar_select %p179, %s180, %s181
    %p185 = pneg %p179
    %p186 = scmp.eq.s32.totalorder %s13, 1
    %p187 = por %p185, %p186
    %p188 = scmp.ne.s32.totalorder %s180, %s183
    %p189 = scmp.eq.s32.totalorder %s13, 0
    %p190 = por %p188, %p189
    %p191 = scmp.ne.s32.totalorder %s180, %s183
    %p192 = scmp.eq.s32.totalorder %s18, 1
    %p193 = por %p191, %p192
    %p194 = scmp.ne.s32.totalorder %s183, %s184
    %p195 = scmp.eq.s32.totalorder %s18, 0
    %p196 = por %p194, %p195
    %p197 = scmp.ne.s32.totalorder %s183, %s184
    %p198 = scmp.eq.s32.totalorder %s19, 1
    %p199 = por %p197, %p198
    %p201 = scmp.ne.s32.totalorder %s184, %s200
    %p202 = scmp.eq.s32.totalorder %s19, 0
    %p203 = por %p201, %p202
    %s204 = ssub.s32 %s20, %s39
    %s205 = ssub.s32 %s21, %s35
    %s206 = sor.u32 %s204, %s205
    %p207 = scmp.eq.s32.totalorder %s206, 0
    %s209 = sadd.s32 %s208, 1
    %s210 = scalar_select %p207, %s208, %s209
    %p213 = pneg %p207
    %p214 = scmp.eq.s32.totalorder %s13, 1
    %p215 = por %p213, %p214
    %p216 = scmp.ne.s32.totalorder %s208, %s211
    %p217 = scmp.eq.s32.totalorder %s13, 0
    %p218 = por %p216, %p217
    %p219 = scmp.ne.s32.totalorder %s208, %s211
    %p220 = scmp.eq.s32.totalorder %s18, 1
    %p221 = por %p219, %p220
    %p222 = scmp.ne.s32.totalorder %s211, %s212
    %p223 = scmp.eq.s32.totalorder %s18, 0
    %p224 = por %p222, %p223
    %p225 = scmp.ne.s32.totalorder %s211, %s212
    %p226 = scmp.eq.s32.totalorder %s19, 1
    %p227 = por %p225, %p226
    %p229 = scmp.ne.s32.totalorder %s212, %s228
    %p230 = scmp.eq.s32.totalorder %s19, 0
    %p231 = por %p229, %p230
    %p232 = scmp.le.s32.totalorder 1, %s13
    %p233 = scmp.lt.s32.totalorder %s13, 3
    %p234 = pnand %p232, %p233
    %p235 = pneg %p234
    // Predicated region
    $region9: #{_lambda_.39} parent=5 // pred_check
      _
    $region10: #{_lambda_.39} parent=5 // pred_check_branch
      %237 = sbr.rel (%p234) target = $region12
    $region11: #{_lambda_.39} parent=5 // pred_region
      %s238 = ssub.s32 %s13, 1
      // Predicated region
      $region13: #{_lambda_.39} parent=11 // pred_check
        %p239 = pneg %p88
      $region14: #{_lambda_.39} parent=11 // pred_check_branch
        %241 = sbr.rel (%p239) target = $region16
      $region15: #{_lambda_.39} parent=11 // pred_region
        %s242 = smul.u32 4, %s25
        %p243 = scmp.lt.s32.totalorder %s242, 3
        %s244 = scalar_select %p243, %s242, 3
        %s245 = smul.addr %s244, 4
        %s246 = scalar_lea.vmem %s1, %s245
        %s247 = smul.u32 4, %s25
      $region16: #{_lambda_.39} parent=11 // pred_fallthru
        _
      // Predicated region
      $region17: #{_lambda_.39} parent=11 // pred_check
        %p248 = pneg %p114
      $region18: #{_lambda_.39} parent=11 // pred_check_branch
        %250 = sbr.rel (%p248) target = $region20
      $region19: #{_lambda_.39} parent=11 // pred_region
        %p251 = scmp.lt.s32.totalorder %s24, 0
        %s252 = scalar_select %p251, %s24, 0
        %s253 = smul.addr %s252, 8
        %s254 = scalar_lea.vmem %s2, %s253
      $region20: #{_lambda_.39} parent=11 // pred_fallthru
        _
      // Predicated region
      $region21: #{_lambda_.39} parent=11 // pred_check
        %p255 = pneg %p140
      $region22: #{_lambda_.39} parent=11 // pred_check_branch
        %257 = sbr.rel (%p255) target = $region24
      $region23: #{_lambda_.39} parent=11 // pred_region
        %p258 = scmp.lt.s32.totalorder %s24, 0
        %s259 = scalar_select %p258, %s24, 0
        %s260 = smul.addr %s259, 8
        %s261 = scalar_lea.vmem %s3, %s260
      $region24: #{_lambda_.39} parent=11 // pred_fallthru
        _
    $region12: #{_lambda_.39} parent=5 // pred_fallthru
      _
    %p262 = scmp.lt.s32.totalorder %s13, 2
    // Predicated region
    $region25: #{_lambda_.39} parent=5 // pred_check
      %p263 = pneg %p262
    $region26: #{_lambda_.39} parent=5 // pred_check_branch
      %265 = sbr.rel (%p263) target = $region28
    $region27: #{_lambda_.39} parent=5 // pred_region
      // Predicated region
      $region29: #{_lambda_.39} parent=27 // pred_check
        %p266 = pneg %p56
      $region30: #{_lambda_.39} parent=27 // pred_check_branch
        %268 = sbr.rel (%p266) target = $region32
      $region31: #{_lambda_.39} parent=27 // pred_region
        %p269 = scmp.lt.s32.totalorder %s20, 1
        %s270 = scalar_select %p269, %s20, 1
        %p271 = scmp.lt.s32.totalorder %s21, 0
        %s272 = scalar_select %p271, %s21, 0
        %p273 = scmp.lt.s32.totalorder %s22, 0
        %s274 = scalar_select %p273, %s22, 0
        %s275 = sadd.s32 %s274, %s272
        %s276 = sadd.s32 %s275, %s270
        %s277 = smul.addr %s276, 8
        %s278 = scalar_lea.vmem %s0, %s277
      $region32: #{_lambda_.39} parent=27 // pred_fallthru
        _
    $region28: #{_lambda_.39} parent=5 // pred_fallthru
      _
    %p279 = scmp.le.s32.totalorder 1, %s13
    %p280 = scmp.lt.s32.totalorder %s13, 3
    %p281 = pnand %p279, %p280
    %p282 = pneg %p281
    // Predicated region
    $region33: #{_lambda_.39} parent=5 // pred_check
      _
    $region34: #{_lambda_.39} parent=5 // pred_check_branch
      %284 = sbr.rel (%p281) target = $region36
    $region35: #{_lambda_.39} parent=5 // pred_region
      %s285 = ssub.s32 %s13, 1
      %p286 = scmp.lt.s32.totalorder %s23, 1
      %s287 = scalar_select %p286, %s23, 1
      %p288 = scmp.lt.s32.totalorder %s24, 0
      %s289 = scalar_select %p288, %s24, 0
      %p290 = scmp.lt.s32.totalorder %s25, 0
      %s291 = scalar_select %p290, %s25, 0
      %s292 = sadd.s32 %s291, %s289
      %s293 = sadd.s32 %s292, %s287
      %s294 = smul.addr %s293, 8
      %s295 = scalar_lea.vmem %s0, %s294
      %p296 = pneg %p62
      %p297 = pneg %p59
      %s298 = smul.u32 4, %s25
      %p299 = scmp.lt.s32.totalorder %s298, 3
      %s300 = scalar_select %p299, %s298, 3
      %s301 = smul.addr %s300, 4
      %s302 = scalar_lea.vmem %s1, %s301
      %p303 = pneg %p88
      %p304 = pneg %p85
      %p305 = scmp.lt.s32.totalorder %s24, 0
      %s306 = scalar_select %p305, %s24, 0
      %s307 = smul.addr %s306, 8
      %s308 = scalar_lea.vmem %s2, %s307
      %p309 = pneg %p114
      %p310 = pneg %p111
      %p311 = scmp.lt.s32.totalorder %s24, 0
      %s312 = scalar_select %p311, %s24, 0
      %s313 = smul.addr %s312, 8
      %s314 = scalar_lea.vmem %s3, %s313
      %p315 = pneg %p140
      %p316 = pneg %p137
      %p317 = pneg %p168
      %p318 = pneg %p165
      %p319 = scmp.lt.s32.totalorder %s23, 1
      %s320 = scalar_select %p319, %s23, 1
      %p321 = scmp.lt.s32.totalorder %s24, 0
      %s322 = scalar_select %p321, %s24, 0
      %s323 = sadd.s32 %s322, %s320
      %s324 = smul.addr %s323, 4
      %s325 = scalar_lea.vmem %s4, %s324
      %p326 = pneg %p196
      %p327 = pneg %p193
      %p328 = scmp.lt.s32.totalorder %s23, 1
      %s329 = scalar_select %p328, %s23, 1
      %p330 = scmp.lt.s32.totalorder %s24, 0
      %s331 = scalar_select %p330, %s24, 0
      %s332 = sadd.s32 %s331, %s329
      %s333 = smul.addr %s332, 4
      %s334 = scalar_lea.vmem %s5, %s333
      %p335 = pneg %p224
      %p336 = pneg %p221
      %p337 = scmp.lt.s32.totalorder %s23, 1
      %s338 = scalar_select %p337, %s23, 1
      %p339 = scmp.lt.s32.totalorder %s24, 0
      %s340 = scalar_select %p339, %s24, 0
      %s341 = sadd.s32 %s340, %s338
      %s342 = smul.addr %s341, 4
      %s343 = scalar_lea.vmem %s6, %s342
      %p344 = scmp.lt.s32.totalorder %s23, 1
      %s345 = scalar_select %p344, %s23, 1
      %p346 = scmp.lt.s32.totalorder %s24, 0
      %s347 = scalar_select %p346, %s24, 0
      %p348 = scmp.lt.s32.totalorder %s25, 0
      %s349 = scalar_select %p348, %s25, 0
      %s350 = sadd.s32 %s349, %s347
      %s351 = sadd.s32 %s350, %s345
      %s352 = smul.addr %s351, 8
      %s353 = scalar_lea.vmem %s0, %s352
      %s354 = smul.u32 4, %s25
      %p355 = scmp.lt.s32.totalorder %s354, 3
      %s356 = scalar_select %p355, %s354, 3
      %s357 = smul.addr %s356, 4
      %s358 = scalar_lea.vmem %s1, %s357
      %s359 = smul.u32 4, %s25
      %p360 = scmp.lt.s32.totalorder %s24, 0
      %s361 = scalar_select %p360, %s24, 0
      %s362 = smul.addr %s361, 8
      %s363 = scalar_lea.vmem %s2, %s362
      %p364 = scmp.lt.s32.totalorder %s24, 0
      %s365 = scalar_select %p364, %s24, 0
      %s366 = smul.addr %s365, 8
      %s367 = scalar_lea.vmem %s3, %s366
      %p368 = scmp.lt.s32.totalorder %s23, 1
      %s369 = scalar_select %p368, %s23, 1
      %p370 = scmp.lt.s32.totalorder %s24, 0
      %s371 = scalar_select %p370, %s24, 0
      %s372 = sadd.s32 %s371, %s369
      %s373 = smul.addr %s372, 4
      %s374 = scalar_lea.vmem %s4, %s373
      %p375 = scmp.lt.s32.totalorder %s23, 1
      %s376 = scalar_select %p375, %s23, 1
      %p377 = scmp.lt.s32.totalorder %s24, 0
      %s378 = scalar_select %p377, %s24, 0
      %s379 = sadd.s32 %s378, %s376
      %s380 = smul.addr %s379, 4
      %s381 = scalar_lea.vmem %s5, %s380
      %p382 = scmp.lt.s32.totalorder %s23, 1
      %s383 = scalar_select %p382, %s23, 1
      %p384 = scmp.lt.s32.totalorder %s24, 0
      %s385 = scalar_select %p384, %s24, 0
      %s386 = sadd.s32 %s385, %s383
      %s387 = smul.addr %s386, 4
      %s388 = scalar_lea.vmem %s6, %s387
      %p390 = scmp.eq.s32.totalorder %s25, 0
      // Predicated region
      $region37: #{_lambda_.39} parent=35 // pred_check
        %p391 = pneg %p390
      $region38: #{_lambda_.39} parent=35 // pred_check_branch
        %393 = sbr.rel (%p391) target = $region40
      $region39: #{_lambda_.39} parent=35 // pred_region
        %vm394 = vcmask 785408
        %395 = vst.msk [vmem:[#allocation2] sm:$0xff] %vm394, 0.0
      $region40: #{_lambda_.39} parent=35 // pred_fallthru
        _
      %v396 = vld [vmem:[#allocation2] sm:$0xff]
      %v397 = vld [vmem:[%s353] sm:$0xff]
      %v398 = vpack.c.bf16 %v397, %v397
      %v399 = vld [vmem:[%s358] sm:$0xf]
      %v400 = vld [vmem:[%s358 + $0x4] sm:$0xf]
      %v401 = vld [vmem:[%s358 + $0x8] sm:$0xf]
      %v402 = vld [vmem:[%s358 + $0xc] sm:$0xf]
      %v407 = vunpack.c.l.b16 %v399
      %v408 = vunpack.c.l.b16 %v400
      %v409 = vunpack.c.l.b16 %v401
      %v410 = vunpack.c.l.b16 %v402
      %v411 = vpack.c.b16 %v408, %v407
      %v412 = vpack.c.b16 %v410, %v409
      %vm415 = vcmask 261120
      %v417 = vsel %vm415, %v398, 0
      %419 = vmatpush.bf16.msra.mxu0 0
      %420 = vmatpush.bf16.msra.mxu0 0
      %421 = vmatpush.bf16.msra.mxu0 0
      %422 = vmatpush.bf16.msra.mxu0 0
      %423 = vmatpush.bf16.msra.mxu0 0
      %424 = vmatpush.bf16.msra.mxu0 0
      %425 = vmatpush.bf16.msra.mxu0 %v412
      %426 = vmatpush.bf16.msra.mxu0 %v411
      %427 = vmatmul.bf16.gmra.mxu0 %v417
      %v428 = vpop.f32.mrf.mxu0
      %v429 = vadd.f32 0.0, %v428
      %v430 = vpop.f32.mrf.mxu0
      %431 = vdwg.mxu0
      %v432 = vadd.f32 %v396, %v429
      %vm433 = vcmask 785408
      %434 = vst.msk [vmem:[#allocation2] sm:$0xff] %vm433, %v432
      // Predicated region
      $region41: #{_lambda_.39} parent=35 // pred_check
        %p435 = pneg %p390
      $region42: #{_lambda_.39} parent=35 // pred_check_branch
        %437 = sbr.rel (%p435) target = $region44
      $region43: #{_lambda_.39} parent=35 // pred_region
        %v438 = vld [vmem:[#allocation2] sm:$0xff]
        %v439 = vld [vmem:[%s363] sm:$0xff]
        %v440 = vld [vmem:[%s367] sm:$0xff]
        %v441 = vmul.f32 %v438, %v439
        %443 = vrot.lane.b32.xlu0 %v440, 16
        %v444 = vpop.permute.xlu0 %443
        %v446 = vmul.f32 %v438, %v444
        %448 = vrot.lane.b32.xlu0 %v446, 112
        %v449 = vpop.permute.xlu0 %448
        %v451 = vsub.f32 %v441, %v449
        %453 = vrot.lane.b32.xlu0 %v439, 16
        %v454 = vpop.permute.xlu0 %453
        %v456 = vmul.f32 %v438, %v454
        %v457 = vmul.f32 %v438, %v440
        %459 = vrot.lane.b32.xlu0 %v457, 16
        %v460 = vpop.permute.xlu0 %459
        %v462 = vadd.f32 %v456, %v460
        %vm463 = vcmask 130048
        %v464 = vsel %vm463, %v451, %v462
        %v465 = vpack.c.bf16 %v464, %v464
        %vm466 = vcmask 257024
        %467 = vst.msk [vmem:[%s374] sm:$0xf] %vm466, %v465
        %468 = vrot.lane.b32.xlu0 %v439, 32
        %v469 = vpop.permute.xlu0 %468
        %v471 = vmul.f32 %v438, %v469
        %472 = vrot.lane.b32.xlu0 %v440, 48
        %v473 = vpop.permute.xlu0 %472
        %v475 = vmul.f32 %v438, %v473
        %477 = vrot.lane.b32.xlu0 %v475, 112
        %v478 = vpop.permute.xlu0 %477
        %v480 = vsub.f32 %v471, %v478
        %481 = vrot.lane.b32.xlu0 %v439, 48
        %v482 = vpop.permute.xlu0 %481
        %v484 = vmul.f32 %v438, %v482
        %485 = vrot.lane.b32.xlu0 %v440, 32
        %v486 = vpop.permute.xlu0 %485
        %v488 = vmul.f32 %v438, %v486
        %490 = vrot.lane.b32.xlu0 %v488, 16
        %v491 = vpop.permute.xlu0 %490
        %v493 = vadd.f32 %v484, %v491
        %495 = vrot.lane.b32.xlu0 %v480, 96
        %v496 = vpop.permute.xlu0 %495
        %499 = vrot.lane.b32.xlu0 %v493, 96
        %v500 = vpop.permute.xlu0 %499
        %v502 = vsel %vm463, %v496, %v500
        %v503 = vpack.c.bf16 %v502, %v502
        %504 = vst.msk [vmem:[%s381] sm:$0xf] %vm466, %v503
        %v505 = vpack.c.bf16 %v438, %v438
        %507 = vrot.lane.b32.xlu0 %v505, 64
        %v508 = vpop.permute.xlu0 %507
        %510 = vst.msk [vmem:[%s388] sm:$0xf] %vm466, %v508
      $region44: #{_lambda_.39} parent=35 // pred_fallthru
        _
      %p511 = scmp.lt.s32.totalorder %s23, 1
      %s512 = scalar_select %p511, %s23, 1
      %p513 = scmp.lt.s32.totalorder %s24, 0
      %s514 = scalar_select %p513, %s24, 0
      %s515 = sadd.s32 %s514, %s512
      %s516 = smul.addr %s515, 4
      %s517 = scalar_lea.vmem %s4, %s516
      %p518 = scmp.lt.s32.totalorder %s23, 1
      %s519 = scalar_select %p518, %s23, 1
      %p520 = scmp.lt.s32.totalorder %s24, 0
      %s521 = scalar_select %p520, %s24, 0
      %s522 = sadd.s32 %s521, %s519
      %s523 = smul.addr %s522, 4
      %s524 = scalar_lea.vmem %s5, %s523
      %p525 = scmp.lt.s32.totalorder %s23, 1
      %s526 = scalar_select %p525, %s23, 1
      %p527 = scmp.lt.s32.totalorder %s24, 0
      %s528 = scalar_select %p527, %s24, 0
      %s529 = sadd.s32 %s528, %s526
      %s530 = smul.addr %s529, 4
      %s531 = scalar_lea.vmem %s6, %s530
      // Predicated region
      $region45: #{_lambda_.39} parent=35 // pred_check
        %p532 = pneg %p165
      $region46: #{_lambda_.39} parent=35 // pred_check_branch
        %534 = sbr.rel (%p532) target = $region48
      $region47: #{_lambda_.39} parent=35 // pred_region
        _
      $region48: #{_lambda_.39} parent=35 // pred_fallthru
        _
      // Predicated region
      $region49: #{_lambda_.39} parent=35 // pred_check
        %p535 = pneg %p193
      $region50: #{_lambda_.39} parent=35 // pred_check_branch
        %537 = sbr.rel (%p535) target = $region52
      $region51: #{_lambda_.39} parent=35 // pred_region
        _
      $region52: #{_lambda_.39} parent=35 // pred_fallthru
        _
      // Predicated region
      $region53: #{_lambda_.39} parent=35 // pred_check
        %p538 = pneg %p221
      $region54: #{_lambda_.39} parent=35 // pred_check_branch
        %540 = sbr.rel (%p538) target = $region56
      $region55: #{_lambda_.39} parent=35 // pred_region
        _
      $region56: #{_lambda_.39} parent=35 // pred_fallthru
        _
    $region36: #{_lambda_.39} parent=5 // pred_fallthru
      _
    %p541 = scmp.le.s32.totalorder 2, %s13
    // Predicated region
    $region57: #{_lambda_.39} parent=5 // pred_check
      %p542 = pneg %p541
    $region58: #{_lambda_.39} parent=5 // pred_check_branch
      %544 = sbr.rel (%p542) target = $region60
    $region59: #{_lambda_.39} parent=5 // pred_region
      %s545 = ssub.s32 %s13, 2
      // Predicated region
      $region61: #{_lambda_.39} parent=59 // pred_check
        %p546 = pneg %p171
      $region62: #{_lambda_.39} parent=59 // pred_check_branch
        %548 = sbr.rel (%p546) target = $region64
      $region63: #{_lambda_.39} parent=59 // pred_region
        %p549 = scmp.lt.s32.totalorder %s26, 1
        %s550 = scalar_select %p549, %s26, 1
        %p551 = scmp.lt.s32.totalorder %s27, 0
        %s552 = scalar_select %p551, %s27, 0
        %s553 = sadd.s32 %s552, %s550
        %s554 = smul.addr %s553, 4
        %s555 = scalar_lea.vmem %s4, %s554
      $region64: #{_lambda_.39} parent=59 // pred_fallthru
        _
      // Predicated region
      $region65: #{_lambda_.39} parent=59 // pred_check
        %p556 = pneg %p199
      $region66: #{_lambda_.39} parent=59 // pred_check_branch
        %558 = sbr.rel (%p556) target = $region68
      $region67: #{_lambda_.39} parent=59 // pred_region
        %p559 = scmp.lt.s32.totalorder %s26, 1
        %s560 = scalar_select %p559, %s26, 1
        %p561 = scmp.lt.s32.totalorder %s27, 0
        %s562 = scalar_select %p561, %s27, 0
        %s563 = sadd.s32 %s562, %s560
        %s564 = smul.addr %s563, 4
        %s565 = scalar_lea.vmem %s5, %s564
      $region68: #{_lambda_.39} parent=59 // pred_fallthru
        _
      // Predicated region
      $region69: #{_lambda_.39} parent=59 // pred_check
        %p566 = pneg %p227
      $region70: #{_lambda_.39} parent=59 // pred_check_branch
        %568 = sbr.rel (%p566) target = $region72
      $region71: #{_lambda_.39} parent=59 // pred_region
        %p569 = scmp.lt.s32.totalorder %s26, 1
        %s570 = scalar_select %p569, %s26, 1
        %p571 = scmp.lt.s32.totalorder %s27, 0
        %s572 = scalar_select %p571, %s27, 0
        %s573 = sadd.s32 %s572, %s570
        %s574 = smul.addr %s573, 4
        %s575 = scalar_lea.vmem %s6, %s574
      $region72: #{_lambda_.39} parent=59 // pred_fallthru
        _
    $region60: #{_lambda_.39} parent=5 // pred_fallthru
      _
  $region6: #{_lambda_.39} parent=0 // loop_footer
    %s17 = sadd.s32 1, %s13
  $region7: #{_lambda_.39} parent=0 // loop_footer_branch
    %12 = sbr.rel target = $region3
  $region8: #{_lambda_.39} parent=0 // loop_exit
    _

// kernel: _lambda_.40
$region0: #{_lambda_.40}
  #allocation0 [shape = 'u32[]', space=smem, size = 0x4, offset = 0x4, fixed_abs, tag = 'smem constant byte address 0x4 - core index']
  #allocation1 [shape = 'u32[72,128]{1,0:T(1,128)}', space=vmem, size = 0x9000, scoped, tag = 'internal scratch']
  %s0 = inlined_call_operand.vmem [shape: bf16[2,4,8,8], index: 0, kind: input, shape index: {}]
  %s1 = inlined_call_operand.vmem [shape: bf16[2,4,8,8], index: 1, kind: input, shape index: {}]
  %s2 = inlined_call_operand.vmem [shape: bf16[2,4,8,8], index: 2, kind: input, shape index: {}]
  %s3 = inlined_call_operand.vmem [shape: f32[2,1,8], index: 3, kind: input, shape index: {}]
  %s4 = inlined_call_operand.vmem [shape: bf16[2,4,8,8], index: 4, kind: output, shape index: {0}]
  %s5 = inlined_call_operand.hbm [shape: f32[2,4,8,8], index: 5, kind: output, shape index: {1}]
  %6 = xla_tuple %s4, %s5
  %s7 = sld [smem:[#allocation0]]
  $region57: #{_lambda_.40} parent=0
    _
  %s9 = ssub.s32 1, %s7
  %s10 = scalar_select 0, %s9, %s7
  $region1: #{_lambda_.40} parent=0
    #allocation2 [shape = 'u8[8192]{0}', space=vmem, size = 0x2000, scoped, tag = 'output window, operand 1']
    #allocation3 [shape = 's32[2]{0}', space=sflag, size = 0x8, scoped, tag = 'scoped memory for _lambda_.40']
    %11 = vsyncpa [#allocation3], 0
    %s12 = scalar_lea.sflag [#allocation3], 1
    %13 = vsyncpa %s12, 0
    loop: start=0, step=1, limit=10
    $region2: #{_lambda_.40} parent=1 // loop_pre_header
      _
    $region3: #{_lambda_.40} parent=1 // loop_header
      %s15 = sphi 0, %s19
      %p16 = scmp.ge.s32.totalorder %s15, 10
      %s22 = sphi 0, %s41
      %s23 = sphi 0, %s37
      %s24 = sphi 0, %s33
      %s25 = sphi 0, %s22
      %s26 = sphi 0, %s23
      %s27 = sphi 0, %s24
      %s28 = sphi 0, %s25
      %s29 = sphi 0, %s26
      %s30 = sphi 0, %s27
      %s48 = sphi 0, %s50
      %s51 = sphi 0, %s48
      %s52 = sphi 0, %s51
      %s68 = sphi 0, %s52
      %s76 = sphi 0, %s78
      %s79 = sphi 0, %s76
      %s80 = sphi 0, %s79
      %s96 = sphi 0, %s80
      %s104 = sphi 0, %s106
      %s107 = sphi 0, %s104
      %s108 = sphi 0, %s107
      %s124 = sphi 0, %s108
      %s130 = sphi 0, %s132
      %s133 = sphi 0, %s130
      %s134 = sphi 0, %s133
      %s150 = sphi 0, %s134
      %s160 = sphi 0, %s162
      %s163 = sphi 0, %s160
      %s164 = sphi 0, %s163
      %s180 = sphi 0, %s164
      %s190 = sphi 0, %s192
      %s193 = sphi 0, %s190
      %s194 = sphi 0, %s193
      %s210 = sphi 0, %s194
    $region4: #{_lambda_.40} parent=1 // loop_header_branch
      %18 = sbr.rel (%p16) target = $region8
    $region5: #{_lambda_.40} parent=1 // loop_body
      %s20 = ssub.s32 %s15, 1
      %s21 = ssub.s32 %s15, 2
      %s31 = sadd.s32 1, %s24
      %p32 = scmp.ge.s32.totalorder %s31, 1
      %s33 = scalar_select %p32, 0, %s31
      %s34 = sadd.s32 1, %s23
      %s35 = scalar_select %p32, %s34, %s23
      %p36 = scmp.ge.s32.totalorder %s35, 4
      %s37 = scalar_select %p36, 0, %s35
      %s38 = sadd.s32 1, %s22
      %s39 = scalar_select %p36, %s38, %s22
      %p40 = scmp.ge.s32.totalorder %s39, 2
      %s41 = scalar_select %p40, 0, %s39
      %s42 = ssub.s32 %s22, %s41
      %s43 = ssub.s32 %s23, %s37
      %s44 = sor.u32 %s42, %s43
      %s45 = ssub.s32 %s24, %s33
      %s46 = sor.u32 %s44, %s45
      %p47 = scmp.eq.s32.totalorder %s46, 0
      %s49 = sadd.s32 %s48, 1
      %s50 = scalar_select %p47, %s48, %s49
      %p53 = pneg %p47
      %p54 = scmp.eq.s32.totalorder %s15, 7
      %p55 = por %p53, %p54
      %p56 = scmp.ne.s32.totalorder %s48, %s51
      %p57 = scmp.eq.s32.totalorder %s15, 0
      %p58 = por %p56, %p57
      %p59 = scmp.ne.s32.totalorder %s48, %s51
      %p60 = scmp.eq.s32.totalorder %s20, 7
      %p61 = por %p59, %p60
      %p62 = scmp.ne.s32.totalorder %s51, %s52
      %p63 = scmp.eq.s32.totalorder %s20, 0
      %p64 = por %p62, %p63
      %p65 = scmp.ne.s32.totalorder %s51, %s52
      %p66 = scmp.eq.s32.totalorder %s21, 7
      %p67 = por %p65, %p66
      %p69 = scmp.ne.s32.totalorder %s52, %s68
      %p70 = scmp.eq.s32.totalorder %s21, 0
      %p71 = por %p69, %p70
      %s72 = ssub.s32 %s22, %s41
      %s73 = ssub.s32 %s23, %s37
      %s74 = sor.u32 %s72, %s73
      %p75 = scmp.eq.s32.totalorder %s74, 0
      %s77 = sadd.s32 %s76, 1
      %s78 = scalar_select %p75, %s76, %s77
      %p81 = pneg %p75
      %p82 = scmp.eq.s32.totalorder %s15, 7
      %p83 = por %p81, %p82
      %p84 = scmp.ne.s32.totalorder %s76, %s79
      %p85 = scmp.eq.s32.totalorder %s15, 0
      %p86 = por %p84, %p85
      %p87 = scmp.ne.s32.totalorder %s76, %s79
      %p88 = scmp.eq.s32.totalorder %s20, 7
      %p89 = por %p87, %p88
      %p90 = scmp.ne.s32.totalorder %s79, %s80
      %p91 = scmp.eq.s32.totalorder %s20, 0
      %p92 = por %p90, %p91
      %p93 = scmp.ne.s32.totalorder %s79, %s80
      %p94 = scmp.eq.s32.totalorder %s21, 7
      %p95 = por %p93, %p94
      %p97 = scmp.ne.s32.totalorder %s80, %s96
      %p98 = scmp.eq.s32.totalorder %s21, 0
      %p99 = por %p97, %p98
      %s100 = ssub.s32 %s22, %s41
      %s101 = ssub.s32 %s23, %s37
      %s102 = sor.u32 %s100, %s101
      %p103 = scmp.eq.s32.totalorder %s102, 0
      %s105 = sadd.s32 %s104, 1
      %s106 = scalar_select %p103, %s104, %s105
      %p109 = pneg %p103
      %p110 = scmp.eq.s32.totalorder %s15, 7
      %p111 = por %p109, %p110
      %p112 = scmp.ne.s32.totalorder %s104, %s107
      %p113 = scmp.eq.s32.totalorder %s15, 0
      %p114 = por %p112, %p113
      %p115 = scmp.ne.s32.totalorder %s104, %s107
      %p116 = scmp.eq.s32.totalorder %s20, 7
      %p117 = por %p115, %p116
      %p118 = scmp.ne.s32.totalorder %s107, %s108
      %p119 = scmp.eq.s32.totalorder %s20, 0
      %p120 = por %p118, %p119
      %p121 = scmp.ne.s32.totalorder %s107, %s108
      %p122 = scmp.eq.s32.totalorder %s21, 7
      %p123 = por %p121, %p122
      %p125 = scmp.ne.s32.totalorder %s108, %s124
      %p126 = scmp.eq.s32.totalorder %s21, 0
      %p127 = por %p125, %p126
      %s128 = ssub.s32 %s22, %s41
      %p129 = scmp.eq.s32.totalorder %s128, 0
      %s131 = sadd.s32 %s130, 1
      %s132 = scalar_select %p129, %s130, %s131
      %p135 = pneg %p129
      %p136 = scmp.eq.s32.totalorder %s15, 7
      %p137 = por %p135, %p136
      %p138 = scmp.ne.s32.totalorder %s130, %s133
      %p139 = scmp.eq.s32.totalorder %s15, 0
      %p140 = por %p138, %p139
      %p141 = scmp.ne.s32.totalorder %s130, %s133
      %p142 = scmp.eq.s32.totalorder %s20, 7
      %p143 = por %p141, %p142
      %p144 = scmp.ne.s32.totalorder %s133, %s134
      %p145 = scmp.eq.s32.totalorder %s20, 0
      %p146 = por %p144, %p145
      %p147 = scmp.ne.s32.totalorder %s133, %s134
      %p148 = scmp.eq.s32.totalorder %s21, 7
      %p149 = por %p147, %p148
      %p151 = scmp.ne.s32.totalorder %s134, %s150
      %p152 = scmp.eq.s32.totalorder %s21, 0
      %p153 = por %p151, %p152
      %s154 = ssub.s32 %s22, %s41
      %s155 = ssub.s32 %s23, %s37
      %s156 = sor.u32 %s154, %s155
      %s157 = ssub.s32 %s24, %s33
      %s158 = sor.u32 %s156, %s157
      %p159 = scmp.eq.s32.totalorder %s158, 0
      %s161 = sadd.s32 %s160, 1
      %s162 = scalar_select %p159, %s160, %s161
      %p165 = pneg %p159
      %p166 = scmp.eq.s32.totalorder %s15, 7
      %p167 = por %p165, %p166
      %p168 = scmp.ne.s32.totalorder %s160, %s163
      %p169 = scmp.eq.s32.totalorder %s15, 0
      %p170 = por %p168, %p169
      %p171 = scmp.ne.s32.totalorder %s160, %s163
      %p172 = scmp.eq.s32.totalorder %s20, 7
      %p173 = por %p171, %p172
      %p174 = scmp.ne.s32.totalorder %s163, %s164
      %p175 = scmp.eq.s32.totalorder %s20, 0
      %p176 = por %p174, %p175
      %p177 = scmp.ne.s32.totalorder %s163, %s164
      %p178 = scmp.eq.s32.totalorder %s21, 7
      %p179 = por %p177, %p178
      %p181 = scmp.ne.s32.totalorder %s164, %s180
      %p182 = scmp.eq.s32.totalorder %s21, 0
      %p183 = por %p181, %p182
      %s184 = ssub.s32 %s22, %s41
      %s185 = ssub.s32 %s23, %s37
      %s186 = sor.u32 %s184, %s185
      %s187 = ssub.s32 %s24, %s33
      %s188 = sor.u32 %s186, %s187
      %p189 = scmp.eq.s32.totalorder %s188, 0
      %s191 = sadd.s32 %s190, 1
      %s192 = scalar_select %p189, %s190, %s191
      %p195 = pneg %p189
      %p196 = scmp.eq.s32.totalorder %s15, 7
      %p197 = por %p195, %p196
      %p198 = scmp.ne.s32.totalorder %s190, %s193
      %p199 = scmp.eq.s32.totalorder %s15, 0
      %p200 = por %p198, %p199
      %p201 = scmp.ne.s32.totalorder %s190, %s193
      %p202 = scmp.eq.s32.totalorder %s20, 7
      %p203 = por %p201, %p202
      %p204 = scmp.ne.s32.totalorder %s193, %s194
      %p205 = scmp.eq.s32.totalorder %s20, 0
      %p206 = por %p204, %p205
      %p207 = scmp.ne.s32.totalorder %s193, %s194
      %p208 = scmp.eq.s32.totalorder %s21, 7
      %p209 = por %p207, %p208
      %p211 = scmp.ne.s32.totalorder %s194, %s210
      %p212 = scmp.eq.s32.totalorder %s21, 0
      %p213 = por %p211, %p212
      %p214 = scmp.le.s32.totalorder 1, %s15
      %p215 = scmp.lt.s32.totalorder %s15, 9
      %p216 = pnand %p214, %p215
      %p217 = pneg %p216
      // Predicated region
      $region9: #{_lambda_.40} parent=5 // pred_check
        _
      $region10: #{_lambda_.40} parent=5 // pred_check_branch
        %219 = sbr.rel (%p216) target = $region12
      $region11: #{_lambda_.40} parent=5 // pred_region
        %s220 = ssub.s32 %s15, 1
      $region12: #{_lambda_.40} parent=5 // pred_fallthru
        _
      %p221 = scmp.lt.s32.totalorder %s15, 8
      // Predicated region
      $region13: #{_lambda_.40} parent=5 // pred_check
        %p222 = pneg %p221
      $region14: #{_lambda_.40} parent=5 // pred_check_branch
        %224 = sbr.rel (%p222) target = $region16
      $region15: #{_lambda_.40} parent=5 // pred_region
        // Predicated region
        $region17: #{_lambda_.40} parent=15 // pred_check
          %p225 = pneg %p58
        $region18: #{_lambda_.40} parent=15 // pred_check_branch
          %227 = sbr.rel (%p225) target = $region20
        $region19: #{_lambda_.40} parent=15 // pred_region
          %p228 = scmp.lt.s32.totalorder %s22, 1
          %s229 = scalar_select %p228, %s22, 1
          %p230 = scmp.lt.s32.totalorder %s23, 3
          %s231 = scalar_select %p230, %s23, 3
          %p232 = scmp.lt.s32.totalorder %s24, 0
          %s233 = scalar_select %p232, %s24, 0
          %s234 = sadd.s32 %s233, %s231
          %s235 = smul.addr %s229, 4
          %s236 = sadd.s32 %s234, %s235
          %s237 = smul.addr %s236, 4
          %s238 = scalar_lea.vmem %s0, %s237
        $region20: #{_lambda_.40} parent=15 // pred_fallthru
          _
        // Predicated region
        $region21: #{_lambda_.40} parent=15 // pred_check
          %p239 = pneg %p86
        $region22: #{_lambda_.40} parent=15 // pred_check_branch
          %241 = sbr.rel (%p239) target = $region24
        $region23: #{_lambda_.40} parent=15 // pred_region
          %p242 = scmp.lt.s32.totalorder %s22, 1
          %s243 = scalar_select %p242, %s22, 1
          %p244 = scmp.lt.s32.totalorder %s23, 3
          %s245 = scalar_select %p244, %s23, 3
          %s246 = smul.addr %s243, 4
          %s247 = sadd.s32 %s245, %s246
          %s248 = smul.addr %s247, 4
          %s249 = scalar_lea.vmem %s1, %s248
        $region24: #{_lambda_.40} parent=15 // pred_fallthru
          _
        // Predicated region
        $region25: #{_lambda_.40} parent=15 // pred_check
          %p250 = pneg %p114
        $region26: #{_lambda_.40} parent=15 // pred_check_branch
          %252 = sbr.rel (%p250) target = $region28
        $region27: #{_lambda_.40} parent=15 // pred_region
          %p253 = scmp.lt.s32.totalorder %s22, 1
          %s254 = scalar_select %p253, %s22, 1
          %p255 = scmp.lt.s32.totalorder %s23, 3
          %s256 = scalar_select %p255, %s23, 3
          %s257 = smul.addr %s254, 4
          %s258 = sadd.s32 %s256, %s257
          %s259 = smul.addr %s258, 4
          %s260 = scalar_lea.vmem %s2, %s259
        $region28: #{_lambda_.40} parent=15 // pred_fallthru
          _
        // Predicated region
        $region29: #{_lambda_.40} parent=15 // pred_check
          %p261 = pneg %p140
        $region30: #{_lambda_.40} parent=15 // pred_check_branch
          %263 = sbr.rel (%p261) target = $region32
        $region31: #{_lambda_.40} parent=15 // pred_region
          %p264 = scmp.lt.s32.totalorder %s22, 1
          %s265 = scalar_select %p264, %s22, 1
          %s266 = scalar_lea.vmem %s3, %s265
        $region32: #{_lambda_.40} parent=15 // pred_fallthru
          _
      $region16: #{_lambda_.40} parent=5 // pred_fallthru
        _
      %p267 = scmp.le.s32.totalorder 1, %s15
      %p268 = scmp.lt.s32.totalorder %s15, 9
      %p269 = pnand %p267, %p268
      %p270 = pneg %p269
      // Predicated region
      $region33: #{_lambda_.40} parent=5 // pred_check
        _
      $region34: #{_lambda_.40} parent=5 // pred_check_branch
        %272 = sbr.rel (%p269) target = $region36
      $region35: #{_lambda_.40} parent=5 // pred_region
        %s273 = ssub.s32 %s15, 1
        %p274 = scmp.lt.s32.totalorder %s25, 1
        %s275 = scalar_select %p274, %s25, 1
        %p276 = scmp.lt.s32.totalorder %s26, 3
        %s277 = scalar_select %p276, %s26, 3
        %p278 = scmp.lt.s32.totalorder %s27, 0
        %s279 = scalar_select %p278, %s27, 0
        %s280 = sadd.s32 %s279, %s277
        %s281 = smul.addr %s275, 4
        %s282 = sadd.s32 %s280, %s281
        %s283 = smul.addr %s282, 4
        %s284 = scalar_lea.vmem %s0, %s283
        %p285 = pneg %p64
        %p286 = pneg %p61
        %p287 = scmp.lt.s32.totalorder %s25, 1
        %s288 = scalar_select %p287, %s25, 1
        %p289 = scmp.lt.s32.totalorder %s26, 3
        %s290 = scalar_select %p289, %s26, 3
        %s291 = smul.addr %s288, 4
        %s292 = sadd.s32 %s290, %s291
        %s293 = smul.addr %s292, 4
        %s294 = scalar_lea.vmem %s1, %s293
        %p295 = pneg %p92
        %p296 = pneg %p89
        %p297 = scmp.lt.s32.totalorder %s25, 1
        %s298 = scalar_select %p297, %s25, 1
        %p299 = scmp.lt.s32.totalorder %s26, 3
        %s300 = scalar_select %p299, %s26, 3
        %s301 = smul.addr %s298, 4
        %s302 = sadd.s32 %s300, %s301
        %s303 = smul.addr %s302, 4
        %s304 = scalar_lea.vmem %s2, %s303
        %p305 = pneg %p120
        %p306 = pneg %p117
        %p307 = scmp.lt.s32.totalorder %s25, 1
        %s308 = scalar_select %p307, %s25, 1
        %s309 = scalar_lea.vmem %s3, %s308
        %p310 = pneg %p146
        %p311 = pneg %p143
        %p312 = pneg %p176
        %p313 = pneg %p173
        %p314 = scmp.lt.s32.totalorder %s25, 1
        %s315 = scalar_select %p314, %s25, 1
        %p316 = scmp.lt.s32.totalorder %s26, 3
        %s317 = scalar_select %p316, %s26, 3
        %p318 = scmp.lt.s32.totalorder %s27, 0
        %s319 = scalar_select %p318, %s27, 0
        %s320 = sadd.s32 %s319, %s317
        %s321 = smul.addr %s315, 4
        %s322 = sadd.s32 %s320, %s321
        %s323 = smul.addr %s322, 4
        %s324 = scalar_lea.vmem %s4, %s323
        %p325 = pneg %p206
        %p326 = pneg %p203
        %s327 = sand.u32 %s193, 1
        %s328 = scalar_lea.sflag [#allocation3], %s327
        %s329 = sand.u32 %s193, 1
        %s330 = smul.addr %s329, 8
        %s331 = scalar_lea.vmem [#allocation2], %s330
        %p332 = scmp.lt.s32.totalorder %s25, 1
        %s333 = scalar_select %p332, %s25, 1
        %p334 = scmp.lt.s32.totalorder %s26, 3
        %s335 = scalar_select %p334, %s26, 3
        %p336 = scmp.lt.s32.totalorder %s27, 0
        %s337 = scalar_select %p336, %s27, 0
        %s338 = sadd.s32 %s337, %s335
        %s339 = smul.addr %s333, 4
        %s340 = sadd.s32 %s338, %s339
        %s341 = smul.addr %s340, 4
        %s342 = scalar_lea.vmem %s0, %s341
        %p343 = scmp.lt.s32.totalorder %s25, 1
        %s344 = scalar_select %p343, %s25, 1
        %p345 = scmp.lt.s32.totalorder %s26, 3
        %s346 = scalar_select %p345, %s26, 3
        %s347 = smul.addr %s344, 4
        %s348 = sadd.s32 %s346, %s347
        %s349 = smul.addr %s348, 4
        %s350 = scalar_lea.vmem %s1, %s349
        %p351 = scmp.lt.s32.totalorder %s25, 1
        %s352 = scalar_select %p351, %s25, 1
        %p353 = scmp.lt.s32.totalorder %s26, 3
        %s354 = scalar_select %p353, %s26, 3
        %s355 = smul.addr %s352, 4
        %s356 = sadd.s32 %s354, %s355
        %s357 = smul.addr %s356, 4
        %s358 = scalar_lea.vmem %s2, %s357
        %p359 = scmp.lt.s32.totalorder %s25, 1
        %s360 = scalar_select %p359, %s25, 1
        %s361 = scalar_lea.vmem %s3, %s360
        %p362 = scmp.lt.s32.totalorder %s25, 1
        %s363 = scalar_select %p362, %s25, 1
        %p364 = scmp.lt.s32.totalorder %s26, 3
        %s365 = scalar_select %p364, %s26, 3
        %p366 = scmp.lt.s32.totalorder %s27, 0
        %s367 = scalar_select %p366, %s27, 0
        %s368 = sadd.s32 %s367, %s365
        %s369 = smul.addr %s363, 4
        %s370 = sadd.s32 %s368, %s369
        %s371 = smul.addr %s370, 4
        %s372 = scalar_lea.vmem %s4, %s371
        %v374 = vld [vmem:[%s342] sm:$0xf]
        %v375 = vld [vmem:[%s350] sm:$0xf]
        %v376 = vld [vmem:[%s358] sm:$0xf]
        %v377 = vld [vmem:[%s361] sm:$0x1]
        %vm378 = vcmp.gt.f32.partialorder %v377, 0.0
        %vm379 = vcmask 64512
        %v381 = vsel %vm379, %v374, 0
        %v384 = vsel %vm379, %v375, 0
        %386 = vmatpush.bf16.xpose.msra.mxu0 0
        %387 = vmatpush.bf16.xpose.msra.mxu0 0
        %388 = vmatpush.bf16.xpose.msra.mxu0 0
        %389 = vmatpush.bf16.xpose.msra.mxu0 0
        %390 = vmatpush.bf16.xpose.msra.mxu0 0
        %391 = vmatpush.bf16.xpose.msra.mxu0 0
        %392 = vmatpush.bf16.xpose.msra.mxu0 0
        %393 = vmatpush.bf16.xpose.msra.mxu0 %v384
        %394 = vmatmul.bf16.gmra.mxu0 %v381
        %v395 = vpop.f32.mrf.mxu0
        %v396 = vadd.f32 0.0, %v395
        %v397 = vpop.f32.mrf.mxu0
        %398 = vdwg.mxu0
        %s399 = smul.u32 %s27, 8
        %v400 = vlaneseq
        %v401 = vshrl.u32 %v400, 7
        %v402 = vstv %s399
        %v403 = vadd.s32 %v401, %v402
        %v404 = vlaneseq
        %v405 = vand.u32 %v404, 127
        %vm406 = vcmp.gt.s32.totalorder %v405, %v403
        %v407 = vsel %vm378, 1, 0
        %v408 = vperm.slane %v407, 0
        %vm409 = vcmp.eq.s32.totalorder %v408, 1
        %vm410 = vmor %vm409, %vm406
        %v411 = vmul.f32 %v396, 0.35355338
        %v412 = vsel %vm410, -3.5355338e+08, 0.0
        %v413 = vadd.f32 %v411, %v412
        %v414 = vsel %vm379, %v413, -inf
        %415 = vmax.xlane.f32.xlu0 %v414
        %v416 = vpop.xlane.xlu0 %415
        %v417 = vsub.f32 %v413, %v416
        %v418 = vmul.f32 %v417, 1.442695
        %v419 = vpow.pop %v418
        %v420 = vsel %vm379, %v419, 0.0
        %421 = vadd.xlane.f32.xlu0 %v420
        %v422 = vpop.xlane.xlu0 %421
        %v423 = vrcp.pop %v422
        %v424 = vmul.f32 %v422, %v423
        %v425 = vsub.f32 1.0, %v424
        %v426 = vmul.f32 %v423, %v425
        %v427 = vadd.f32 %v423, %v426
        %vm428 = vweird.f32 %v422
        %vm429 = vweird.f32 %v423
        %vm430 = vmor %vm428, %vm429
        %v431 = vsel %vm430, %v423, %v427
        %v432 = vand.u32 2147483647, %v422
        %vm433 = vcmp.eq.f32.partialorder %v432, 8.507059e+37
        %v434 = vand.u32 %v422, 2147483648
        %v435 = vor.u32 1.1754944e-38, %v434
        %v436 = vsel %vm433, %v435, %v431
        %v437 = vmul.f32 %v419, %v436
        %438 = vst.msk [vmem:[%s331] sm:$0xff] %vm379, %v437
        %v439 = vpack.c.bf16 %v437, %v437
        %v441 = vsel %vm379, %v439, 0
        %vm443 = vcmask 1043456
        %v445 = vsel %vm443, %v376, 0
        %447 = vmatpush.bf16.msra.mxu0 0
        %448 = vmatpush.bf16.msra.mxu0 0
        %449 = vmatpush.bf16.msra.mxu0 0
        %450 = vmatpush.bf16.msra.mxu0 0
        %451 = vmatpush.bf16.msra.mxu0 0
        %452 = vmatpush.bf16.msra.mxu0 0
        %453 = vmatpush.bf16.msra.mxu0 0
        %454 = vmatpush.bf16.msra.mxu0 %v445
        %455 = vmatmul.bf16.gmra.mxu0 %v441
        %v456 = vpop.f32.mrf.mxu0
        %v457 = vadd.f32 0.0, %v456
        %v458 = vpop.f32.mrf.mxu0
        %459 = vdwg.mxu0
        %v460 = vpack.c.bf16 %v457, %v457
        %vm461 = vcmask 60416
        %462 = vst.msk [vmem:[%s372] sm:$0xf] %vm461, %v460
        %p463 = scmp.lt.s32.totalorder %s25, 1
        %s464 = scalar_select %p463, %s25, 1
        %p465 = scmp.lt.s32.totalorder %s26, 3
        %s466 = scalar_select %p465, %s26, 3
        %p467 = scmp.lt.s32.totalorder %s27, 0
        %s468 = scalar_select %p467, %s27, 0
        %s469 = sadd.s32 %s468, %s466
        %s470 = smul.addr %s464, 4
        %s471 = sadd.s32 %s469, %s470
        %s472 = smul.addr %s471, 4
        %s473 = scalar_lea.vmem %s4, %s472
        %s474 = sand.u32 %s193, 1
        %s475 = scalar_lea.sflag [#allocation3], %s474
        %s476 = sand.u32 %s193, 1
        %s477 = smul.addr %s476, 8
        %s478 = scalar_lea.vmem [#allocation2], %s477
        // Predicated region
        $region37: #{_lambda_.40} parent=35 // pred_check
          %p479 = pneg %p173
        $region38: #{_lambda_.40} parent=35 // pred_check_branch
          %481 = sbr.rel (%p479) target = $region40
        $region39: #{_lambda_.40} parent=35 // pred_region
          _
        $region40: #{_lambda_.40} parent=35 // pred_fallthru
          _
        // Predicated region
        $region41: #{_lambda_.40} parent=35 // pred_check
          %p482 = pneg %p203
        $region42: #{_lambda_.40} parent=35 // pred_check_branch
          %484 = sbr.rel (%p482) target = $region44
        $region43: #{_lambda_.40} parent=35 // pred_region
          %486 = vsyncadd %s475, 0
          %s487 = sadd.s32 %s27, %s26
          %s488 = smul.addr %s25, 4
          %s489 = sadd.s32 %s487, %s488
          %s490 = smul.addr %s489, 8
          %s491 = scalar_lea.hbm %s5, %s490
          %s493 = sshll.u32 %s478, 4
          %s494 = int_to_ptr.vmem [resolvable:$true] %s493
          %s495 = sshll.u32 %s491, 4
          %s496 = int_to_ptr.hbm [resolvable:$true] %s495
          %498 = dma.vmem_to_hbm [thread:$0]  %s494, 128, %s496, %s475
        $region44: #{_lambda_.40} parent=35 // pred_fallthru
          _
      $region36: #{_lambda_.40} parent=5 // pred_fallthru
        _
      %p499 = scmp.le.s32.totalorder 2, %s15
      // Predicated region
      $region45: #{_lambda_.40} parent=5 // pred_check
        %p500 = pneg %p499
      $region46: #{_lambda_.40} parent=5 // pred_check_branch
        %502 = sbr.rel (%p500) target = $region48
      $region47: #{_lambda_.40} parent=5 // pred_region
        %s503 = ssub.s32 %s15, 2
        // Predicated region
        $region49: #{_lambda_.40} parent=47 // pred_check
          %p504 = pneg %p179
        $region50: #{_lambda_.40} parent=47 // pred_check_branch
          %506 = sbr.rel (%p504) target = $region52
        $region51: #{_lambda_.40} parent=47 // pred_region
          %p507 = scmp.lt.s32.totalorder %s28, 1
          %s508 = scalar_select %p507, %s28, 1
          %p509 = scmp.lt.s32.totalorder %s29, 3
          %s510 = scalar_select %p509, %s29, 3
          %p511 = scmp.lt.s32.totalorder %s30, 0
          %s512 = scalar_select %p511, %s30, 0
          %s513 = sadd.s32 %s512, %s510
          %s514 = smul.addr %s508, 4
          %s515 = sadd.s32 %s513, %s514
          %s516 = smul.addr %s515, 4
          %s517 = scalar_lea.vmem %s4, %s516
        $region52: #{_lambda_.40} parent=47 // pred_fallthru
          _
        // Predicated region
        $region53: #{_lambda_.40} parent=47 // pred_check
          %p518 = pneg %p209
        $region54: #{_lambda_.40} parent=47 // pred_check_branch
          %520 = sbr.rel (%p518) target = $region56
        $region55: #{_lambda_.40} parent=47 // pred_region
          %s521 = sand.u32 %s194, 1
          %s522 = scalar_lea.sflag [#allocation3], %s521
          %s523 = sand.u32 %s194, 1
          %s524 = smul.addr %s523, 8
          %s525 = scalar_lea.vmem [#allocation2], %s524
          %527 = dma.done %s522, 128
        $region56: #{_lambda_.40} parent=47 // pred_fallthru
          _
      $region48: #{_lambda_.40} parent=5 // pred_fallthru
        _
    $region6: #{_lambda_.40} parent=1 // loop_footer
      %s19 = sadd.s32 1, %s15
    $region7: #{_lambda_.40} parent=1 // loop_footer_branch
      %14 = sbr.rel target = $region3
    $region8: #{_lambda_.40} parent=1 // loop_exit
      _
    %528 = vsyncpa [#allocation3], 1
    %s529 = scalar_lea.sflag [#allocation3], 1
    %530 = vsyncpa %s529, 1

// kernel: _lambda_.42
$region0: #{_lambda_.42}
  #allocation0 [shape = 'u32[]', space=smem, size = 0x4, offset = 0x4, fixed_abs, tag = 'smem constant byte address 0x4 - core index']
  #allocation1 [shape = 'u32[72,128]{1,0:T(1,128)}', space=vmem, size = 0x9000, scoped, tag = 'internal scratch']
  #allocation2 [shape = 'f32[8,32]{1,0:T(8,128)}', space=vmem, size = 0x1000, scoped, tag = 'scratch operand']
  %s0 = inlined_call_operand.vmem [shape: f32[2,8,32], index: 0, kind: input, shape index: {}]
  %s1 = inlined_call_operand.vmem [shape: bf16[32,32], index: 1, kind: input, shape index: {}]
  %s2 = inlined_call_operand.vmem [shape: f32[8,16], index: 2, kind: input, shape index: {}]
  %s3 = inlined_call_operand.vmem [shape: f32[8,16], index: 3, kind: input, shape index: {}]
  %s4 = inlined_call_operand.vmem [shape: bf16[2,8,32], index: 4, kind: output, shape index: {}]
  %s5 = sld [smem:[#allocation0]]
  $region57: #{_lambda_.42} parent=0
    _
  %s7 = ssub.s32 1, %s5
  %s8 = scalar_select 0, %s7, %s5
  loop: start=0, step=1, limit=4
  $region2: #{_lambda_.42} parent=0 // loop_pre_header
    _
  $region3: #{_lambda_.42} parent=0 // loop_header
    %s10 = sphi 0, %s14
    %p11 = scmp.ge.s32.totalorder %s10, 4
    %s17 = sphi 0, %s36
    %s18 = sphi 0, %s32
    %s19 = sphi 0, %s28
    %s20 = sphi 0, %s17
    %s21 = sphi 0, %s18
    %s22 = sphi 0, %s19
    %s23 = sphi 0, %s20
    %s24 = sphi 0, %s21
    %s25 = sphi 0, %s22
    %s43 = sphi 0, %s45
    %s46 = sphi 0, %s43
    %s47 = sphi 0, %s46
    %s63 = sphi 0, %s47
    %s69 = sphi 0, %s71
    %s72 = sphi 0, %s69
    %s73 = sphi 0, %s72
    %s89 = sphi 0, %s73
    %s95 = sphi 0, %s97
    %s98 = sphi 0, %s95
    %s99 = sphi 0, %s98
    %s115 = sphi 0, %s99
    %s121 = sphi 0, %s123
    %s124 = sphi 0, %s121
    %s125 = sphi 0, %s124
    %s141 = sphi 0, %s125
    %s149 = sphi 0, %s151
    %s152 = sphi 0, %s149
    %s153 = sphi 0, %s152
    %s169 = sphi 0, %s153
  $region4: #{_lambda_.42} parent=0 // loop_header_branch
    %13 = sbr.rel (%p11) target = $region8
  $region5: #{_lambda_.42} parent=0 // loop_body
    %s15 = ssub.s32 %s10, 1
    %s16 = ssub.s32 %s10, 2
    %s26 = sadd.s32 1, %s19
    %p27 = scmp.ge.s32.totalorder %s26, 1
    %s28 = scalar_select %p27, 0, %s26
    %s29 = sadd.s32 1, %s18
    %s30 = scalar_select %p27, %s29, %s18
    %p31 = scmp.ge.s32.totalorder %s30, 1
    %s32 = scalar_select %p31, 0, %s30
    %s33 = sadd.s32 1, %s17
    %s34 = scalar_select %p31, %s33, %s17
    %p35 = scmp.ge.s32.totalorder %s34, 2
    %s36 = scalar_select %p35, 0, %s34
    %s37 = ssub.s32 %s17, %s36
    %s38 = ssub.s32 %s18, %s32
    %s39 = sor.u32 %s37, %s38
    %s40 = ssub.s32 %s19, %s28
    %s41 = sor.u32 %s39, %s40
    %p42 = scmp.eq.s32.totalorder %s41, 0
    %s44 = sadd.s32 %s43, 1
    %s45 = scalar_select %p42, %s43, %s44
    %p48 = pneg %p42
    %p49 = scmp.eq.s32.totalorder %s10, 1
    %p50 = por %p48, %p49
    %p51 = scmp.ne.s32.totalorder %s43, %s46
    %p52 = scmp.eq.s32.totalorder %s10, 0
    %p53 = por %p51, %p52
    %p54 = scmp.ne.s32.totalorder %s43, %s46
    %p55 = scmp.eq.s32.totalorder %s15, 1
    %p56 = por %p54, %p55
    %p57 = scmp.ne.s32.totalorder %s46, %s47
    %p58 = scmp.eq.s32.totalorder %s15, 0
    %p59 = por %p57, %p58
    %p60 = scmp.ne.s32.totalorder %s46, %s47
    %p61 = scmp.eq.s32.totalorder %s16, 1
    %p62 = por %p60, %p61
    %p64 = scmp.ne.s32.totalorder %s47, %s63
    %p65 = scmp.eq.s32.totalorder %s16, 0
    %p66 = por %p64, %p65
    %s67 = ssub.s32 %s19, %s28
    %p68 = scmp.eq.s32.totalorder %s67, 0
    %s70 = sadd.s32 %s69, 1
    %s71 = scalar_select %p68, %s69, %s70
    %p74 = pneg %p68
    %p75 = scmp.eq.s32.totalorder %s10, 1
    %p76 = por %p74, %p75
    %p77 = scmp.ne.s32.totalorder %s69, %s72
    %p78 = scmp.eq.s32.totalorder %s10, 0
    %p79 = por %p77, %p78
    %p80 = scmp.ne.s32.totalorder %s69, %s72
    %p81 = scmp.eq.s32.totalorder %s15, 1
    %p82 = por %p80, %p81
    %p83 = scmp.ne.s32.totalorder %s72, %s73
    %p84 = scmp.eq.s32.totalorder %s15, 0
    %p85 = por %p83, %p84
    %p86 = scmp.ne.s32.totalorder %s72, %s73
    %p87 = scmp.eq.s32.totalorder %s16, 1
    %p88 = por %p86, %p87
    %p90 = scmp.ne.s32.totalorder %s73, %s89
    %p91 = scmp.eq.s32.totalorder %s16, 0
    %p92 = por %p90, %p91
    %s93 = ssub.s32 %s18, %s32
    %p94 = scmp.eq.s32.totalorder %s93, 0
    %s96 = sadd.s32 %s95, 1
    %s97 = scalar_select %p94, %s95, %s96
    %p100 = pneg %p94
    %p101 = scmp.eq.s32.totalorder %s10, 1
    %p102 = por %p100, %p101
    %p103 = scmp.ne.s32.totalorder %s95, %s98
    %p104 = scmp.eq.s32.totalorder %s10, 0
    %p105 = por %p103, %p104
    %p106 = scmp.ne.s32.totalorder %s95, %s98
    %p107 = scmp.eq.s32.totalorder %s15, 1
    %p108 = por %p106, %p107
    %p109 = scmp.ne.s32.totalorder %s98, %s99
    %p110 = scmp.eq.s32.totalorder %s15, 0
    %p111 = por %p109, %p110
    %p112 = scmp.ne.s32.totalorder %s98, %s99
    %p113 = scmp.eq.s32.totalorder %s16, 1
    %p114 = por %p112, %p113
    %p116 = scmp.ne.s32.totalorder %s99, %s115
    %p117 = scmp.eq.s32.totalorder %s16, 0
    %p118 = por %p116, %p117
    %s119 = ssub.s32 %s18, %s32
    %p120 = scmp.eq.s32.totalorder %s119, 0
    %s122 = sadd.s32 %s121, 1
    %s123 = scalar_select %p120, %s121, %s122
    %p126 = pneg %p120
    %p127 = scmp.eq.s32.totalorder %s10, 1
    %p128 = por %p126, %p127
    %p129 = scmp.ne.s32.totalorder %s121, %s124
    %p130 = scmp.eq.s32.totalorder %s10, 0
    %p131 = por %p129, %p130
    %p132 = scmp.ne.s32.totalorder %s121, %s124
    %p133 = scmp.eq.s32.totalorder %s15, 1
    %p134 = por %p132, %p133
    %p135 = scmp.ne.s32.totalorder %s124, %s125
    %p136 = scmp.eq.s32.totalorder %s15, 0
    %p137 = por %p135, %p136
    %p138 = scmp.ne.s32.totalorder %s124, %s125
    %p139 = scmp.eq.s32.totalorder %s16, 1
    %p140 = por %p138, %p139
    %p142 = scmp.ne.s32.totalorder %s125, %s141
    %p143 = scmp.eq.s32.totalorder %s16, 0
    %p144 = por %p142, %p143
    %s145 = ssub.s32 %s17, %s36
    %s146 = ssub.s32 %s18, %s32
    %s147 = sor.u32 %s145, %s146
    %p148 = scmp.eq.s32.totalorder %s147, 0
    %s150 = sadd.s32 %s149, 1
    %s151 = scalar_select %p148, %s149, %s150
    %p154 = pneg %p148
    %p155 = scmp.eq.s32.totalorder %s10, 1
    %p156 = por %p154, %p155
    %p157 = scmp.ne.s32.totalorder %s149, %s152
    %p158 = scmp.eq.s32.totalorder %s10, 0
    %p159 = por %p157, %p158
    %p160 = scmp.ne.s32.totalorder %s149, %s152
    %p161 = scmp.eq.s32.totalorder %s15, 1
    %p162 = por %p160, %p161
    %p163 = scmp.ne.s32.totalorder %s152, %s153
    %p164 = scmp.eq.s32.totalorder %s15, 0
    %p165 = por %p163, %p164
    %p166 = scmp.ne.s32.totalorder %s152, %s153
    %p167 = scmp.eq.s32.totalorder %s16, 1
    %p168 = por %p166, %p167
    %p170 = scmp.ne.s32.totalorder %s153, %s169
    %p171 = scmp.eq.s32.totalorder %s16, 0
    %p172 = por %p170, %p171
    %p173 = scmp.le.s32.totalorder 1, %s10
    %p174 = scmp.lt.s32.totalorder %s10, 3
    %p175 = pnand %p173, %p174
    %p176 = pneg %p175
    // Predicated region
    $region9: #{_lambda_.42} parent=5 // pred_check
      _
    $region10: #{_lambda_.42} parent=5 // pred_check_branch
      %178 = sbr.rel (%p175) target = $region12
    $region11: #{_lambda_.42} parent=5 // pred_region
      %s179 = ssub.s32 %s10, 1
      // Predicated region
      $region13: #{_lambda_.42} parent=11 // pred_check
        %p180 = pneg %p85
      $region14: #{_lambda_.42} parent=11 // pred_check_branch
        %182 = sbr.rel (%p180) target = $region16
      $region15: #{_lambda_.42} parent=11 // pred_region
        %s183 = smul.u32 4, %s22
        %p184 = scmp.lt.s32.totalorder %s183, 3
        %s185 = scalar_select %p184, %s183, 3
        %s186 = smul.addr %s185, 4
        %s187 = scalar_lea.vmem %s1, %s186
        %s188 = smul.u32 4, %s22
      $region16: #{_lambda_.42} parent=11 // pred_fallthru
        _
      // Predicated region
      $region17: #{_lambda_.42} parent=11 // pred_check
        %p189 = pneg %p111
      $region18: #{_lambda_.42} parent=11 // pred_check_branch
        %191 = sbr.rel (%p189) target = $region20
      $region19: #{_lambda_.42} parent=11 // pred_region
        %p192 = scmp.lt.s32.totalorder %s21, 0
        %s193 = scalar_select %p192, %s21, 0
        %s194 = smul.addr %s193, 8
        %s195 = scalar_lea.vmem %s2, %s194
      $region20: #{_lambda_.42} parent=11 // pred_fallthru
        _
      // Predicated region
      $region21: #{_lambda_.42} parent=11 // pred_check
        %p196 = pneg %p137
      $region22: #{_lambda_.42} parent=11 // pred_check_branch
        %198 = sbr.rel (%p196) target = $region24
      $region23: #{_lambda_.42} parent=11 // pred_region
        %p199 = scmp.lt.s32.totalorder %s21, 0
        %s200 = scalar_select %p199, %s21, 0
        %s201 = smul.addr %s200, 8
        %s202 = scalar_lea.vmem %s3, %s201
      $region24: #{_lambda_.42} parent=11 // pred_fallthru
        _
    $region12: #{_lambda_.42} parent=5 // pred_fallthru
      _
    %p203 = scmp.lt.s32.totalorder %s10, 2
    // Predicated region
    $region25: #{_lambda_.42} parent=5 // pred_check
      %p204 = pneg %p203
    $region26: #{_lambda_.42} parent=5 // pred_check_branch
      %206 = sbr.rel (%p204) target = $region28
    $region27: #{_lambda_.42} parent=5 // pred_region
      // Predicated region
      $region29: #{_lambda_.42} parent=27 // pred_check
        %p207 = pneg %p53
      $region30: #{_lambda_.42} parent=27 // pred_check_branch
        %209 = sbr.rel (%p207) target = $region32
      $region31: #{_lambda_.42} parent=27 // pred_region
        %p210 = scmp.lt.s32.totalorder %s17, 1
        %s211 = scalar_select %p210, %s17, 1
        %p212 = scmp.lt.s32.totalorder %s18, 0
        %s213 = scalar_select %p212, %s18, 0
        %p214 = scmp.lt.s32.totalorder %s19, 0
        %s215 = scalar_select %p214, %s19, 0
        %s216 = sadd.s32 %s215, %s213
        %s217 = sadd.s32 %s216, %s211
        %s218 = smul.addr %s217, 8
        %s219 = scalar_lea.vmem %s0, %s218
      $region32: #{_lambda_.42} parent=27 // pred_fallthru
        _
    $region28: #{_lambda_.42} parent=5 // pred_fallthru
      _
    %p220 = scmp.le.s32.totalorder 1, %s10
    %p221 = scmp.lt.s32.totalorder %s10, 3
    %p222 = pnand %p220, %p221
    %p223 = pneg %p222
    // Predicated region
    $region33: #{_lambda_.42} parent=5 // pred_check
      _
    $region34: #{_lambda_.42} parent=5 // pred_check_branch
      %225 = sbr.rel (%p222) target = $region36
    $region35: #{_lambda_.42} parent=5 // pred_region
      %s226 = ssub.s32 %s10, 1
      %p227 = scmp.lt.s32.totalorder %s20, 1
      %s228 = scalar_select %p227, %s20, 1
      %p229 = scmp.lt.s32.totalorder %s21, 0
      %s230 = scalar_select %p229, %s21, 0
      %p231 = scmp.lt.s32.totalorder %s22, 0
      %s232 = scalar_select %p231, %s22, 0
      %s233 = sadd.s32 %s232, %s230
      %s234 = sadd.s32 %s233, %s228
      %s235 = smul.addr %s234, 8
      %s236 = scalar_lea.vmem %s0, %s235
      %p237 = pneg %p59
      %p238 = pneg %p56
      %s239 = smul.u32 4, %s22
      %p240 = scmp.lt.s32.totalorder %s239, 3
      %s241 = scalar_select %p240, %s239, 3
      %s242 = smul.addr %s241, 4
      %s243 = scalar_lea.vmem %s1, %s242
      %p244 = pneg %p85
      %p245 = pneg %p82
      %p246 = scmp.lt.s32.totalorder %s21, 0
      %s247 = scalar_select %p246, %s21, 0
      %s248 = smul.addr %s247, 8
      %s249 = scalar_lea.vmem %s2, %s248
      %p250 = pneg %p111
      %p251 = pneg %p108
      %p252 = scmp.lt.s32.totalorder %s21, 0
      %s253 = scalar_select %p252, %s21, 0
      %s254 = smul.addr %s253, 8
      %s255 = scalar_lea.vmem %s3, %s254
      %p256 = pneg %p137
      %p257 = pneg %p134
      %p258 = pneg %p165
      %p259 = pneg %p162
      %p260 = scmp.lt.s32.totalorder %s20, 1
      %s261 = scalar_select %p260, %s20, 1
      %p262 = scmp.lt.s32.totalorder %s21, 0
      %s263 = scalar_select %p262, %s21, 0
      %s264 = sadd.s32 %s263, %s261
      %s265 = smul.addr %s264, 4
      %s266 = scalar_lea.vmem %s4, %s265
      %p267 = scmp.lt.s32.totalorder %s20, 1
      %s268 = scalar_select %p267, %s20, 1
      %p269 = scmp.lt.s32.totalorder %s21, 0
      %s270 = scalar_select %p269, %s21, 0
      %p271 = scmp.lt.s32.totalorder %s22, 0
      %s272 = scalar_select %p271, %s22, 0
      %s273 = sadd.s32 %s272, %s270
      %s274 = sadd.s32 %s273, %s268
      %s275 = smul.addr %s274, 8
      %s276 = scalar_lea.vmem %s0, %s275
      %s277 = smul.u32 4, %s22
      %p278 = scmp.lt.s32.totalorder %s277, 3
      %s279 = scalar_select %p278, %s277, 3
      %s280 = smul.addr %s279, 4
      %s281 = scalar_lea.vmem %s1, %s280
      %s282 = smul.u32 4, %s22
      %p283 = scmp.lt.s32.totalorder %s21, 0
      %s284 = scalar_select %p283, %s21, 0
      %s285 = smul.addr %s284, 8
      %s286 = scalar_lea.vmem %s2, %s285
      %p287 = scmp.lt.s32.totalorder %s21, 0
      %s288 = scalar_select %p287, %s21, 0
      %s289 = smul.addr %s288, 8
      %s290 = scalar_lea.vmem %s3, %s289
      %p291 = scmp.lt.s32.totalorder %s20, 1
      %s292 = scalar_select %p291, %s20, 1
      %p293 = scmp.lt.s32.totalorder %s21, 0
      %s294 = scalar_select %p293, %s21, 0
      %s295 = sadd.s32 %s294, %s292
      %s296 = smul.addr %s295, 4
      %s297 = scalar_lea.vmem %s4, %s296
      %p299 = scmp.eq.s32.totalorder %s22, 0
      // Predicated region
      $region37: #{_lambda_.42} parent=35 // pred_check
        %p300 = pneg %p299
      $region38: #{_lambda_.42} parent=35 // pred_check_branch
        %302 = sbr.rel (%p300) target = $region40
      $region39: #{_lambda_.42} parent=35 // pred_region
        %vm303 = vcmask 261120
        %304 = vst.msk [vmem:[#allocation2] sm:$0xff] %vm303, 0.0
      $region40: #{_lambda_.42} parent=35 // pred_fallthru
        _
      %v305 = vld [vmem:[#allocation2] sm:$0xff]
      %v306 = vld [vmem:[%s276] sm:$0xff]
      %v307 = vpack.c.bf16 %v306, %v306
      %v308 = vld [vmem:[%s281] sm:$0xf]
      %v309 = vld [vmem:[%s281 + $0x4] sm:$0xf]
      %v310 = vld [vmem:[%s281 + $0x8] sm:$0xf]
      %v311 = vld [vmem:[%s281 + $0xc] sm:$0xf]
      %v316 = vunpack.c.l.b16 %v308
      %v317 = vunpack.c.l.b16 %v309
      %v318 = vunpack.c.l.b16 %v310
      %v319 = vunpack.c.l.b16 %v311
      %v320 = vpack.c.b16 %v317, %v316
      %v321 = vpack.c.b16 %v319, %v318
      %vm324 = vcmask 261120
      %v326 = vsel %vm324, %v307, 0
      %328 = vmatpush.bf16.msra.mxu0 0
      %329 = vmatpush.bf16.msra.mxu0 0
      %330 = vmatpush.bf16.msra.mxu0 0
      %331 = vmatpush.bf16.msra.mxu0 0
      %332 = vmatpush.bf16.msra.mxu0 0
      %333 = vmatpush.bf16.msra.mxu0 0
      %334 = vmatpush.bf16.msra.mxu0 %v321
      %335 = vmatpush.bf16.msra.mxu0 %v320
      %336 = vmatmul.bf16.gmra.mxu0 %v326
      %v337 = vpop.f32.mrf.mxu0
      %v338 = vadd.f32 0.0, %v337
      %v339 = vpop.f32.mrf.mxu0
      %340 = vdwg.mxu0
      %v341 = vadd.f32 %v305, %v338
      %342 = vst.msk [vmem:[#allocation2] sm:$0xff] %vm324, %v341
      // Predicated region
      $region41: #{_lambda_.42} parent=35 // pred_check
        %p343 = pneg %p299
      $region42: #{_lambda_.42} parent=35 // pred_check_branch
        %345 = sbr.rel (%p343) target = $region44
      $region43: #{_lambda_.42} parent=35 // pred_region
        %v346 = vld [vmem:[#allocation2] sm:$0xff]
        %v347 = vld [vmem:[%s286] sm:$0xff]
        %v348 = vld [vmem:[%s290] sm:$0xff]
        %v349 = vmul.f32 %v346, %v347
        %351 = vrot.lane.b32.xlu0 %v348, 16
        %v352 = vpop.permute.xlu0 %351
        %v354 = vmul.f32 %v346, %v352
        %356 = vrot.lane.b32.xlu0 %v354, 112
        %v357 = vpop.permute.xlu0 %356
        %v359 = vsub.f32 %v349, %v357
        %361 = vrot.lane.b32.xlu0 %v347, 16
        %v362 = vpop.permute.xlu0 %361
        %v364 = vmul.f32 %v346, %v362
        %v365 = vmul.f32 %v346, %v348
        %367 = vrot.lane.b32.xlu0 %v365, 16
        %v368 = vpop.permute.xlu0 %367
        %v370 = vadd.f32 %v364, %v368
        %vm371 = vcmask 130048
        %v372 = vsel %vm371, %v359, %v370
        %v373 = vpack.c.bf16 %v372, %v372
        %vm374 = vcmask 257024
        %375 = vst.msk [vmem:[%s297] sm:$0xf] %vm374, %v373
      $region44: #{_lambda_.42} parent=35 // pred_fallthru
        _
      %p376 = scmp.lt.s32.totalorder %s20, 1
      %s377 = scalar_select %p376, %s20, 1
      %p378 = scmp.lt.s32.totalorder %s21, 0
      %s379 = scalar_select %p378, %s21, 0
      %s380 = sadd.s32 %s379, %s377
      %s381 = smul.addr %s380, 4
      %s382 = scalar_lea.vmem %s4, %s381
      // Predicated region
      $region45: #{_lambda_.42} parent=35 // pred_check
        %p383 = pneg %p162
      $region46: #{_lambda_.42} parent=35 // pred_check_branch
        %385 = sbr.rel (%p383) target = $region48
      $region47: #{_lambda_.42} parent=35 // pred_region
        _
      $region48: #{_lambda_.42} parent=35 // pred_fallthru
        _
    $region36: #{_lambda_.42} parent=5 // pred_fallthru
      _
    %p386 = scmp.le.s32.totalorder 2, %s10
    // Predicated region
    $region49: #{_lambda_.42} parent=5 // pred_check
      %p387 = pneg %p386
    $region50: #{_lambda_.42} parent=5 // pred_check_branch
      %389 = sbr.rel (%p387) target = $region52
    $region51: #{_lambda_.42} parent=5 // pred_region
      %s390 = ssub.s32 %s10, 2
      // Predicated region
      $region53: #{_lambda_.42} parent=51 // pred_check
        %p391 = pneg %p168
      $region54: #{_lambda_.42} parent=51 // pred_check_branch
        %393 = sbr.rel (%p391) target = $region56
      $region55: #{_lambda_.42} parent=51 // pred_region
        %p394 = scmp.lt.s32.totalorder %s23, 1
        %s395 = scalar_select %p394, %s23, 1
        %p396 = scmp.lt.s32.totalorder %s24, 0
        %s397 = scalar_select %p396, %s24, 0
        %s398 = sadd.s32 %s397, %s395
        %s399 = smul.addr %s398, 4
        %s400 = scalar_lea.vmem %s4, %s399
      $region56: #{_lambda_.42} parent=51 // pred_fallthru
        _
    $region52: #{_lambda_.42} parent=5 // pred_fallthru
      _
  $region6: #{_lambda_.42} parent=0 // loop_footer
    %s14 = sadd.s32 1, %s10
  $region7: #{_lambda_.42} parent=0 // loop_footer_branch
    %9 = sbr.rel target = $region3
  $region8: #{_lambda_.42} parent=0 // loop_exit
    _

// kernel: _lambda_.41
$region0: #{_lambda_.41}
  #allocation0 [shape = 'u32[]', space=smem, size = 0x4, offset = 0x4, fixed_abs, tag = 'smem constant byte address 0x4 - core index']
  #allocation1 [shape = 'u32[72,128]{1,0:T(1,128)}', space=vmem, size = 0x9000, scoped, tag = 'internal scratch']
  #allocation2 [shape = 'f32[16,32]{1,0:T(8,128)}', space=vmem, size = 0x2000, scoped, tag = 'scratch operand']
  %s0 = inlined_call_operand.vmem [shape: bf16[16,32], index: 0, kind: input, shape index: {}]
  %s1 = inlined_call_operand.vmem [shape: bf16[32,32], index: 1, kind: input, shape index: {}]
  %s2 = inlined_call_operand.vmem [shape: f32[1,32], index: 2, kind: input, shape index: {}]
  %s3 = inlined_call_operand.vmem [shape: f32[16,32], index: 3, kind: input, shape index: {}]
  %s4 = inlined_call_operand.vmem [shape: f32[1,32], index: 4, kind: input, shape index: {}]
  %s5 = inlined_call_operand.vmem [shape: f32[1,32], index: 5, kind: input, shape index: {}]
  %s6 = inlined_call_operand.vmem [shape: f32[16,32], index: 6, kind: output, shape index: {}]
  %s7 = sld [smem:[#allocation0]]
  $region42: #{_lambda_.41} parent=0
    _
  %s9 = ssub.s32 1, %s7
  %s10 = scalar_select 0, %s9, %s7
  // Predicated region
  $region2: #{_lambda_.41} parent=0 // pred_check
    _
  $region3: #{_lambda_.41} parent=0 // pred_check_branch
    %12 = sbr.rel (0) target = $region5
  $region4: #{_lambda_.41} parent=0 // pred_region
    _
  $region5: #{_lambda_.41} parent=0 // pred_fallthru
    _
  // Predicated region
  $region6: #{_lambda_.41} parent=0 // pred_check
    _
  $region7: #{_lambda_.41} parent=0 // pred_check_branch
    %14 = sbr.rel (0) target = $region9
  $region8: #{_lambda_.41} parent=0 // pred_region
    _
  $region9: #{_lambda_.41} parent=0 // pred_fallthru
    _
  // Predicated region
  $region10: #{_lambda_.41} parent=0 // pred_check
    _
  $region11: #{_lambda_.41} parent=0 // pred_check_branch
    %16 = sbr.rel (0) target = $region13
  $region12: #{_lambda_.41} parent=0 // pred_region
    _
  $region13: #{_lambda_.41} parent=0 // pred_fallthru
    _
  // Predicated region
  $region14: #{_lambda_.41} parent=0 // pred_check
    _
  $region15: #{_lambda_.41} parent=0 // pred_check_branch
    %18 = sbr.rel (0) target = $region17
  $region16: #{_lambda_.41} parent=0 // pred_region
    _
  $region17: #{_lambda_.41} parent=0 // pred_fallthru
    _
  // Predicated region
  $region18: #{_lambda_.41} parent=0 // pred_check
    _
  $region19: #{_lambda_.41} parent=0 // pred_check_branch
    %20 = sbr.rel (0) target = $region21
  $region20: #{_lambda_.41} parent=0 // pred_region
    _
  $region21: #{_lambda_.41} parent=0 // pred_fallthru
    _
  // Predicated region
  $region22: #{_lambda_.41} parent=0 // pred_check
    _
  $region23: #{_lambda_.41} parent=0 // pred_check_branch
    %22 = sbr.rel (0) target = $region25
  $region24: #{_lambda_.41} parent=0 // pred_region
    _
  $region25: #{_lambda_.41} parent=0 // pred_fallthru
    _
  %p24 = scmp.eq.s32.totalorder 0, 0
  // Predicated region
  $region26: #{_lambda_.41} parent=0 // pred_check
    %p25 = pneg %p24
  $region27: #{_lambda_.41} parent=0 // pred_check_branch
    %27 = sbr.rel (%p25) target = $region29
  $region28: #{_lambda_.41} parent=0 // pred_region
    %vm28 = vcmask 261120
    %29 = vst.msk [vmem:[#allocation2] sm:$0xff] %vm28, 0.0
    %30 = vst.msk [vmem:[#allocation2 + $0x8] sm:$0xff] %vm28, 0.0
  $region29: #{_lambda_.41} parent=0 // pred_fallthru
    _
  %v31 = vld [vmem:[#allocation2] sm:$0xff]
  %v32 = vld [vmem:[#allocation2 + $0x8] sm:$0xff]
  %v33 = vld [vmem:[%s0] sm:$0xf]
  %v34 = vld [vmem:[%s0 + $0x4] sm:$0xf]
  %v35 = vld [vmem:[%s1] sm:$0xf]
  %v36 = vld [vmem:[%s1 + $0x4] sm:$0xf]
  %v37 = vld [vmem:[%s1 + $0x8] sm:$0xf]
  %v38 = vld [vmem:[%s1 + $0xc] sm:$0xf]
  %v41 = vunpack.c.l.b16 %v33
  %v42 = vunpack.c.l.b16 %v34
  %v43 = vpack.c.b16 %v42, %v41
  %v48 = vunpack.c.l.b16 %v35
  %v49 = vunpack.c.l.b16 %v36
  %v50 = vunpack.c.l.b16 %v37
  %v51 = vunpack.c.l.b16 %v38
  %v52 = vpack.c.b16 %v49, %v48
  %v53 = vpack.c.b16 %v51, %v50
  %vm56 = vcmask 261120
  %v58 = vsel %vm56, %v43, 0
  %60 = vmatpush.bf16.msra.mxu0 0
  %61 = vmatpush.bf16.msra.mxu0 0
  %62 = vmatpush.bf16.msra.mxu0 0
  %63 = vmatpush.bf16.msra.mxu0 0
  %64 = vmatpush.bf16.msra.mxu0 0
  %65 = vmatpush.bf16.msra.mxu0 0
  %66 = vmatpush.bf16.msra.mxu0 %v53
  %67 = vmatpush.bf16.msra.mxu0 %v52
  %68 = vmatmul.bf16.gmra.mxu0 %v58
  %v69 = vpop.f32.mrf.mxu0
  %v70 = vadd.f32 0.0, %v69
  %v71 = vpop.f32.mrf.mxu0
  %v72 = vadd.f32 0.0, %v71
  %73 = vdwg.mxu0
  %v74 = vadd.f32 %v31, %v70
  %v75 = vadd.f32 %v32, %v72
  %76 = vst.msk [vmem:[#allocation2] sm:$0xff] %vm56, %v74
  %77 = vst.msk [vmem:[#allocation2 + $0x8] sm:$0xff] %vm56, %v75
  // Predicated region
  $region30: #{_lambda_.41} parent=0 // pred_check
    %p78 = pneg %p24
  $region31: #{_lambda_.41} parent=0 // pred_check_branch
    %80 = sbr.rel (%p78) target = $region33
  $region32: #{_lambda_.41} parent=0 // pred_region
    %v81 = vld [vmem:[#allocation2] sm:$0xff]
    %v82 = vld [vmem:[#allocation2 + $0x8] sm:$0xff]
    %v83 = vld [vmem:[%s2] sm:$0x1]
    %v85 = vperm.slane %v83, 0
    %v87 = vadd.f32 %v81, %v85
    %v88 = vadd.f32 %v82, %v85
    %v89 = vld [vmem:[%s3] sm:$0xff]
    %v90 = vld [vmem:[%s3 + $0x8] sm:$0xff]
    %v91 = vadd.f32 %v87, %v89
    %v92 = vadd.f32 %v88, %v90
    %v93 = vsel %vm56, %v91, 0.0
    %94 = vadd.xlane.f32.xlu0 %v93
    %v95 = vpop.xlane.xlu0 %94
    %v96 = vsel %vm56, %v92, 0.0
    %97 = vadd.xlane.f32.xlu0 %v96
    %v98 = vpop.xlane.xlu0 %97
    %v99 = vrcp.pop 32.0
    %v100 = vmul.f32 32.0, %v99
    %v101 = vsub.f32 1.0, %v100
    %v102 = vmul.f32 %v99, %v101
    %v103 = vadd.f32 %v99, %v102
    %vm104 = vweird.f32 %v99
    %v105 = vsel %vm104, %v99, %v103
    %v106 = vmul.f32 %v95, %v105
    %v107 = vmul.f32 %v98, %v105
    %v108 = vsub.f32 %v91, %v106
    %v109 = vsub.f32 %v92, %v107
    %v110 = vmul.f32 %v108, %v108
    %v111 = vmul.f32 %v109, %v109
    %v112 = vsel %vm56, %v110, 0.0
    %113 = vadd.xlane.f32.xlu0 %v112
    %v114 = vpop.xlane.xlu0 %113
    %v115 = vsel %vm56, %v111, 0.0
    %116 = vadd.xlane.f32.xlu0 %v115
    %v117 = vpop.xlane.xlu0 %116
    %v118 = vmul.f32 %v114, %v105
    %v119 = vmul.f32 %v117, %v105
    %v120 = vadd.f32 %v118, 1e-06
    %v121 = vadd.f32 %v119, 1e-06
    %v122 = vrsqrt.pop %v120
    %v123 = vmul.f32 %v122, %v120
    %v124 = vmul.f32 %v123, %v122
    %v125 = vmul.f32 0.5, %v124
    %v126 = vsub.f32 1.5, %v125
    %v127 = vmul.f32 %v122, %v126
    %vm128 = vweird.f32 %v120
    %vm129 = vweird.f32 %v122
    %vm130 = vmor %vm128, %vm129
    %v131 = vsel %vm130, %v122, %v127
    %v132 = vrsqrt.pop %v121
    %v133 = vmul.f32 %v132, %v121
    %v134 = vmul.f32 %v133, %v132
    %v135 = vmul.f32 0.5, %v134
    %v136 = vsub.f32 1.5, %v135
    %v137 = vmul.f32 %v132, %v136
    %vm138 = vweird.f32 %v121
    %vm139 = vweird.f32 %v132
    %vm140 = vmor %vm138, %vm139
    %v141 = vsel %vm140, %v132, %v137
    %v142 = vmul.f32 %v108, %v131
    %v143 = vmul.f32 %v109, %v141
    %v144 = vld [vmem:[%s4] sm:$0x1]
    %v146 = vperm.slane %v144, 0
    %v148 = vmul.f32 %v142, %v146
    %v149 = vmul.f32 %v143, %v146
    %v150 = vld [vmem:[%s5] sm:$0x1]
    %v152 = vperm.slane %v150, 0
    %v154 = vadd.f32 %v148, %v152
    %v155 = vadd.f32 %v149, %v152
    %156 = vst.msk [vmem:[%s6] sm:$0xff] %vm56, %v154
    %157 = vst.msk [vmem:[%s6 + $0x8] sm:$0xff] %vm56, %v155
  $region33: #{_lambda_.41} parent=0 // pred_fallthru
    _
  // Predicated region
  $region34: #{_lambda_.41} parent=0 // pred_check
    _
  $region35: #{_lambda_.41} parent=0 // pred_check_branch
    %159 = sbr.rel (0) target = $region37
  $region36: #{_lambda_.41} parent=0 // pred_region
    _
  $region37: #{_lambda_.41} parent=0 // pred_fallthru
    _
  // Predicated region
  $region38: #{_lambda_.41} parent=0 // pred_check
    _
  $region39: #{_lambda_.41} parent=0 // pred_check_branch
    %161 = sbr.rel (0) target = $region41
  $region40: #{_lambda_.41} parent=0 // pred_region
    _
  $region41: #{_lambda_.41} parent=0 // pred_fallthru
    _

// kernel: _lambda_.30
$region0: #{_lambda_.30}
  #allocation0 [shape = 'u32[]', space=smem, size = 0x4, offset = 0x4, fixed_abs, tag = 'smem constant byte address 0x4 - core index']
  #allocation1 [shape = 'u32[72,128]{1,0:T(1,128)}', space=vmem, size = 0x9000, scoped, tag = 'internal scratch']
  %s0 = inlined_call_operand.vmem [shape: bf16[2,4,8,8], index: 0, kind: input, shape index: {}]
  %s1 = inlined_call_operand.vmem [shape: bf16[2,4,8,8], index: 1, kind: input, shape index: {}]
  %s2 = inlined_call_operand.vmem [shape: bf16[2,4,8,8], index: 2, kind: input, shape index: {}]
  %s3 = inlined_call_operand.vmem [shape: f32[2,1,8], index: 3, kind: input, shape index: {}]
  %s4 = inlined_call_operand.vmem [shape: bf16[2,4,8,8], index: 4, kind: output, shape index: {0}]
  %s5 = inlined_call_operand.hbm [shape: f32[2,4,8,8], index: 5, kind: output, shape index: {1}]
  %6 = xla_tuple %s4, %s5
  %s7 = sld [smem:[#allocation0]]
  $region57: #{_lambda_.30} parent=0
    _
  %s9 = ssub.s32 1, %s7
  %s10 = scalar_select 0, %s9, %s7
  $region1: #{_lambda_.30} parent=0
    #allocation2 [shape = 'u8[8192]{0}', space=vmem, size = 0x2000, scoped, tag = 'output window, operand 1']
    #allocation3 [shape = 's32[2]{0}', space=sflag, size = 0x8, scoped, tag = 'scoped memory for _lambda_.30']
    %11 = vsyncpa [#allocation3], 0
    %s12 = scalar_lea.sflag [#allocation3], 1
    %13 = vsyncpa %s12, 0
    loop: start=0, step=1, limit=10
    $region2: #{_lambda_.30} parent=1 // loop_pre_header
      _
    $region3: #{_lambda_.30} parent=1 // loop_header
      %s15 = sphi 0, %s19
      %p16 = scmp.ge.s32.totalorder %s15, 10
      %s22 = sphi 0, %s41
      %s23 = sphi 0, %s37
      %s24 = sphi 0, %s33
      %s25 = sphi 0, %s22
      %s26 = sphi 0, %s23
      %s27 = sphi 0, %s24
      %s28 = sphi 0, %s25
      %s29 = sphi 0, %s26
      %s30 = sphi 0, %s27
      %s48 = sphi 0, %s50
      %s51 = sphi 0, %s48
      %s52 = sphi 0, %s51
      %s68 = sphi 0, %s52
      %s76 = sphi 0, %s78
      %s79 = sphi 0, %s76
      %s80 = sphi 0, %s79
      %s96 = sphi 0, %s80
      %s104 = sphi 0, %s106
      %s107 = sphi 0, %s104
      %s108 = sphi 0, %s107
      %s124 = sphi 0, %s108
      %s130 = sphi 0, %s132
      %s133 = sphi 0, %s130
      %s134 = sphi 0, %s133
      %s150 = sphi 0, %s134
      %s160 = sphi 0, %s162
      %s163 = sphi 0, %s160
      %s164 = sphi 0, %s163
      %s180 = sphi 0, %s164
      %s190 = sphi 0, %s192
      %s193 = sphi 0, %s190
      %s194 = sphi 0, %s193
      %s210 = sphi 0, %s194
    $region4: #{_lambda_.30} parent=1 // loop_header_branch
      %18 = sbr.rel (%p16) target = $region8
    $region5: #{_lambda_.30} parent=1 // loop_body
      %s20 = ssub.s32 %s15, 1
      %s21 = ssub.s32 %s15, 2
      %s31 = sadd.s32 1, %s24
      %p32 = scmp.ge.s32.totalorder %s31, 1
      %s33 = scalar_select %p32, 0, %s31
      %s34 = sadd.s32 1, %s23
      %s35 = scalar_select %p32, %s34, %s23
      %p36 = scmp.ge.s32.totalorder %s35, 4
      %s37 = scalar_select %p36, 0, %s35
      %s38 = sadd.s32 1, %s22
      %s39 = scalar_select %p36, %s38, %s22
      %p40 = scmp.ge.s32.totalorder %s39, 2
      %s41 = scalar_select %p40, 0, %s39
      %s42 = ssub.s32 %s22, %s41
      %s43 = ssub.s32 %s23, %s37
      %s44 = sor.u32 %s42, %s43
      %s45 = ssub.s32 %s24, %s33
      %s46 = sor.u32 %s44, %s45
      %p47 = scmp.eq.s32.totalorder %s46, 0
      %s49 = sadd.s32 %s48, 1
      %s50 = scalar_select %p47, %s48, %s49
      %p53 = pneg %p47
      %p54 = scmp.eq.s32.totalorder %s15, 7
      %p55 = por %p53, %p54
      %p56 = scmp.ne.s32.totalorder %s48, %s51
      %p57 = scmp.eq.s32.totalorder %s15, 0
      %p58 = por %p56, %p57
      %p59 = scmp.ne.s32.totalorder %s48, %s51
      %p60 = scmp.eq.s32.totalorder %s20, 7
      %p61 = por %p59, %p60
      %p62 = scmp.ne.s32.totalorder %s51, %s52
      %p63 = scmp.eq.s32.totalorder %s20, 0
      %p64 = por %p62, %p63
      %p65 = scmp.ne.s32.totalorder %s51, %s52
      %p66 = scmp.eq.s32.totalorder %s21, 7
      %p67 = por %p65, %p66
      %p69 = scmp.ne.s32.totalorder %s52, %s68
      %p70 = scmp.eq.s32.totalorder %s21, 0
      %p71 = por %p69, %p70
      %s72 = ssub.s32 %s22, %s41
      %s73 = ssub.s32 %s23, %s37
      %s74 = sor.u32 %s72, %s73
      %p75 = scmp.eq.s32.totalorder %s74, 0
      %s77 = sadd.s32 %s76, 1
      %s78 = scalar_select %p75, %s76, %s77
      %p81 = pneg %p75
      %p82 = scmp.eq.s32.totalorder %s15, 7
      %p83 = por %p81, %p82
      %p84 = scmp.ne.s32.totalorder %s76, %s79
      %p85 = scmp.eq.s32.totalorder %s15, 0
      %p86 = por %p84, %p85
      %p87 = scmp.ne.s32.totalorder %s76, %s79
      %p88 = scmp.eq.s32.totalorder %s20, 7
      %p89 = por %p87, %p88
      %p90 = scmp.ne.s32.totalorder %s79, %s80
      %p91 = scmp.eq.s32.totalorder %s20, 0
      %p92 = por %p90, %p91
      %p93 = scmp.ne.s32.totalorder %s79, %s80
      %p94 = scmp.eq.s32.totalorder %s21, 7
      %p95 = por %p93, %p94
      %p97 = scmp.ne.s32.totalorder %s80, %s96
      %p98 = scmp.eq.s32.totalorder %s21, 0
      %p99 = por %p97, %p98
      %s100 = ssub.s32 %s22, %s41
      %s101 = ssub.s32 %s23, %s37
      %s102 = sor.u32 %s100, %s101
      %p103 = scmp.eq.s32.totalorder %s102, 0
      %s105 = sadd.s32 %s104, 1
      %s106 = scalar_select %p103, %s104, %s105
      %p109 = pneg %p103
      %p110 = scmp.eq.s32.totalorder %s15, 7
      %p111 = por %p109, %p110
      %p112 = scmp.ne.s32.totalorder %s104, %s107
      %p113 = scmp.eq.s32.totalorder %s15, 0
      %p114 = por %p112, %p113
      %p115 = scmp.ne.s32.totalorder %s104, %s107
      %p116 = scmp.eq.s32.totalorder %s20, 7
      %p117 = por %p115, %p116
      %p118 = scmp.ne.s32.totalorder %s107, %s108
      %p119 = scmp.eq.s32.totalorder %s20, 0
      %p120 = por %p118, %p119
      %p121 = scmp.ne.s32.totalorder %s107, %s108
      %p122 = scmp.eq.s32.totalorder %s21, 7
      %p123 = por %p121, %p122
      %p125 = scmp.ne.s32.totalorder %s108, %s124
      %p126 = scmp.eq.s32.totalorder %s21, 0
      %p127 = por %p125, %p126
      %s128 = ssub.s32 %s22, %s41
      %p129 = scmp.eq.s32.totalorder %s128, 0
      %s131 = sadd.s32 %s130, 1
      %s132 = scalar_select %p129, %s130, %s131
      %p135 = pneg %p129
      %p136 = scmp.eq.s32.totalorder %s15, 7
      %p137 = por %p135, %p136
      %p138 = scmp.ne.s32.totalorder %s130, %s133
      %p139 = scmp.eq.s32.totalorder %s15, 0
      %p140 = por %p138, %p139
      %p141 = scmp.ne.s32.totalorder %s130, %s133
      %p142 = scmp.eq.s32.totalorder %s20, 7
      %p143 = por %p141, %p142
      %p144 = scmp.ne.s32.totalorder %s133, %s134
      %p145 = scmp.eq.s32.totalorder %s20, 0
      %p146 = por %p144, %p145
      %p147 = scmp.ne.s32.totalorder %s133, %s134
      %p148 = scmp.eq.s32.totalorder %s21, 7
      %p149 = por %p147, %p148
      %p151 = scmp.ne.s32.totalorder %s134, %s150
      %p152 = scmp.eq.s32.totalorder %s21, 0
      %p153 = por %p151, %p152
      %s154 = ssub.s32 %s22, %s41
      %s155 = ssub.s32 %s23, %s37
      %s156 = sor.u32 %s154, %s155
      %s157 = ssub.s32 %s24, %s33
      %s158 = sor.u32 %s156, %s157
      %p159 = scmp.eq.s32.totalorder %s158, 0
      %s161 = sadd.s32 %s160, 1
      %s162 = scalar_select %p159, %s160, %s161
      %p165 = pneg %p159
      %p166 = scmp.eq.s32.totalorder %s15, 7
      %p167 = por %p165, %p166
      %p168 = scmp.ne.s32.totalorder %s160, %s163
      %p169 = scmp.eq.s32.totalorder %s15, 0
      %p170 = por %p168, %p169
      %p171 = scmp.ne.s32.totalorder %s160, %s163
      %p172 = scmp.eq.s32.totalorder %s20, 7
      %p173 = por %p171, %p172
      %p174 = scmp.ne.s32.totalorder %s163, %s164
      %p175 = scmp.eq.s32.totalorder %s20, 0
      %p176 = por %p174, %p175
      %p177 = scmp.ne.s32.totalorder %s163, %s164
      %p178 = scmp.eq.s32.totalorder %s21, 7
      %p179 = por %p177, %p178
      %p181 = scmp.ne.s32.totalorder %s164, %s180
      %p182 = scmp.eq.s32.totalorder %s21, 0
      %p183 = por %p181, %p182
      %s184 = ssub.s32 %s22, %s41
      %s185 = ssub.s32 %s23, %s37
      %s186 = sor.u32 %s184, %s185
      %s187 = ssub.s32 %s24, %s33
      %s188 = sor.u32 %s186, %s187
      %p189 = scmp.eq.s32.totalorder %s188, 0
      %s191 = sadd.s32 %s190, 1
      %s192 = scalar_select %p189, %s190, %s191
      %p195 = pneg %p189
      %p196 = scmp.eq.s32.totalorder %s15, 7
      %p197 = por %p195, %p196
      %p198 = scmp.ne.s32.totalorder %s190, %s193
      %p199 = scmp.eq.s32.totalorder %s15, 0
      %p200 = por %p198, %p199
      %p201 = scmp.ne.s32.totalorder %s190, %s193
      %p202 = scmp.eq.s32.totalorder %s20, 7
      %p203 = por %p201, %p202
      %p204 = scmp.ne.s32.totalorder %s193, %s194
      %p205 = scmp.eq.s32.totalorder %s20, 0
      %p206 = por %p204, %p205
      %p207 = scmp.ne.s32.totalorder %s193, %s194
      %p208 = scmp.eq.s32.totalorder %s21, 7
      %p209 = por %p207, %p208
      %p211 = scmp.ne.s32.totalorder %s194, %s210
      %p212 = scmp.eq.s32.totalorder %s21, 0
      %p213 = por %p211, %p212
      %p214 = scmp.le.s32.totalorder 1, %s15
      %p215 = scmp.lt.s32.totalorder %s15, 9
      %p216 = pnand %p214, %p215
      %p217 = pneg %p216
      // Predicated region
      $region9: #{_lambda_.30} parent=5 // pred_check
        _
      $region10: #{_lambda_.30} parent=5 // pred_check_branch
        %219 = sbr.rel (%p216) target = $region12
      $region11: #{_lambda_.30} parent=5 // pred_region
        %s220 = ssub.s32 %s15, 1
      $region12: #{_lambda_.30} parent=5 // pred_fallthru
        _
      %p221 = scmp.lt.s32.totalorder %s15, 8
      // Predicated region
      $region13: #{_lambda_.30} parent=5 // pred_check
        %p222 = pneg %p221
      $region14: #{_lambda_.30} parent=5 // pred_check_branch
        %224 = sbr.rel (%p222) target = $region16
      $region15: #{_lambda_.30} parent=5 // pred_region
        // Predicated region
        $region17: #{_lambda_.30} parent=15 // pred_check
          %p225 = pneg %p58
        $region18: #{_lambda_.30} parent=15 // pred_check_branch
          %227 = sbr.rel (%p225) target = $region20
        $region19: #{_lambda_.30} parent=15 // pred_region
          %p228 = scmp.lt.s32.totalorder %s22, 1
          %s229 = scalar_select %p228, %s22, 1
          %p230 = scmp.lt.s32.totalorder %s23, 3
          %s231 = scalar_select %p230, %s23, 3
          %p232 = scmp.lt.s32.totalorder %s24, 0
          %s233 = scalar_select %p232, %s24, 0
          %s234 = sadd.s32 %s233, %s231
          %s235 = smul.addr %s229, 4
          %s236 = sadd.s32 %s234, %s235
          %s237 = smul.addr %s236, 4
          %s238 = scalar_lea.vmem %s0, %s237
        $region20: #{_lambda_.30} parent=15 // pred_fallthru
          _
        // Predicated region
        $region21: #{_lambda_.30} parent=15 // pred_check
          %p239 = pneg %p86
        $region22: #{_lambda_.30} parent=15 // pred_check_branch
          %241 = sbr.rel (%p239) target = $region24
        $region23: #{_lambda_.30} parent=15 // pred_region
          %p242 = scmp.lt.s32.totalorder %s22, 1
          %s243 = scalar_select %p242, %s22, 1
          %p244 = scmp.lt.s32.totalorder %s23, 3
          %s245 = scalar_select %p244, %s23, 3
          %s246 = smul.addr %s243, 4
          %s247 = sadd.s32 %s245, %s246
          %s248 = smul.addr %s247, 4
          %s249 = scalar_lea.vmem %s1, %s248
        $region24: #{_lambda_.30} parent=15 // pred_fallthru
          _
        // Predicated region
        $region25: #{_lambda_.30} parent=15 // pred_check
          %p250 = pneg %p114
        $region26: #{_lambda_.30} parent=15 // pred_check_branch
          %252 = sbr.rel (%p250) target = $region28
        $region27: #{_lambda_.30} parent=15 // pred_region
          %p253 = scmp.lt.s32.totalorder %s22, 1
          %s254 = scalar_select %p253, %s22, 1
          %p255 = scmp.lt.s32.totalorder %s23, 3
          %s256 = scalar_select %p255, %s23, 3
          %s257 = smul.addr %s254, 4
          %s258 = sadd.s32 %s256, %s257
          %s259 = smul.addr %s258, 4
          %s260 = scalar_lea.vmem %s2, %s259
        $region28: #{_lambda_.30} parent=15 // pred_fallthru
          _
        // Predicated region
        $region29: #{_lambda_.30} parent=15 // pred_check
          %p261 = pneg %p140
        $region30: #{_lambda_.30} parent=15 // pred_check_branch
          %263 = sbr.rel (%p261) target = $region32
        $region31: #{_lambda_.30} parent=15 // pred_region
          %p264 = scmp.lt.s32.totalorder %s22, 1
          %s265 = scalar_select %p264, %s22, 1
          %s266 = scalar_lea.vmem %s3, %s265
        $region32: #{_lambda_.30} parent=15 // pred_fallthru
          _
      $region16: #{_lambda_.30} parent=5 // pred_fallthru
        _
      %p267 = scmp.le.s32.totalorder 1, %s15
      %p268 = scmp.lt.s32.totalorder %s15, 9
      %p269 = pnand %p267, %p268
      %p270 = pneg %p269
      // Predicated region
      $region33: #{_lambda_.30} parent=5 // pred_check
        _
      $region34: #{_lambda_.30} parent=5 // pred_check_branch
        %272 = sbr.rel (%p269) target = $region36
      $region35: #{_lambda_.30} parent=5 // pred_region
        %s273 = ssub.s32 %s15, 1
        %p274 = scmp.lt.s32.totalorder %s25, 1
        %s275 = scalar_select %p274, %s25, 1
        %p276 = scmp.lt.s32.totalorder %s26, 3
        %s277 = scalar_select %p276, %s26, 3
        %p278 = scmp.lt.s32.totalorder %s27, 0
        %s279 = scalar_select %p278, %s27, 0
        %s280 = sadd.s32 %s279, %s277
        %s281 = smul.addr %s275, 4
        %s282 = sadd.s32 %s280, %s281
        %s283 = smul.addr %s282, 4
        %s284 = scalar_lea.vmem %s0, %s283
        %p285 = pneg %p64
        %p286 = pneg %p61
        %p287 = scmp.lt.s32.totalorder %s25, 1
        %s288 = scalar_select %p287, %s25, 1
        %p289 = scmp.lt.s32.totalorder %s26, 3
        %s290 = scalar_select %p289, %s26, 3
        %s291 = smul.addr %s288, 4
        %s292 = sadd.s32 %s290, %s291
        %s293 = smul.addr %s292, 4
        %s294 = scalar_lea.vmem %s1, %s293
        %p295 = pneg %p92
        %p296 = pneg %p89
        %p297 = scmp.lt.s32.totalorder %s25, 1
        %s298 = scalar_select %p297, %s25, 1
        %p299 = scmp.lt.s32.totalorder %s26, 3
        %s300 = scalar_select %p299, %s26, 3
        %s301 = smul.addr %s298, 4
        %s302 = sadd.s32 %s300, %s301
        %s303 = smul.addr %s302, 4
        %s304 = scalar_lea.vmem %s2, %s303
        %p305 = pneg %p120
        %p306 = pneg %p117
        %p307 = scmp.lt.s32.totalorder %s25, 1
        %s308 = scalar_select %p307, %s25, 1
        %s309 = scalar_lea.vmem %s3, %s308
        %p310 = pneg %p146
        %p311 = pneg %p143
        %p312 = pneg %p176
        %p313 = pneg %p173
        %p314 = scmp.lt.s32.totalorder %s25, 1
        %s315 = scalar_select %p314, %s25, 1
        %p316 = scmp.lt.s32.totalorder %s26, 3
        %s317 = scalar_select %p316, %s26, 3
        %p318 = scmp.lt.s32.totalorder %s27, 0
        %s319 = scalar_select %p318, %s27, 0
        %s320 = sadd.s32 %s319, %s317
        %s321 = smul.addr %s315, 4
        %s322 = sadd.s32 %s320, %s321
        %s323 = smul.addr %s322, 4
        %s324 = scalar_lea.vmem %s4, %s323
        %p325 = pneg %p206
        %p326 = pneg %p203
        %s327 = sand.u32 %s193, 1
        %s328 = scalar_lea.sflag [#allocation3], %s327
        %s329 = sand.u32 %s193, 1
        %s330 = smul.addr %s329, 8
        %s331 = scalar_lea.vmem [#allocation2], %s330
        %p332 = scmp.lt.s32.totalorder %s25, 1
        %s333 = scalar_select %p332, %s25, 1
        %p334 = scmp.lt.s32.totalorder %s26, 3
        %s335 = scalar_select %p334, %s26, 3
        %p336 = scmp.lt.s32.totalorder %s27, 0
        %s337 = scalar_select %p336, %s27, 0
        %s338 = sadd.s32 %s337, %s335
        %s339 = smul.addr %s333, 4
        %s340 = sadd.s32 %s338, %s339
        %s341 = smul.addr %s340, 4
        %s342 = scalar_lea.vmem %s0, %s341
        %p343 = scmp.lt.s32.totalorder %s25, 1
        %s344 = scalar_select %p343, %s25, 1
        %p345 = scmp.lt.s32.totalorder %s26, 3
        %s346 = scalar_select %p345, %s26, 3
        %s347 = smul.addr %s344, 4
        %s348 = sadd.s32 %s346, %s347
        %s349 = smul.addr %s348, 4
        %s350 = scalar_lea.vmem %s1, %s349
        %p351 = scmp.lt.s32.totalorder %s25, 1
        %s352 = scalar_select %p351, %s25, 1
        %p353 = scmp.lt.s32.totalorder %s26, 3
        %s354 = scalar_select %p353, %s26, 3
        %s355 = smul.addr %s352, 4
        %s356 = sadd.s32 %s354, %s355
        %s357 = smul.addr %s356, 4
        %s358 = scalar_lea.vmem %s2, %s357
        %p359 = scmp.lt.s32.totalorder %s25, 1
        %s360 = scalar_select %p359, %s25, 1
        %s361 = scalar_lea.vmem %s3, %s360
        %p362 = scmp.lt.s32.totalorder %s25, 1
        %s363 = scalar_select %p362, %s25, 1
        %p364 = scmp.lt.s32.totalorder %s26, 3
        %s365 = scalar_select %p364, %s26, 3
        %p366 = scmp.lt.s32.totalorder %s27, 0
        %s367 = scalar_select %p366, %s27, 0
        %s368 = sadd.s32 %s367, %s365
        %s369 = smul.addr %s363, 4
        %s370 = sadd.s32 %s368, %s369
        %s371 = smul.addr %s370, 4
        %s372 = scalar_lea.vmem %s4, %s371
        %v374 = vld [vmem:[%s342] sm:$0xf]
        %v375 = vld [vmem:[%s350] sm:$0xf]
        %v376 = vld [vmem:[%s358] sm:$0xf]
        %v377 = vld [vmem:[%s361] sm:$0x1]
        %vm378 = vcmp.gt.f32.partialorder %v377, 0.0
        %vm379 = vcmask 64512
        %v381 = vsel %vm379, %v374, 0
        %v384 = vsel %vm379, %v375, 0
        %386 = vmatpush.bf16.xpose.msra.mxu0 0
        %387 = vmatpush.bf16.xpose.msra.mxu0 0
        %388 = vmatpush.bf16.xpose.msra.mxu0 0
        %389 = vmatpush.bf16.xpose.msra.mxu0 0
        %390 = vmatpush.bf16.xpose.msra.mxu0 0
        %391 = vmatpush.bf16.xpose.msra.mxu0 0
        %392 = vmatpush.bf16.xpose.msra.mxu0 0
        %393 = vmatpush.bf16.xpose.msra.mxu0 %v384
        %394 = vmatmul.bf16.gmra.mxu0 %v381
        %v395 = vpop.f32.mrf.mxu0
        %v396 = vadd.f32 0.0, %v395
        %v397 = vpop.f32.mrf.mxu0
        %398 = vdwg.mxu0
        %v399 = vmul.f32 %v396, 0.35355338
        %v400 = vsel %vm378, -3.5355338e+08, 0.0
        %v402 = vperm.slane %v400, 0
        %v404 = vadd.f32 %v399, %v402
        %v405 = vsel %vm379, %v404, -inf
        %406 = vmax.xlane.f32.xlu0 %v405
        %v407 = vpop.xlane.xlu0 %406
        %v408 = vsub.f32 %v404, %v407
        %v409 = vmul.f32 %v408, 1.442695
        %v410 = vpow.pop %v409
        %v411 = vsel %vm379, %v410, 0.0
        %412 = vadd.xlane.f32.xlu0 %v411
        %v413 = vpop.xlane.xlu0 %412
        %v414 = vrcp.pop %v413
        %v415 = vmul.f32 %v413, %v414
        %v416 = vsub.f32 1.0, %v415
        %v417 = vmul.f32 %v414, %v416
        %v418 = vadd.f32 %v414, %v417
        %vm419 = vweird.f32 %v413
        %vm420 = vweird.f32 %v414
        %vm421 = vmor %vm419, %vm420
        %v422 = vsel %vm421, %v414, %v418
        %v423 = vand.u32 2147483647, %v413
        %vm424 = vcmp.eq.f32.partialorder %v423, 8.507059e+37
        %v425 = vand.u32 %v413, 2147483648
        %v426 = vor.u32 1.1754944e-38, %v425
        %v427 = vsel %vm424, %v426, %v422
        %v428 = vmul.f32 %v410, %v427
        %429 = vst.msk [vmem:[%s331] sm:$0xff] %vm379, %v428
        %v430 = vpack.c.bf16 %v428, %v428
        %v432 = vsel %vm379, %v430, 0
        %vm434 = vcmask 1043456
        %v436 = vsel %vm434, %v376, 0
        %438 = vmatpush.bf16.msra.mxu0 0
        %439 = vmatpush.bf16.msra.mxu0 0
        %440 = vmatpush.bf16.msra.mxu0 0
        %441 = vmatpush.bf16.msra.mxu0 0
        %442 = vmatpush.bf16.msra.mxu0 0
        %443 = vmatpush.bf16.msra.mxu0 0
        %444 = vmatpush.bf16.msra.mxu0 0
        %445 = vmatpush.bf16.msra.mxu0 %v436
        %446 = vmatmul.bf16.gmra.mxu0 %v432
        %v447 = vpop.f32.mrf.mxu0
        %v448 = vadd.f32 0.0, %v447
        %v449 = vpop.f32.mrf.mxu0
        %450 = vdwg.mxu0
        %v451 = vpack.c.bf16 %v448, %v448
        %vm452 = vcmask 60416
        %453 = vst.msk [vmem:[%s372] sm:$0xf] %vm452, %v451
        %p454 = scmp.lt.s32.totalorder %s25, 1
        %s455 = scalar_select %p454, %s25, 1
        %p456 = scmp.lt.s32.totalorder %s26, 3
        %s457 = scalar_select %p456, %s26, 3
        %p458 = scmp.lt.s32.totalorder %s27, 0
        %s459 = scalar_select %p458, %s27, 0
        %s460 = sadd.s32 %s459, %s457
        %s461 = smul.addr %s455, 4
        %s462 = sadd.s32 %s460, %s461
        %s463 = smul.addr %s462, 4
        %s464 = scalar_lea.vmem %s4, %s463
        %s465 = sand.u32 %s193, 1
        %s466 = scalar_lea.sflag [#allocation3], %s465
        %s467 = sand.u32 %s193, 1
        %s468 = smul.addr %s467, 8
        %s469 = scalar_lea.vmem [#allocation2], %s468
        // Predicated region
        $region37: #{_lambda_.30} parent=35 // pred_check
          %p470 = pneg %p173
        $region38: #{_lambda_.30} parent=35 // pred_check_branch
          %472 = sbr.rel (%p470) target = $region40
        $region39: #{_lambda_.30} parent=35 // pred_region
          _
        $region40: #{_lambda_.30} parent=35 // pred_fallthru
          _
        // Predicated region
        $region41: #{_lambda_.30} parent=35 // pred_check
          %p473 = pneg %p203
        $region42: #{_lambda_.30} parent=35 // pred_check_branch
          %475 = sbr.rel (%p473) target = $region44
        $region43: #{_lambda_.30} parent=35 // pred_region
          %477 = vsyncadd %s466, 0
          %s478 = sadd.s32 %s27, %s26
          %s479 = smul.addr %s25, 4
          %s480 = sadd.s32 %s478, %s479
          %s481 = smul.addr %s480, 8
          %s482 = scalar_lea.hbm %s5, %s481
          %s484 = sshll.u32 %s469, 4
          %s485 = int_to_ptr.vmem [resolvable:$true] %s484
          %s486 = sshll.u32 %s482, 4
          %s487 = int_to_ptr.hbm [resolvable:$true] %s486
          %489 = dma.vmem_to_hbm [thread:$0]  %s485, 128, %s487, %s466
        $region44: #{_lambda_.30} parent=35 // pred_fallthru
          _
      $region36: #{_lambda_.30} parent=5 // pred_fallthru
        _
      %p490 = scmp.le.s32.totalorder 2, %s15
      // Predicated region
      $region45: #{_lambda_.30} parent=5 // pred_check
        %p491 = pneg %p490
      $region46: #{_lambda_.30} parent=5 // pred_check_branch
        %493 = sbr.rel (%p491) target = $region48
      $region47: #{_lambda_.30} parent=5 // pred_region
        %s494 = ssub.s32 %s15, 2
        // Predicated region
        $region49: #{_lambda_.30} parent=47 // pred_check
          %p495 = pneg %p179
        $region50: #{_lambda_.30} parent=47 // pred_check_branch
          %497 = sbr.rel (%p495) target = $region52
        $region51: #{_lambda_.30} parent=47 // pred_region
          %p498 = scmp.lt.s32.totalorder %s28, 1
          %s499 = scalar_select %p498, %s28, 1
          %p500 = scmp.lt.s32.totalorder %s29, 3
          %s501 = scalar_select %p500, %s29, 3
          %p502 = scmp.lt.s32.totalorder %s30, 0
          %s503 = scalar_select %p502, %s30, 0
          %s504 = sadd.s32 %s503, %s501
          %s505 = smul.addr %s499, 4
          %s506 = sadd.s32 %s504, %s505
          %s507 = smul.addr %s506, 4
          %s508 = scalar_lea.vmem %s4, %s507
        $region52: #{_lambda_.30} parent=47 // pred_fallthru
          _
        // Predicated region
        $region53: #{_lambda_.30} parent=47 // pred_check
          %p509 = pneg %p209
        $region54: #{_lambda_.30} parent=47 // pred_check_branch
          %511 = sbr.rel (%p509) target = $region56
        $region55: #{_lambda_.30} parent=47 // pred_region
          %s512 = sand.u32 %s194, 1
          %s513 = scalar_lea.sflag [#allocation3], %s512
          %s514 = sand.u32 %s194, 1
          %s515 = smul.addr %s514, 8
          %s516 = scalar_lea.vmem [#allocation2], %s515
          %518 = dma.done %s513, 128
        $region56: #{_lambda_.30} parent=47 // pred_fallthru
          _
      $region48: #{_lambda_.30} parent=5 // pred_fallthru
        _
    $region6: #{_lambda_.30} parent=1 // loop_footer
      %s19 = sadd.s32 1, %s15
    $region7: #{_lambda_.30} parent=1 // loop_footer_branch
      %14 = sbr.rel target = $region3
    $region8: #{_lambda_.30} parent=1 // loop_exit
      _
    %519 = vsyncpa [#allocation3], 1
    %s520 = scalar_lea.sflag [#allocation3], 1
    %521 = vsyncpa %s520, 1

// kernel: _lambda_.32
$region0: #{_lambda_.32}
  #allocation0 [shape = 'u32[]', space=smem, size = 0x4, offset = 0x4, fixed_abs, tag = 'smem constant byte address 0x4 - core index']
  #allocation1 [shape = 'u32[72,128]{1,0:T(1,128)}', space=vmem, size = 0x9000, scoped, tag = 'internal scratch']
  #allocation2 [shape = 'f32[16,64]{1,0:T(8,128)}', space=vmem, size = 0x2000, scoped, tag = 'scratch operand']
  %s0 = inlined_call_operand.vmem [shape: f32[16,32], index: 0, kind: input, shape index: {}]
  %s1 = inlined_call_operand.vmem [shape: bf16[32,64], index: 1, kind: input, shape index: {}]
  %s2 = inlined_call_operand.vmem [shape: f32[1,64], index: 2, kind: input, shape index: {}]
  %s3 = inlined_call_operand.vmem [shape: bf16[16,64], index: 3, kind: output, shape index: {}]
  %s4 = sld [smem:[#allocation0]]
  $region30: #{_lambda_.32} parent=0
    _
  %s6 = ssub.s32 1, %s4
  %s7 = scalar_select 0, %s6, %s4
  // Predicated region
  $region2: #{_lambda_.32} parent=0 // pred_check
    _
  $region3: #{_lambda_.32} parent=0 // pred_check_branch
    %9 = sbr.rel (0) target = $region5
  $region4: #{_lambda_.32} parent=0 // pred_region
    _
  $region5: #{_lambda_.32} parent=0 // pred_fallthru
    _
  // Predicated region
  $region6: #{_lambda_.32} parent=0 // pred_check
    _
  $region7: #{_lambda_.32} parent=0 // pred_check_branch
    %11 = sbr.rel (0) target = $region9
  $region8: #{_lambda_.32} parent=0 // pred_region
    _
  $region9: #{_lambda_.32} parent=0 // pred_fallthru
    _
  // Predicated region
  $region10: #{_lambda_.32} parent=0 // pred_check
    _
  $region11: #{_lambda_.32} parent=0 // pred_check_branch
    %13 = sbr.rel (0) target = $region13
  $region12: #{_lambda_.32} parent=0 // pred_region
    _
  $region13: #{_lambda_.32} parent=0 // pred_fallthru
    _
  %p15 = scmp.eq.s32.totalorder 0, 0
  // Predicated region
  $region14: #{_lambda_.32} parent=0 // pred_check
    %p16 = pneg %p15
  $region15: #{_lambda_.32} parent=0 // pred_check_branch
    %18 = sbr.rel (%p16) target = $region17
  $region16: #{_lambda_.32} parent=0 // pred_region
    %vm19 = vcmask 523264
    %20 = vst.msk [vmem:[#allocation2] sm:$0xff] %vm19, 0.0
    %21 = vst.msk [vmem:[#allocation2 + $0x8] sm:$0xff] %vm19, 0.0
  $region17: #{_lambda_.32} parent=0 // pred_fallthru
    _
  %v22 = vld [vmem:[#allocation2] sm:$0xff]
  %v23 = vld [vmem:[#allocation2 + $0x8] sm:$0xff]
  %v24 = vld [vmem:[%s0] sm:$0xff]
  %v25 = vld [vmem:[%s0 + $0x8] sm:$0xff]
  %v26 = vpack.c.bf16 %v25, %v24
  %v27 = vld [vmem:[%s1] sm:$0xf]
  %v28 = vld [vmem:[%s1 + $0x4] sm:$0xf]
  %v29 = vld [vmem:[%s1 + $0x8] sm:$0xf]
  %v30 = vld [vmem:[%s1 + $0xc] sm:$0xf]
  %v35 = vunpack.c.l.b16 %v27
  %v36 = vunpack.c.l.b16 %v28
  %v37 = vunpack.c.l.b16 %v29
  %v38 = vunpack.c.l.b16 %v30
  %v39 = vpack.c.b16 %v36, %v35
  %v40 = vpack.c.b16 %v38, %v37
  %vm43 = vcmask 261120
  %v45 = vsel %vm43, %v26, 0
  %47 = vmatpush.bf16.msra.mxu0 0
  %48 = vmatpush.bf16.msra.mxu0 0
  %49 = vmatpush.bf16.msra.mxu0 0
  %50 = vmatpush.bf16.msra.mxu0 0
  %51 = vmatpush.bf16.msra.mxu0 0
  %52 = vmatpush.bf16.msra.mxu0 0
  %53 = vmatpush.bf16.msra.mxu0 %v40
  %54 = vmatpush.bf16.msra.mxu0 %v39
  %55 = vmatmul.bf16.gmra.mxu0 %v45
  %v56 = vpop.f32.mrf.mxu0
  %v57 = vadd.f32 0.0, %v56
  %v58 = vpop.f32.mrf.mxu0
  %v59 = vadd.f32 0.0, %v58
  %60 = vdwg.mxu0
  %v61 = vadd.f32 %v22, %v57
  %v62 = vadd.f32 %v23, %v59
  %vm63 = vcmask 523264
  %64 = vst.msk [vmem:[#allocation2] sm:$0xff] %vm63, %v61
  %65 = vst.msk [vmem:[#allocation2 + $0x8] sm:$0xff] %vm63, %v62
  // Predicated region
  $region18: #{_lambda_.32} parent=0 // pred_check
    %p66 = pneg %p15
  $region19: #{_lambda_.32} parent=0 // pred_check_branch
    %68 = sbr.rel (%p66) target = $region21
  $region20: #{_lambda_.32} parent=0 // pred_region
    %v69 = vld [vmem:[#allocation2] sm:$0xff]
    %v70 = vld [vmem:[#allocation2 + $0x8] sm:$0xff]
    %v71 = vld [vmem:[%s2] sm:$0x1]
    %v73 = vperm.slane %v71, 0
    %v75 = vadd.f32 %v69, %v73
    %v76 = vadd.f32 %v70, %v73
    %v77 = vmax.f32 %v75, 0.0
    %v78 = vmax.f32 %v76, 0.0
    %v79 = vpack.c.bf16 %v77, %v77
    %v80 = vpack.c.bf16 %v78, %v78
    %vm81 = vcmask 519168
    %82 = vst.msk [vmem:[%s3] sm:$0xf] %vm81, %v79
    %83 = vst.msk [vmem:[%s3 + $0x4] sm:$0xf] %vm81, %v80
  $region21: #{_lambda_.32} parent=0 // pred_fallthru
    _
  // Predicated region
  $region22: #{_lambda_.32} parent=0 // pred_check
    _
  $region23: #{_lambda_.32} parent=0 // pred_check_branch
    %85 = sbr.rel (0) target = $region25
  $region24: #{_lambda_.32} parent=0 // pred_region
    _
  $region25: #{_lambda_.32} parent=0 // pred_fallthru
    _
  // Predicated region
  $region26: #{_lambda_.32} parent=0 // pred_check
    _
  $region27: #{_lambda_.32} parent=0 // pred_check_branch
    %87 = sbr.rel (0) target = $region29
  $region28: #{_lambda_.32} parent=0 // pred_region
    _
  $region29: #{_lambda_.32} parent=0 // pred_fallthru
    _

// kernel: _lambda_.33
$region0: #{_lambda_.33}
  #allocation0 [shape = 'u32[]', space=smem, size = 0x4, offset = 0x4, fixed_abs, tag = 'smem constant byte address 0x4 - core index']
  #allocation1 [shape = 'u32[72,128]{1,0:T(1,128)}', space=vmem, size = 0x9000, scoped, tag = 'internal scratch']
  #allocation2 [shape = 'f32[16,32]{1,0:T(8,128)}', space=vmem, size = 0x2000, scoped, tag = 'scratch operand']
  %s0 = inlined_call_operand.vmem [shape: bf16[16,64], index: 0, kind: input, shape index: {}]
  %s1 = inlined_call_operand.vmem [shape: bf16[64,32], index: 1, kind: input, shape index: {}]
  %s2 = inlined_call_operand.vmem [shape: f32[1,32], index: 2, kind: input, shape index: {}]
  %s3 = inlined_call_operand.vmem [shape: f32[16,32], index: 3, kind: input, shape index: {}]
  %s4 = inlined_call_operand.vmem [shape: f32[1,32], index: 4, kind: input, shape index: {}]
  %s5 = inlined_call_operand.vmem [shape: f32[1,32], index: 5, kind: input, shape index: {}]
  %s6 = inlined_call_operand.vmem [shape: f32[16,32], index: 6, kind: output, shape index: {}]
  %s7 = sld [smem:[#allocation0]]
  $region42: #{_lambda_.33} parent=0
    _
  %s9 = ssub.s32 1, %s7
  %s10 = scalar_select 0, %s9, %s7
  // Predicated region
  $region2: #{_lambda_.33} parent=0 // pred_check
    _
  $region3: #{_lambda_.33} parent=0 // pred_check_branch
    %12 = sbr.rel (0) target = $region5
  $region4: #{_lambda_.33} parent=0 // pred_region
    _
  $region5: #{_lambda_.33} parent=0 // pred_fallthru
    _
  // Predicated region
  $region6: #{_lambda_.33} parent=0 // pred_check
    _
  $region7: #{_lambda_.33} parent=0 // pred_check_branch
    %14 = sbr.rel (0) target = $region9
  $region8: #{_lambda_.33} parent=0 // pred_region
    _
  $region9: #{_lambda_.33} parent=0 // pred_fallthru
    _
  // Predicated region
  $region10: #{_lambda_.33} parent=0 // pred_check
    _
  $region11: #{_lambda_.33} parent=0 // pred_check_branch
    %16 = sbr.rel (0) target = $region13
  $region12: #{_lambda_.33} parent=0 // pred_region
    _
  $region13: #{_lambda_.33} parent=0 // pred_fallthru
    _
  // Predicated region
  $region14: #{_lambda_.33} parent=0 // pred_check
    _
  $region15: #{_lambda_.33} parent=0 // pred_check_branch
    %18 = sbr.rel (0) target = $region17
  $region16: #{_lambda_.33} parent=0 // pred_region
    _
  $region17: #{_lambda_.33} parent=0 // pred_fallthru
    _
  // Predicated region
  $region18: #{_lambda_.33} parent=0 // pred_check
    _
  $region19: #{_lambda_.33} parent=0 // pred_check_branch
    %20 = sbr.rel (0) target = $region21
  $region20: #{_lambda_.33} parent=0 // pred_region
    _
  $region21: #{_lambda_.33} parent=0 // pred_fallthru
    _
  // Predicated region
  $region22: #{_lambda_.33} parent=0 // pred_check
    _
  $region23: #{_lambda_.33} parent=0 // pred_check_branch
    %22 = sbr.rel (0) target = $region25
  $region24: #{_lambda_.33} parent=0 // pred_region
    _
  $region25: #{_lambda_.33} parent=0 // pred_fallthru
    _
  %p24 = scmp.eq.s32.totalorder 0, 0
  // Predicated region
  $region26: #{_lambda_.33} parent=0 // pred_check
    %p25 = pneg %p24
  $region27: #{_lambda_.33} parent=0 // pred_check_branch
    %27 = sbr.rel (%p25) target = $region29
  $region28: #{_lambda_.33} parent=0 // pred_region
    %vm28 = vcmask 261120
    %29 = vst.msk [vmem:[#allocation2] sm:$0xff] %vm28, 0.0
    %30 = vst.msk [vmem:[#allocation2 + $0x8] sm:$0xff] %vm28, 0.0
  $region29: #{_lambda_.33} parent=0 // pred_fallthru
    _
  %v31 = vld [vmem:[#allocation2] sm:$0xff]
  %v32 = vld [vmem:[#allocation2 + $0x8] sm:$0xff]
  %v33 = vld [vmem:[%s0] sm:$0xf]
  %v34 = vld [vmem:[%s0 + $0x4] sm:$0xf]
  %v35 = vld [vmem:[%s1] sm:$0xf]
  %v36 = vld [vmem:[%s1 + $0x4] sm:$0xf]
  %v37 = vld [vmem:[%s1 + $0x8] sm:$0xf]
  %v38 = vld [vmem:[%s1 + $0xc] sm:$0xf]
  %v39 = vld [vmem:[%s1 + $0x10] sm:$0xf]
  %v40 = vld [vmem:[%s1 + $0x14] sm:$0xf]
  %v41 = vld [vmem:[%s1 + $0x18] sm:$0xf]
  %v42 = vld [vmem:[%s1 + $0x1c] sm:$0xf]
  %v45 = vunpack.c.l.b16 %v33
  %v46 = vunpack.c.l.b16 %v34
  %v47 = vpack.c.b16 %v46, %v45
  %v56 = vunpack.c.l.b16 %v35
  %v57 = vunpack.c.l.b16 %v36
  %v58 = vunpack.c.l.b16 %v37
  %v59 = vunpack.c.l.b16 %v38
  %v60 = vunpack.c.l.b16 %v39
  %v61 = vunpack.c.l.b16 %v40
  %v62 = vunpack.c.l.b16 %v41
  %v63 = vunpack.c.l.b16 %v42
  %v64 = vpack.c.b16 %v57, %v56
  %v65 = vpack.c.b16 %v59, %v58
  %v66 = vpack.c.b16 %v61, %v60
  %v67 = vpack.c.b16 %v63, %v62
  %vm72 = vcmask 523264
  %v74 = vsel %vm72, %v47, 0
  %76 = vmatpush.bf16.msra.mxu0 0
  %77 = vmatpush.bf16.msra.mxu0 0
  %78 = vmatpush.bf16.msra.mxu0 0
  %79 = vmatpush.bf16.msra.mxu0 0
  %80 = vmatpush.bf16.msra.mxu0 %v67
  %81 = vmatpush.bf16.msra.mxu0 %v66
  %82 = vmatpush.bf16.msra.mxu0 %v65
  %83 = vmatpush.bf16.msra.mxu0 %v64
  %84 = vmatmul.bf16.gmra.mxu0 %v74
  %v85 = vpop.f32.mrf.mxu0
  %v86 = vadd.f32 0.0, %v85
  %v87 = vpop.f32.mrf.mxu0
  %v88 = vadd.f32 0.0, %v87
  %89 = vdwg.mxu0
  %v90 = vadd.f32 %v31, %v86
  %v91 = vadd.f32 %v32, %v88
  %vm92 = vcmask 261120
  %93 = vst.msk [vmem:[#allocation2] sm:$0xff] %vm92, %v90
  %94 = vst.msk [vmem:[#allocation2 + $0x8] sm:$0xff] %vm92, %v91
  // Predicated region
  $region30: #{_lambda_.33} parent=0 // pred_check
    %p95 = pneg %p24
  $region31: #{_lambda_.33} parent=0 // pred_check_branch
    %97 = sbr.rel (%p95) target = $region33
  $region32: #{_lambda_.33} parent=0 // pred_region
    %v98 = vld [vmem:[#allocation2] sm:$0xff]
    %v99 = vld [vmem:[#allocation2 + $0x8] sm:$0xff]
    %v100 = vld [vmem:[%s2] sm:$0x1]
    %v102 = vperm.slane %v100, 0
    %v104 = vadd.f32 %v98, %v102
    %v105 = vadd.f32 %v99, %v102
    %v106 = vld [vmem:[%s3] sm:$0xff]
    %v107 = vld [vmem:[%s3 + $0x8] sm:$0xff]
    %v108 = vadd.f32 %v104, %v106
    %v109 = vadd.f32 %v105, %v107
    %v110 = vsel %vm92, %v108, 0.0
    %111 = vadd.xlane.f32.xlu0 %v110
    %v112 = vpop.xlane.xlu0 %111
    %v113 = vsel %vm92, %v109, 0.0
    %114 = vadd.xlane.f32.xlu0 %v113
    %v115 = vpop.xlane.xlu0 %114
    %v116 = vrcp.pop 32.0
    %v117 = vmul.f32 32.0, %v116
    %v118 = vsub.f32 1.0, %v117
    %v119 = vmul.f32 %v116, %v118
    %v120 = vadd.f32 %v116, %v119
    %vm121 = vweird.f32 %v116
    %v122 = vsel %vm121, %v116, %v120
    %v123 = vmul.f32 %v112, %v122
    %v124 = vmul.f32 %v115, %v122
    %v125 = vsub.f32 %v108, %v123
    %v126 = vsub.f32 %v109, %v124
    %v127 = vmul.f32 %v125, %v125
    %v128 = vmul.f32 %v126, %v126
    %v129 = vsel %vm92, %v127, 0.0
    %130 = vadd.xlane.f32.xlu0 %v129
    %v131 = vpop.xlane.xlu0 %130
    %v132 = vsel %vm92, %v128, 0.0
    %133 = vadd.xlane.f32.xlu0 %v132
    %v134 = vpop.xlane.xlu0 %133
    %v135 = vmul.f32 %v131, %v122
    %v136 = vmul.f32 %v134, %v122
    %v137 = vadd.f32 %v135, 1e-06
    %v138 = vadd.f32 %v136, 1e-06
    %v139 = vrsqrt.pop %v137
    %v140 = vmul.f32 %v139, %v137
    %v141 = vmul.f32 %v140, %v139
    %v142 = vmul.f32 0.5, %v141
    %v143 = vsub.f32 1.5, %v142
    %v144 = vmul.f32 %v139, %v143
    %vm145 = vweird.f32 %v137
    %vm146 = vweird.f32 %v139
    %vm147 = vmor %vm145, %vm146
    %v148 = vsel %vm147, %v139, %v144
    %v149 = vrsqrt.pop %v138
    %v150 = vmul.f32 %v149, %v138
    %v151 = vmul.f32 %v150, %v149
    %v152 = vmul.f32 0.5, %v151
    %v153 = vsub.f32 1.5, %v152
    %v154 = vmul.f32 %v149, %v153
    %vm155 = vweird.f32 %v138
    %vm156 = vweird.f32 %v149
    %vm157 = vmor %vm155, %vm156
    %v158 = vsel %vm157, %v149, %v154
    %v159 = vmul.f32 %v125, %v148
    %v160 = vmul.f32 %v126, %v158
    %v161 = vld [vmem:[%s4] sm:$0x1]
    %v163 = vperm.slane %v161, 0
    %v165 = vmul.f32 %v159, %v163
    %v166 = vmul.f32 %v160, %v163
    %v167 = vld [vmem:[%s5] sm:$0x1]
    %v169 = vperm.slane %v167, 0
    %v171 = vadd.f32 %v165, %v169
    %v172 = vadd.f32 %v166, %v169
    %173 = vst.msk [vmem:[%s6] sm:$0xff] %vm92, %v171
    %174 = vst.msk [vmem:[%s6 + $0x8] sm:$0xff] %vm92, %v172
  $region33: #{_lambda_.33} parent=0 // pred_fallthru
    _
  // Predicated region
  $region34: #{_lambda_.33} parent=0 // pred_check
    _
  $region35: #{_lambda_.33} parent=0 // pred_check_branch
    %176 = sbr.rel (0) target = $region37
  $region36: #{_lambda_.33} parent=0 // pred_region
    _
  $region37: #{_lambda_.33} parent=0 // pred_fallthru
    _
  // Predicated region
  $region38: #{_lambda_.33} parent=0 // pred_check
    _
  $region39: #{_lambda_.33} parent=0 // pred_check_branch
    %178 = sbr.rel (0) target = $region41
  $region40: #{_lambda_.33} parent=0 // pred_region
    _
  $region41: #{_lambda_.33} parent=0 // pred_fallthru
    _

// kernel: _lambda_.43
$region0: #{_lambda_.43}
  #allocation0 [shape = 'u32[]', space=smem, size = 0x4, offset = 0x4, fixed_abs, tag = 'smem constant byte address 0x4 - core index']
  #allocation1 [shape = 'u32[72,128]{1,0:T(1,128)}', space=vmem, size = 0x9000, scoped, tag = 'internal scratch']
  #allocation2 [shape = 'f32[8,64]{1,0:T(8,128)}', space=vmem, size = 0x1000, scoped, tag = 'scratch operand']
  %s0 = inlined_call_operand.vmem [shape: f32[2,8,32], index: 0, kind: input, shape index: {}]
  %s1 = inlined_call_operand.vmem [shape: bf16[32,64], index: 1, kind: input, shape index: {}]
  %s2 = inlined_call_operand.vmem [shape: f32[8,16], index: 2, kind: input, shape index: {}]
  %s3 = inlined_call_operand.vmem [shape: f32[8,16], index: 3, kind: input, shape index: {}]
  %s4 = inlined_call_operand.vmem [shape: bf16[2,8,32], index: 4, kind: output, shape index: {0}]
  %s5 = inlined_call_operand.vmem [shape: bf16[2,8,32], index: 5, kind: output, shape index: {1}]
  %6 = xla_tuple %s4, %s5
  %s7 = sld [smem:[#allocation0]]
  $region65: #{_lambda_.43} parent=0
    _
  %s9 = ssub.s32 1, %s7
  %s10 = scalar_select 0, %s9, %s7
  loop: start=0, step=1, limit=4
  $region2: #{_lambda_.43} parent=0 // loop_pre_header
    _
  $region3: #{_lambda_.43} parent=0 // loop_header
    %s12 = sphi 0, %s16
    %p13 = scmp.ge.s32.totalorder %s12, 4
    %s19 = sphi 0, %s38
    %s20 = sphi 0, %s34
    %s21 = sphi 0, %s30
    %s22 = sphi 0, %s19
    %s23 = sphi 0, %s20
    %s24 = sphi 0, %s21
    %s25 = sphi 0, %s22
    %s26 = sphi 0, %s23
    %s27 = sphi 0, %s24
    %s45 = sphi 0, %s47
    %s48 = sphi 0, %s45
    %s49 = sphi 0, %s48
    %s65 = sphi 0, %s49
    %s71 = sphi 0, %s73
    %s74 = sphi 0, %s71
    %s75 = sphi 0, %s74
    %s91 = sphi 0, %s75
    %s97 = sphi 0, %s99
    %s100 = sphi 0, %s97
    %s101 = sphi 0, %s100
    %s117 = sphi 0, %s101
    %s123 = sphi 0, %s125
    %s126 = sphi 0, %s123
    %s127 = sphi 0, %s126
    %s143 = sphi 0, %s127
    %s151 = sphi 0, %s153
    %s154 = sphi 0, %s151
    %s155 = sphi 0, %s154
    %s171 = sphi 0, %s155
    %s179 = sphi 0, %s181
    %s182 = sphi 0, %s179
    %s183 = sphi 0, %s182
    %s199 = sphi 0, %s183
  $region4: #{_lambda_.43} parent=0 // loop_header_branch
    %15 = sbr.rel (%p13) target = $region8
  $region5: #{_lambda_.43} parent=0 // loop_body
    %s17 = ssub.s32 %s12, 1
    %s18 = ssub.s32 %s12, 2
    %s28 = sadd.s32 1, %s21
    %p29 = scmp.ge.s32.totalorder %s28, 1
    %s30 = scalar_select %p29, 0, %s28
    %s31 = sadd.s32 1, %s20
    %s32 = scalar_select %p29, %s31, %s20
    %p33 = scmp.ge.s32.totalorder %s32, 1
    %s34 = scalar_select %p33, 0, %s32
    %s35 = sadd.s32 1, %s19
    %s36 = scalar_select %p33, %s35, %s19
    %p37 = scmp.ge.s32.totalorder %s36, 2
    %s38 = scalar_select %p37, 0, %s36
    %s39 = ssub.s32 %s19, %s38
    %s40 = ssub.s32 %s20, %s34
    %s41 = sor.u32 %s39, %s40
    %s42 = ssub.s32 %s21, %s30
    %s43 = sor.u32 %s41, %s42
    %p44 = scmp.eq.s32.totalorder %s43, 0
    %s46 = sadd.s32 %s45, 1
    %s47 = scalar_select %p44, %s45, %s46
    %p50 = pneg %p44
    %p51 = scmp.eq.s32.totalorder %s12, 1
    %p52 = por %p50, %p51
    %p53 = scmp.ne.s32.totalorder %s45, %s48
    %p54 = scmp.eq.s32.totalorder %s12, 0
    %p55 = por %p53, %p54
    %p56 = scmp.ne.s32.totalorder %s45, %s48
    %p57 = scmp.eq.s32.totalorder %s17, 1
    %p58 = por %p56, %p57
    %p59 = scmp.ne.s32.totalorder %s48, %s49
    %p60 = scmp.eq.s32.totalorder %s17, 0
    %p61 = por %p59, %p60
    %p62 = scmp.ne.s32.totalorder %s48, %s49
    %p63 = scmp.eq.s32.totalorder %s18, 1
    %p64 = por %p62, %p63
    %p66 = scmp.ne.s32.totalorder %s49, %s65
    %p67 = scmp.eq.s32.totalorder %s18, 0
    %p68 = por %p66, %p67
    %s69 = ssub.s32 %s21, %s30
    %p70 = scmp.eq.s32.totalorder %s69, 0
    %s72 = sadd.s32 %s71, 1
    %s73 = scalar_select %p70, %s71, %s72
    %p76 = pneg %p70
    %p77 = scmp.eq.s32.totalorder %s12, 1
    %p78 = por %p76, %p77
    %p79 = scmp.ne.s32.totalorder %s71, %s74
    %p80 = scmp.eq.s32.totalorder %s12, 0
    %p81 = por %p79, %p80
    %p82 = scmp.ne.s32.totalorder %s71, %s74
    %p83 = scmp.eq.s32.totalorder %s17, 1
    %p84 = por %p82, %p83
    %p85 = scmp.ne.s32.totalorder %s74, %s75
    %p86 = scmp.eq.s32.totalorder %s17, 0
    %p87 = por %p85, %p86
    %p88 = scmp.ne.s32.totalorder %s74, %s75
    %p89 = scmp.eq.s32.totalorder %s18, 1
    %p90 = por %p88, %p89
    %p92 = scmp.ne.s32.totalorder %s75, %s91
    %p93 = scmp.eq.s32.totalorder %s18, 0
    %p94 = por %p92, %p93
    %s95 = ssub.s32 %s20, %s34
    %p96 = scmp.eq.s32.totalorder %s95, 0
    %s98 = sadd.s32 %s97, 1
    %s99 = scalar_select %p96, %s97, %s98
    %p102 = pneg %p96
    %p103 = scmp.eq.s32.totalorder %s12, 1
    %p104 = por %p102, %p103
    %p105 = scmp.ne.s32.totalorder %s97, %s100
    %p106 = scmp.eq.s32.totalorder %s12, 0
    %p107 = por %p105, %p106
    %p108 = scmp.ne.s32.totalorder %s97, %s100
    %p109 = scmp.eq.s32.totalorder %s17, 1
    %p110 = por %p108, %p109
    %p111 = scmp.ne.s32.totalorder %s100, %s101
    %p112 = scmp.eq.s32.totalorder %s17, 0
    %p113 = por %p111, %p112
    %p114 = scmp.ne.s32.totalorder %s100, %s101
    %p115 = scmp.eq.s32.totalorder %s18, 1
    %p116 = por %p114, %p115
    %p118 = scmp.ne.s32.totalorder %s101, %s117
    %p119 = scmp.eq.s32.totalorder %s18, 0
    %p120 = por %p118, %p119
    %s121 = ssub.s32 %s20, %s34
    %p122 = scmp.eq.s32.totalorder %s121, 0
    %s124 = sadd.s32 %s123, 1
    %s125 = scalar_select %p122, %s123, %s124
    %p128 = pneg %p122
    %p129 = scmp.eq.s32.totalorder %s12, 1
    %p130 = por %p128, %p129
    %p131 = scmp.ne.s32.totalorder %s123, %s126
    %p132 = scmp.eq.s32.totalorder %s12, 0
    %p133 = por %p131, %p132
    %p134 = scmp.ne.s32.totalorder %s123, %s126
    %p135 = scmp.eq.s32.totalorder %s17, 1
    %p136 = por %p134, %p135
    %p137 = scmp.ne.s32.totalorder %s126, %s127
    %p138 = scmp.eq.s32.totalorder %s17, 0
    %p139 = por %p137, %p138
    %p140 = scmp.ne.s32.totalorder %s126, %s127
    %p141 = scmp.eq.s32.totalorder %s18, 1
    %p142 = por %p140, %p141
    %p144 = scmp.ne.s32.totalorder %s127, %s143
    %p145 = scmp.eq.s32.totalorder %s18, 0
    %p146 = por %p144, %p145
    %s147 = ssub.s32 %s19, %s38
    %s148 = ssub.s32 %s20, %s34
    %s149 = sor.u32 %s147, %s148
    %p150 = scmp.eq.s32.totalorder %s149, 0
    %s152 = sadd.s32 %s151, 1
    %s153 = scalar_select %p150, %s151, %s152
    %p156 = pneg %p150
    %p157 = scmp.eq.s32.totalorder %s12, 1
    %p158 = por %p156, %p157
    %p159 = scmp.ne.s32.totalorder %s151, %s154
    %p160 = scmp.eq.s32.totalorder %s12, 0
    %p161 = por %p159, %p160
    %p162 = scmp.ne.s32.totalorder %s151, %s154
    %p163 = scmp.eq.s32.totalorder %s17, 1
    %p164 = por %p162, %p163
    %p165 = scmp.ne.s32.totalorder %s154, %s155
    %p166 = scmp.eq.s32.totalorder %s17, 0
    %p167 = por %p165, %p166
    %p168 = scmp.ne.s32.totalorder %s154, %s155
    %p169 = scmp.eq.s32.totalorder %s18, 1
    %p170 = por %p168, %p169
    %p172 = scmp.ne.s32.totalorder %s155, %s171
    %p173 = scmp.eq.s32.totalorder %s18, 0
    %p174 = por %p172, %p173
    %s175 = ssub.s32 %s19, %s38
    %s176 = ssub.s32 %s20, %s34
    %s177 = sor.u32 %s175, %s176
    %p178 = scmp.eq.s32.totalorder %s177, 0
    %s180 = sadd.s32 %s179, 1
    %s181 = scalar_select %p178, %s179, %s180
    %p184 = pneg %p178
    %p185 = scmp.eq.s32.totalorder %s12, 1
    %p186 = por %p184, %p185
    %p187 = scmp.ne.s32.totalorder %s179, %s182
    %p188 = scmp.eq.s32.totalorder %s12, 0
    %p189 = por %p187, %p188
    %p190 = scmp.ne.s32.totalorder %s179, %s182
    %p191 = scmp.eq.s32.totalorder %s17, 1
    %p192 = por %p190, %p191
    %p193 = scmp.ne.s32.totalorder %s182, %s183
    %p194 = scmp.eq.s32.totalorder %s17, 0
    %p195 = por %p193, %p194
    %p196 = scmp.ne.s32.totalorder %s182, %s183
    %p197 = scmp.eq.s32.totalorder %s18, 1
    %p198 = por %p196, %p197
    %p200 = scmp.ne.s32.totalorder %s183, %s199
    %p201 = scmp.eq.s32.totalorder %s18, 0
    %p202 = por %p200, %p201
    %p203 = scmp.le.s32.totalorder 1, %s12
    %p204 = scmp.lt.s32.totalorder %s12, 3
    %p205 = pnand %p203, %p204
    %p206 = pneg %p205
    // Predicated region
    $region9: #{_lambda_.43} parent=5 // pred_check
      _
    $region10: #{_lambda_.43} parent=5 // pred_check_branch
      %208 = sbr.rel (%p205) target = $region12
    $region11: #{_lambda_.43} parent=5 // pred_region
      %s209 = ssub.s32 %s12, 1
      // Predicated region
      $region13: #{_lambda_.43} parent=11 // pred_check
        %p210 = pneg %p87
      $region14: #{_lambda_.43} parent=11 // pred_check_branch
        %212 = sbr.rel (%p210) target = $region16
      $region15: #{_lambda_.43} parent=11 // pred_region
        %s213 = smul.u32 4, %s24
        %p214 = scmp.lt.s32.totalorder %s213, 3
        %s215 = scalar_select %p214, %s213, 3
        %s216 = smul.addr %s215, 4
        %s217 = scalar_lea.vmem %s1, %s216
        %s218 = smul.u32 4, %s24
      $region16: #{_lambda_.43} parent=11 // pred_fallthru
        _
      // Predicated region
      $region17: #{_lambda_.43} parent=11 // pred_check
        %p219 = pneg %p113
      $region18: #{_lambda_.43} parent=11 // pred_check_branch
        %221 = sbr.rel (%p219) target = $region20
      $region19: #{_lambda_.43} parent=11 // pred_region
        %p222 = scmp.lt.s32.totalorder %s23, 0
        %s223 = scalar_select %p222, %s23, 0
        %s224 = smul.addr %s223, 8
        %s225 = scalar_lea.vmem %s2, %s224
      $region20: #{_lambda_.43} parent=11 // pred_fallthru
        _
      // Predicated region
      $region21: #{_lambda_.43} parent=11 // pred_check
        %p226 = pneg %p139
      $region22: #{_lambda_.43} parent=11 // pred_check_branch
        %228 = sbr.rel (%p226) target = $region24
      $region23: #{_lambda_.43} parent=11 // pred_region
        %p229 = scmp.lt.s32.totalorder %s23, 0
        %s230 = scalar_select %p229, %s23, 0
        %s231 = smul.addr %s230, 8
        %s232 = scalar_lea.vmem %s3, %s231
      $region24: #{_lambda_.43} parent=11 // pred_fallthru
        _
    $region12: #{_lambda_.43} parent=5 // pred_fallthru
      _
    %p233 = scmp.lt.s32.totalorder %s12, 2
    // Predicated region
    $region25: #{_lambda_.43} parent=5 // pred_check
      %p234 = pneg %p233
    $region26: #{_lambda_.43} parent=5 // pred_check_branch
      %236 = sbr.rel (%p234) target = $region28
    $region27: #{_lambda_.43} parent=5 // pred_region
      // Predicated region
      $region29: #{_lambda_.43} parent=27 // pred_check
        %p237 = pneg %p55
      $region30: #{_lambda_.43} parent=27 // pred_check_branch
        %239 = sbr.rel (%p237) target = $region32
      $region31: #{_lambda_.43} parent=27 // pred_region
        %p240 = scmp.lt.s32.totalorder %s19, 1
        %s241 = scalar_select %p240, %s19, 1
        %p242 = scmp.lt.s32.totalorder %s20, 0
        %s243 = scalar_select %p242, %s20, 0
        %p244 = scmp.lt.s32.totalorder %s21, 0
        %s245 = scalar_select %p244, %s21, 0
        %s246 = sadd.s32 %s245, %s243
        %s247 = sadd.s32 %s246, %s241
        %s248 = smul.addr %s247, 8
        %s249 = scalar_lea.vmem %s0, %s248
      $region32: #{_lambda_.43} parent=27 // pred_fallthru
        _
    $region28: #{_lambda_.43} parent=5 // pred_fallthru
      _
    %p250 = scmp.le.s32.totalorder 1, %s12
    %p251 = scmp.lt.s32.totalorder %s12, 3
    %p252 = pnand %p250, %p251
    %p253 = pneg %p252
    // Predicated region
    $region33: #{_lambda_.43} parent=5 // pred_check
      _
    $region34: #{_lambda_.43} parent=5 // pred_check_branch
      %255 = sbr.rel (%p252) target = $region36
    $region35: #{_lambda_.43} parent=5 // pred_region
      %s256 = ssub.s32 %s12, 1
      %p257 = scmp.lt.s32.totalorder %s22, 1
      %s258 = scalar_select %p257, %s22, 1
      %p259 = scmp.lt.s32.totalorder %s23, 0
      %s260 = scalar_select %p259, %s23, 0
      %p261 = scmp.lt.s32.totalorder %s24, 0
      %s262 = scalar_select %p261, %s24, 0
      %s263 = sadd.s32 %s262, %s260
      %s264 = sadd.s32 %s263, %s258
      %s265 = smul.addr %s264, 8
      %s266 = scalar_lea.vmem %s0, %s265
      %p267 = pneg %p61
      %p268 = pneg %p58
      %s269 = smul.u32 4, %s24
      %p270 = scmp.lt.s32.totalorder %s269, 3
      %s271 = scalar_select %p270, %s269, 3
      %s272 = smul.addr %s271, 4
      %s273 = scalar_lea.vmem %s1, %s272
      %p274 = pneg %p87
      %p275 = pneg %p84
      %p276 = scmp.lt.s32.totalorder %s23, 0
      %s277 = scalar_select %p276, %s23, 0
      %s278 = smul.addr %s277, 8
      %s279 = scalar_lea.vmem %s2, %s278
      %p280 = pneg %p113
      %p281 = pneg %p110
      %p282 = scmp.lt.s32.totalorder %s23, 0
      %s283 = scalar_select %p282, %s23, 0
      %s284 = smul.addr %s283, 8
      %s285 = scalar_lea.vmem %s3, %s284
      %p286 = pneg %p139
      %p287 = pneg %p136
      %p288 = pneg %p167
      %p289 = pneg %p164
      %p290 = scmp.lt.s32.totalorder %s22, 1
      %s291 = scalar_select %p290, %s22, 1
      %p292 = scmp.lt.s32.totalorder %s23, 0
      %s293 = scalar_select %p292, %s23, 0
      %s294 = sadd.s32 %s293, %s291
      %s295 = smul.addr %s294, 4
      %s296 = scalar_lea.vmem %s4, %s295
      %p297 = pneg %p195
      %p298 = pneg %p192
      %p299 = scmp.lt.s32.totalorder %s22, 1
      %s300 = scalar_select %p299, %s22, 1
      %p301 = scmp.lt.s32.totalorder %s23, 0
      %s302 = scalar_select %p301, %s23, 0
      %s303 = sadd.s32 %s302, %s300
      %s304 = smul.addr %s303, 4
      %s305 = scalar_lea.vmem %s5, %s304
      %p306 = scmp.lt.s32.totalorder %s22, 1
      %s307 = scalar_select %p306, %s22, 1
      %p308 = scmp.lt.s32.totalorder %s23, 0
      %s309 = scalar_select %p308, %s23, 0
      %p310 = scmp.lt.s32.totalorder %s24, 0
      %s311 = scalar_select %p310, %s24, 0
      %s312 = sadd.s32 %s311, %s309
      %s313 = sadd.s32 %s312, %s307
      %s314 = smul.addr %s313, 8
      %s315 = scalar_lea.vmem %s0, %s314
      %s316 = smul.u32 4, %s24
      %p317 = scmp.lt.s32.totalorder %s316, 3
      %s318 = scalar_select %p317, %s316, 3
      %s319 = smul.addr %s318, 4
      %s320 = scalar_lea.vmem %s1, %s319
      %s321 = smul.u32 4, %s24
      %p322 = scmp.lt.s32.totalorder %s23, 0
      %s323 = scalar_select %p322, %s23, 0
      %s324 = smul.addr %s323, 8
      %s325 = scalar_lea.vmem %s2, %s324
      %p326 = scmp.lt.s32.totalorder %s23, 0
      %s327 = scalar_select %p326, %s23, 0
      %s328 = smul.addr %s327, 8
      %s329 = scalar_lea.vmem %s3, %s328
      %p330 = scmp.lt.s32.totalorder %s22, 1
      %s331 = scalar_select %p330, %s22, 1
      %p332 = scmp.lt.s32.totalorder %s23, 0
      %s333 = scalar_select %p332, %s23, 0
      %s334 = sadd.s32 %s333, %s331
      %s335 = smul.addr %s334, 4
      %s336 = scalar_lea.vmem %s4, %s335
      %p337 = scmp.lt.s32.totalorder %s22, 1
      %s338 = scalar_select %p337, %s22, 1
      %p339 = scmp.lt.s32.totalorder %s23, 0
      %s340 = scalar_select %p339, %s23, 0
      %s341 = sadd.s32 %s340, %s338
      %s342 = smul.addr %s341, 4
      %s343 = scalar_lea.vmem %s5, %s342
      %p345 = scmp.eq.s32.totalorder %s24, 0
      // Predicated region
      $region37: #{_lambda_.43} parent=35 // pred_check
        %p346 = pneg %p345
      $region38: #{_lambda_.43} parent=35 // pred_check_branch
        %348 = sbr.rel (%p346) target = $region40
      $region39: #{_lambda_.43} parent=35 // pred_region
        %vm349 = vcmask 523264
        %350 = vst.msk [vmem:[#allocation2] sm:$0xff] %vm349, 0.0
      $region40: #{_lambda_.43} parent=35 // pred_fallthru
        _
      %v351 = vld [vmem:[#allocation2] sm:$0xff]
      %v352 = vld [vmem:[%s315] sm:$0xff]
      %v353 = vpack.c.bf16 %v352, %v352
      %v354 = vld [vmem:[%s320] sm:$0xf]
      %v355 = vld [vmem:[%s320 + $0x4] sm:$0xf]
      %v356 = vld [vmem:[%s320 + $0x8] sm:$0xf]
      %v357 = vld [vmem:[%s320 + $0xc] sm:$0xf]
      %v362 = vunpack.c.l.b16 %v354
      %v363 = vunpack.c.l.b16 %v355
      %v364 = vunpack.c.l.b16 %v356
      %v365 = vunpack.c.l.b16 %v357
      %v366 = vpack.c.b16 %v363, %v362
      %v367 = vpack.c.b16 %v365, %v364
      %vm370 = vcmask 261120
      %v372 = vsel %vm370, %v353, 0
      %374 = vmatpush.bf16.msra.mxu0 0
      %375 = vmatpush.bf16.msra.mxu0 0
      %376 = vmatpush.bf16.msra.mxu0 0
      %377 = vmatpush.bf16.msra.mxu0 0
      %378 = vmatpush.bf16.msra.mxu0 0
      %379 = vmatpush.bf16.msra.mxu0 0
      %380 = vmatpush.bf16.msra.mxu0 %v367
      %381 = vmatpush.bf16.msra.mxu0 %v366
      %382 = vmatmul.bf16.gmra.mxu0 %v372
      %v383 = vpop.f32.mrf.mxu0
      %v384 = vadd.f32 0.0, %v383
      %v385 = vpop.f32.mrf.mxu0
      %386 = vdwg.mxu0
      %v387 = vadd.f32 %v351, %v384
      %vm388 = vcmask 523264
      %389 = vst.msk [vmem:[#allocation2] sm:$0xff] %vm388, %v387
      // Predicated region
      $region41: #{_lambda_.43} parent=35 // pred_check
        %p390 = pneg %p345
      $region42: #{_lambda_.43} parent=35 // pred_check_branch
        %392 = sbr.rel (%p390) target = $region44
      $region43: #{_lambda_.43} parent=35 // pred_region
        %v393 = vld [vmem:[#allocation2] sm:$0xff]
        %v394 = vld [vmem:[%s325] sm:$0xff]
        %v395 = vld [vmem:[%s329] sm:$0xff]
        %v396 = vmul.f32 %v393, %v394
        %398 = vrot.lane.b32.xlu0 %v395, 16
        %v399 = vpop.permute.xlu0 %398
        %v401 = vmul.f32 %v393, %v399
        %403 = vrot.lane.b32.xlu0 %v401, 112
        %v404 = vpop.permute.xlu0 %403
        %v406 = vsub.f32 %v396, %v404
        %408 = vrot.lane.b32.xlu0 %v394, 16
        %v409 = vpop.permute.xlu0 %408
        %v411 = vmul.f32 %v393, %v409
        %v412 = vmul.f32 %v393, %v395
        %414 = vrot.lane.b32.xlu0 %v412, 16
        %v415 = vpop.permute.xlu0 %414
        %v417 = vadd.f32 %v411, %v415
        %vm418 = vcmask 130048
        %v419 = vsel %vm418, %v406, %v417
        %v420 = vpack.c.bf16 %v419, %v419
        %vm421 = vcmask 257024
        %422 = vst.msk [vmem:[%s336] sm:$0xf] %vm421, %v420
        %v423 = vpack.c.bf16 %v393, %v393
        %425 = vrot.lane.b32.xlu0 %v423, 96
        %v426 = vpop.permute.xlu0 %425
        %428 = vst.msk [vmem:[%s343] sm:$0xf] %vm421, %v426
      $region44: #{_lambda_.43} parent=35 // pred_fallthru
        _
      %p429 = scmp.lt.s32.totalorder %s22, 1
      %s430 = scalar_select %p429, %s22, 1
      %p431 = scmp.lt.s32.totalorder %s23, 0
      %s432 = scalar_select %p431, %s23, 0
      %s433 = sadd.s32 %s432, %s430
      %s434 = smul.addr %s433, 4
      %s435 = scalar_lea.vmem %s4, %s434
      %p436 = scmp.lt.s32.totalorder %s22, 1
      %s437 = scalar_select %p436, %s22, 1
      %p438 = scmp.lt.s32.totalorder %s23, 0
      %s439 = scalar_select %p438, %s23, 0
      %s440 = sadd.s32 %s439, %s437
      %s441 = smul.addr %s440, 4
      %s442 = scalar_lea.vmem %s5, %s441
      // Predicated region
      $region45: #{_lambda_.43} parent=35 // pred_check
        %p443 = pneg %p164
      $region46: #{_lambda_.43} parent=35 // pred_check_branch
        %445 = sbr.rel (%p443) target = $region48
      $region47: #{_lambda_.43} parent=35 // pred_region
        _
      $region48: #{_lambda_.43} parent=35 // pred_fallthru
        _
      // Predicated region
      $region49: #{_lambda_.43} parent=35 // pred_check
        %p446 = pneg %p192
      $region50: #{_lambda_.43} parent=35 // pred_check_branch
        %448 = sbr.rel (%p446) target = $region52
      $region51: #{_lambda_.43} parent=35 // pred_region
        _
      $region52: #{_lambda_.43} parent=35 // pred_fallthru
        _
    $region36: #{_lambda_.43} parent=5 // pred_fallthru
      _
    %p449 = scmp.le.s32.totalorder 2, %s12
    // Predicated region
    $region53: #{_lambda_.43} parent=5 // pred_check
      %p450 = pneg %p449
    $region54: #{_lambda_.43} parent=5 // pred_check_branch
      %452 = sbr.rel (%p450) target = $region56
    $region55: #{_lambda_.43} parent=5 // pred_region
      %s453 = ssub.s32 %s12, 2
      // Predicated region
      $region57: #{_lambda_.43} parent=55 // pred_check
        %p454 = pneg %p170
      $region58: #{_lambda_.43} parent=55 // pred_check_branch
        %456 = sbr.rel (%p454) target = $region60
      $region59: #{_lambda_.43} parent=55 // pred_region
        %p457 = scmp.lt.s32.totalorder %s25, 1
        %s458 = scalar_select %p457, %s25, 1
        %p459 = scmp.lt.s32.totalorder %s26, 0
        %s460 = scalar_select %p459, %s26, 0
        %s461 = sadd.s32 %s460, %s458
        %s462 = smul.addr %s461, 4
        %s463 = scalar_lea.vmem %s4, %s462
      $region60: #{_lambda_.43} parent=55 // pred_fallthru
        _
      // Predicated region
      $region61: #{_lambda_.43} parent=55 // pred_check
        %p464 = pneg %p198
      $region62: #{_lambda_.43} parent=55 // pred_check_branch
        %466 = sbr.rel (%p464) target = $region64
      $region63: #{_lambda_.43} parent=55 // pred_region
        %p467 = scmp.lt.s32.totalorder %s25, 1
        %s468 = scalar_select %p467, %s25, 1
        %p469 = scmp.lt.s32.totalorder %s26, 0
        %s470 = scalar_select %p469, %s26, 0
        %s471 = sadd.s32 %s470, %s468
        %s472 = smul.addr %s471, 4
        %s473 = scalar_lea.vmem %s5, %s472
      $region64: #{_lambda_.43} parent=55 // pred_fallthru
        _
    $region56: #{_lambda_.43} parent=5 // pred_fallthru
      _
  $region6: #{_lambda_.43} parent=0 // loop_footer
    %s16 = sadd.s32 1, %s12
  $region7: #{_lambda_.43} parent=0 // loop_footer_branch
    %11 = sbr.rel target = $region3
  $region8: #{_lambda_.43} parent=0 // loop_exit
    _

// kernel: _lambda_.57
$region0: #{_lambda_.57}
  #allocation0 [shape = 'u32[]', space=smem, size = 0x4, offset = 0x4, fixed_abs, tag = 'smem constant byte address 0x4 - core index']
  #allocation1 [shape = 'u32[72,128]{1,0:T(1,128)}', space=vmem, size = 0x9000, scoped, tag = 'internal scratch']
  #allocation2 [shape = 'f32[16,16]{1,0:T(8,128)}', space=vmem, size = 0x2000, scoped, tag = 'scratch operand']
  %s0 = inlined_call_operand.vmem [shape: f32[16,32], index: 0, kind: input, shape index: {}]
  %s1 = inlined_call_operand.vmem [shape: bf16[32,16], index: 1, kind: input, shape index: {}]
  %s2 = inlined_call_operand.vmem [shape: f32[1,16], index: 2, kind: input, shape index: {}]
  %s3 = inlined_call_operand.hbm [shape: f32[16,16], index: 3, kind: output, shape index: {}]
  %s4 = sld [smem:[#allocation0]]
  $region30: #{_lambda_.57} parent=0
    _
  %s6 = ssub.s32 1, %s4
  %s7 = scalar_select 0, %s6, %s4
  $region1: #{_lambda_.57} parent=0
    #allocation3 [shape = 'u8[8192]{0}', space=vmem, size = 0x2000, scoped, tag = 'output window, operand 0, single buffered']
    #allocation4 [shape = 's32[1]{0}', space=sflag, size = 0x4, scoped, tag = 'scoped memory for _lambda_.57']
    %8 = vsyncpa [#allocation4], 0
    // Predicated region
    $region2: #{_lambda_.57} parent=1 // pred_check
      _
    $region3: #{_lambda_.57} parent=1 // pred_check_branch
      %10 = sbr.rel (0) target = $region5
    $region4: #{_lambda_.57} parent=1 // pred_region
      _
    $region5: #{_lambda_.57} parent=1 // pred_fallthru
      _
    // Predicated region
    $region6: #{_lambda_.57} parent=1 // pred_check
      _
    $region7: #{_lambda_.57} parent=1 // pred_check_branch
      %12 = sbr.rel (0) target = $region9
    $region8: #{_lambda_.57} parent=1 // pred_region
      _
    $region9: #{_lambda_.57} parent=1 // pred_fallthru
      _
    // Predicated region
    $region10: #{_lambda_.57} parent=1 // pred_check
      _
    $region11: #{_lambda_.57} parent=1 // pred_check_branch
      %14 = sbr.rel (0) target = $region13
    $region12: #{_lambda_.57} parent=1 // pred_region
      _
    $region13: #{_lambda_.57} parent=1 // pred_fallthru
      _
    %p16 = scmp.eq.s32.totalorder 0, 0
    // Predicated region
    $region14: #{_lambda_.57} parent=1 // pred_check
      %p17 = pneg %p16
    $region15: #{_lambda_.57} parent=1 // pred_check_branch
      %19 = sbr.rel (%p17) target = $region17
    $region16: #{_lambda_.57} parent=1 // pred_region
      %vm20 = vcmask 130048
      %21 = vst.msk [vmem:[#allocation2] sm:$0xff] %vm20, 0.0
      %22 = vst.msk [vmem:[#allocation2 + $0x8] sm:$0xff] %vm20, 0.0
    $region17: #{_lambda_.57} parent=1 // pred_fallthru
      _
    %v23 = vld [vmem:[#allocation2] sm:$0xff]
    %v24 = vld [vmem:[#allocation2 + $0x8] sm:$0xff]
    %v25 = vld [vmem:[%s0] sm:$0xff]
    %v26 = vld [vmem:[%s0 + $0x8] sm:$0xff]
    %v27 = vpack.c.bf16 %v26, %v25
    %v28 = vld [vmem:[%s1] sm:$0xf]
    %v29 = vld [vmem:[%s1 + $0x4] sm:$0xf]
    %v30 = vld [vmem:[%s1 + $0x8] sm:$0xf]
    %v31 = vld [vmem:[%s1 + $0xc] sm:$0xf]
    %v36 = vunpack.c.l.b16 %v28
    %v37 = vunpack.c.l.b16 %v29
    %v38 = vunpack.c.l.b16 %v30
    %v39 = vunpack.c.l.b16 %v31
    %v40 = vpack.c.b16 %v37, %v36
    %v41 = vpack.c.b16 %v39, %v38
    %vm44 = vcmask 261120
    %v46 = vsel %vm44, %v27, 0
    %48 = vmatpush.bf16.msra.mxu0 0
    %49 = vmatpush.bf16.msra.mxu0 0
    %50 = vmatpush.bf16.msra.mxu0 0
    %51 = vmatpush.bf16.msra.mxu0 0
    %52 = vmatpush.bf16.msra.mxu0 0
    %53 = vmatpush.bf16.msra.mxu0 0
    %54 = vmatpush.bf16.msra.mxu0 %v41
    %55 = vmatpush.bf16.msra.mxu0 %v40
    %56 = vmatmul.bf16.gmra.mxu0 %v46
    %v57 = vpop.f32.mrf.mxu0
    %v58 = vadd.f32 0.0, %v57
    %v59 = vpop.f32.mrf.mxu0
    %v60 = vadd.f32 0.0, %v59
    %61 = vdwg.mxu0
    %v62 = vadd.f32 %v23, %v58
    %v63 = vadd.f32 %v24, %v60
    %vm64 = vcmask 130048
    %65 = vst.msk [vmem:[#allocation2] sm:$0xff] %vm64, %v62
    %66 = vst.msk [vmem:[#allocation2 + $0x8] sm:$0xff] %vm64, %v63
    // Predicated region
    $region18: #{_lambda_.57} parent=1 // pred_check
      %p67 = pneg %p16
    $region19: #{_lambda_.57} parent=1 // pred_check_branch
      %69 = sbr.rel (%p67) target = $region21
    $region20: #{_lambda_.57} parent=1 // pred_region
      %v70 = vld [vmem:[#allocation2] sm:$0xff]
      %v71 = vld [vmem:[#allocation2 + $0x8] sm:$0xff]
      %v72 = vld [vmem:[%s2] sm:$0x1]
      %v74 = vperm.slane %v72, 0
      %v76 = vadd.f32 %v70, %v74
      %v77 = vadd.f32 %v71, %v74
      %78 = vst.msk [vmem:[#allocation3] sm:$0xff] %vm64, %v76
      %79 = vst.msk [vmem:[#allocation3 + $0x8] sm:$0xff] %vm64, %v77
    $region21: #{_lambda_.57} parent=1 // pred_fallthru
      _
    // Predicated region
    $region22: #{_lambda_.57} parent=1 // pred_check
      _
    $region23: #{_lambda_.57} parent=1 // pred_check_branch
      %81 = sbr.rel (0) target = $region25
    $region24: #{_lambda_.57} parent=1 // pred_region
      %83 = vsyncadd [#allocation4], 0
      %s84 = sshll.u32 [#allocation3], 4
      %s85 = int_to_ptr.vmem [resolvable:$true] %s84
      %s86 = sshll.u32 %s3, 4
      %s87 = int_to_ptr.hbm [resolvable:$true] %s86
      %92 = dma.vmem_to_hbm [thread:$0]  %s85, 256, %s87, [#allocation4], 128, 128, 8
    $region25: #{_lambda_.57} parent=1 // pred_fallthru
      _
    // Predicated region
    $region26: #{_lambda_.57} parent=1 // pred_check
      _
    $region27: #{_lambda_.57} parent=1 // pred_check_branch
      %94 = sbr.rel (0) target = $region29
    $region28: #{_lambda_.57} parent=1 // pred_region
      %96 = dma.done [#allocation4], 256
    $region29: #{_lambda_.57} parent=1 // pred_fallthru
      _
    %97 = vsyncpa [#allocation4], 1

</llo_original>
